<compile_context>
chip_gen: v5e
topology: v5e:2x2
jax: 0.10.0
libtpu: 0.0.40
codegen_flags: <defaults>
</compile_context>

<pallas_src>
import functools

import jax
import jax.numpy as jnp
from jax.experimental import pallas as pl
from jax.experimental.pallas import tpu as pltpu


def _mlp_kernel(x_ref,
                w1_ref, b1_ref,
                w2_ref, b2_ref,
                w3_ref, b3_ref,
                w4_ref, b4_ref,
                o_ref):
    """Fused 4-layer MLP forward for one batch tile.

    bf16 operands into the MXU, f32 accumulation; bias-add + ReLU in f32 on
    the VPU; activations recast to bf16 only at the next matmul input.
    """
    h = x_ref[...].astype(jnp.bfloat16)

    # encoder
    h = jnp.dot(h, w1_ref[...], preferred_element_type=jnp.float32) + b1_ref[...]
    h = jnp.maximum(h, 0.0).astype(jnp.bfloat16)
    h = jnp.dot(h, w2_ref[...], preferred_element_type=jnp.float32) + b2_ref[...]
    h = jnp.maximum(h, 0.0).astype(jnp.bfloat16)

    # decoder
    h = jnp.dot(h, w3_ref[...], preferred_element_type=jnp.float32) + b3_ref[...]
    h = jnp.maximum(h, 0.0).astype(jnp.bfloat16)
    h = jnp.dot(h, w4_ref[...], preferred_element_type=jnp.float32) + b4_ref[...]

    o_ref[...] = h.astype(o_ref.dtype)


def _round_up(n, m):
    return ((n + m - 1) // m) * m


@functools.partial(jax.jit, static_argnames=("block_b",))
def autoencoder_forward(x, params, block_b=256):
    """x: (B, D) float32.  params: (in,out) bf16 weights, (1,out) f32 biases.

    block_b: requested batch tile.  128 is the sweet spot on v5e (4x128 MXU),
    256 on v6e/v7x (2x256 MXU).  The tile auto-shrinks for small batches and
    the batch is zero-padded up to a tile multiple (sliced back afterwards).
    """
    B, D = x.shape
    w1, b1 = params["w1"], params["b1"]
    w2, b2 = params["w2"], params["b2"]
    w3, b3 = params["w3"], params["b3"]
    w4, b4 = params["w4"], params["b4"]
    H0 = w1.shape[1]   # 512
    H1 = w2.shape[1]   # 512

    # Effective batch tile: multiple of 8 (sublane), never over-padding tiny
    # batches, capped at the requested block_b.
    bb = min(block_b, _round_up(B, 8))
    Bp = _round_up(B, bb)
    if Bp != B:
        x = jnp.pad(x, ((0, Bp - B), (0, 0)))
    grid = (Bp // bb,)

    # Advisory cost estimate (flops dominate; weights counted once).
    flops = 2 * Bp * (D * H0 + H0 * H1 + H1 * H0 + H0 * D)
    bytes_accessed = (
        Bp * D * x.dtype.itemsize                 # input
        + Bp * D * x.dtype.itemsize               # output
        + sum(int(p.size) * p.dtype.itemsize
              for p in (w1, b1, w2, b2, w3, b3, w4, b4))
    )
    cost = pl.CostEstimate(flops=flops, transcendentals=0,
                           bytes_accessed=bytes_accessed)

    def full(shape):
        # Grid-invariant operand (weights / biases): same whole block each step.
        return pl.BlockSpec(shape, lambda i: (0,) * len(shape))

    out = pl.pallas_call(
        _mlp_kernel,
        out_shape=jax.ShapeDtypeStruct((Bp, D), x.dtype),
        grid_spec=pltpu.PrefetchScalarGridSpec(
            num_scalar_prefetch=0,
            grid=grid,
            in_specs=[
                pl.BlockSpec((bb, D), lambda i: (i, 0)),    # x tile
                full((D, H0)),  full((1, H0)),              # w1 (bf16), b1 (f32)
                full((H0, H1)), full((1, H1)),              # w2, b2
                full((H1, H0)), full((1, H0)),              # w3, b3
                full((H0, D)),  full((1, D)),               # w4, b4
            ],
            out_specs=pl.BlockSpec((bb, D), lambda i: (i, 0)),
        ),
        compiler_params=pltpu.CompilerParams(
            dimension_semantics=("parallel",),
        ),
        cost_estimate=cost,
    )(x, w1, b1, w2, b2, w3, b3, w4, b4)

    return out[:B] if Bp != B else out


def init_params(key, input_dim=512, dims=(512, 512),
                w_dtype=jnp.bfloat16, b_dtype=jnp.float32):
    """Deterministic synthetic parameters; weights stored as (in, out) bf16."""
    d0, d1 = dims
    shapes = [
        ("w1", (input_dim, d0)), ("b1", (1, d0)),
        ("w2", (d0, d1)),        ("b2", (1, d1)),
        ("w3", (d1, d0)),        ("b3", (1, d0)),
        ("w4", (d0, input_dim)), ("b4", (1, input_dim)),
    ]
    keys = jax.random.split(key, len(shapes))
    params = {}
    for (name, shape), k in zip(shapes, keys):
        is_w = name.startswith("w")
        fan_in = shape[0] if is_w else shape[1]
        scale = 1.0 / jnp.sqrt(jnp.float32(fan_in))
        v = scale * jax.random.normal(k, shape, dtype=jnp.float32)
        params[name] = v.astype(w_dtype if is_w else b_dtype)
    return params


def _reference_forward(x, p):
    """Plain-JAX reference with the same bf16-in / f32-accumulate math."""
    def lin(h, w, b):
        return jnp.dot(h.astype(jnp.bfloat16), w,
                       preferred_element_type=jnp.float32) + b
    h = jnp.maximum(lin(x, p["w1"], p["b1"]), 0.0)
    h = jnp.maximum(lin(h, p["w2"], p["b2"]), 0.0)
    h = jnp.maximum(lin(h, p["w3"], p["b3"]), 0.0)
    return lin(h, p["w4"], p["b4"]).astype(x.dtype)


if __name__ == "__main__":
    key = jax.random.PRNGKey(0)
    k_params, k_x1, k_x2 = jax.random.split(key, 3)

    INPUT_DIM = 512   # module default

    params = init_params(k_params, input_dim=INPUT_DIM)

    # Small smoke test: batch=8 -> tile shrinks to 8, single grid step.
    x_small = jax.random.normal(k_x1, (8, INPUT_DIM), dtype=jnp.float32)
    y_small = jax.block_until_ready(autoencoder_forward(x_small, params))
    assert y_small.shape == (8, INPUT_DIM)
    assert jnp.allclose(y_small, _reference_forward(x_small, params),
                        atol=2e-2, rtol=2e-2), "small-batch mismatch vs reference"

    # Ragged, larger batch: exercises zero-padding (384 -> 512) and a
    # multi-step parallel grid (2 tiles of 256 rows -> both v7x cores busy).
    x_big = jax.random.normal(k_x2, (384, INPUT_DIM), dtype=jnp.float32)
    y_big = jax.block_until_ready(autoencoder_forward(x_big, params, block_b=256))
    assert y_big.shape == (384, INPUT_DIM)
    assert jnp.allclose(y_big, _reference_forward(x_big, params),
                        atol=2e-2, rtol=2e-2), "large-batch mismatch vs reference"

    print("KERNEL_OK")
</pallas_src>

<mosaic_0001>
module attributes {stable_mosaic.version = 11 : i64} {
  func.func @_mlp_kernel(%arg0: i32, %arg1: memref<8x512xf32, #tpu.memory_space<vmem>>, %arg2: memref<512x512xbf16, #tpu.memory_space<vmem>>, %arg3: memref<1x512xf32, #tpu.memory_space<vmem>>, %arg4: memref<512x512xbf16, #tpu.memory_space<vmem>>, %arg5: memref<1x512xf32, #tpu.memory_space<vmem>>, %arg6: memref<512x512xbf16, #tpu.memory_space<vmem>>, %arg7: memref<1x512xf32, #tpu.memory_space<vmem>>, %arg8: memref<512x512xbf16, #tpu.memory_space<vmem>>, %arg9: memref<1x512xf32, #tpu.memory_space<vmem>>, %arg10: memref<8x512xf32, #tpu.memory_space<vmem>>) attributes {dimension_semantics = [#tpu.dimension_semantics<parallel>], iteration_bounds = array<i64: 1>, scalar_prefetch = 0 : i64, scratch_operands = 0 : i64, tpu.core_type = #tpu.core_type<tc>, window_params = [{transform_indices = @transform_0, window_bounds = array<i64: 8, 512>}, {pipeline_mode = #tpu.pipeline_mode<synchronous>, transform_indices = @transform_1, window_bounds = array<i64: 512, 512>}, {pipeline_mode = #tpu.pipeline_mode<synchronous>, transform_indices = @transform_2, window_bounds = array<i64: 1, 512>}, {pipeline_mode = #tpu.pipeline_mode<synchronous>, transform_indices = @transform_3, window_bounds = array<i64: 512, 512>}, {pipeline_mode = #tpu.pipeline_mode<synchronous>, transform_indices = @transform_4, window_bounds = array<i64: 1, 512>}, {pipeline_mode = #tpu.pipeline_mode<synchronous>, transform_indices = @transform_5, window_bounds = array<i64: 512, 512>}, {pipeline_mode = #tpu.pipeline_mode<synchronous>, transform_indices = @transform_6, window_bounds = array<i64: 1, 512>}, {pipeline_mode = #tpu.pipeline_mode<synchronous>, transform_indices = @transform_7, window_bounds = array<i64: 512, 512>}, {pipeline_mode = #tpu.pipeline_mode<synchronous>, transform_indices = @transform_8, window_bounds = array<i64: 1, 512>}, {transform_indices = @transform_9, window_bounds = array<i64: 8, 512>}]} {
    %c0 = arith.constant 0 : index
    %c0_0 = arith.constant 0 : index
    %0 = vector.load %arg1[%c0, %c0_0] : memref<8x512xf32, #tpu.memory_space<vmem>>, vector<8x512xf32>
    %1 = arith.truncf %0 : vector<8x512xf32> to vector<8x512xbf16>
    %c0_1 = arith.constant 0 : index
    %c0_2 = arith.constant 0 : index
    %2 = vector.load %arg2[%c0_1, %c0_2] : memref<512x512xbf16, #tpu.memory_space<vmem>>, vector<512x512xbf16>
    %cst = arith.constant dense<0.000000e+00> : vector<8x512xf32>
    %3 = tpu.matmul %1, %2, %cst {dimension_numbers = #tpu.dot_dimension_numbers<[1], [0], [0], [1], [0, 0, 1, 1], [], []>} : vector<8x512xbf16>, vector<512x512xbf16>, vector<8x512xf32> -> vector<8x512xf32>
    %c0_3 = arith.constant 0 : index
    %c0_4 = arith.constant 0 : index
    %4 = vector.load %arg3[%c0_3, %c0_4] : memref<1x512xf32, #tpu.memory_space<vmem>>, vector<1x512xf32>
    %5 = vector.broadcast %4 : vector<1x512xf32> to vector<8x512xf32>
    %6 = arith.addf %3, %5 : vector<8x512xf32>
    %cst_5 = arith.constant 0.000000e+00 : f32
    %7 = vector.broadcast %cst_5 : f32 to vector<8x512xf32>
    %8 = arith.maximumf %6, %7 : vector<8x512xf32>
    %9 = arith.truncf %8 : vector<8x512xf32> to vector<8x512xbf16>
    %c0_6 = arith.constant 0 : index
    %c0_7 = arith.constant 0 : index
    %10 = vector.load %arg4[%c0_6, %c0_7] : memref<512x512xbf16, #tpu.memory_space<vmem>>, vector<512x512xbf16>
    %cst_8 = arith.constant dense<0.000000e+00> : vector<8x512xf32>
    %11 = tpu.matmul %9, %10, %cst_8 {dimension_numbers = #tpu.dot_dimension_numbers<[1], [0], [0], [1], [0, 0, 1, 1], [], []>} : vector<8x512xbf16>, vector<512x512xbf16>, vector<8x512xf32> -> vector<8x512xf32>
    %c0_9 = arith.constant 0 : index
    %c0_10 = arith.constant 0 : index
    %12 = vector.load %arg5[%c0_9, %c0_10] : memref<1x512xf32, #tpu.memory_space<vmem>>, vector<1x512xf32>
    %13 = vector.broadcast %12 : vector<1x512xf32> to vector<8x512xf32>
    %14 = arith.addf %11, %13 : vector<8x512xf32>
    %cst_11 = arith.constant 0.000000e+00 : f32
    %15 = vector.broadcast %cst_11 : f32 to vector<8x512xf32>
    %16 = arith.maximumf %14, %15 : vector<8x512xf32>
    %17 = arith.truncf %16 : vector<8x512xf32> to vector<8x512xbf16>
    %c0_12 = arith.constant 0 : index
    %c0_13 = arith.constant 0 : index
    %18 = vector.load %arg6[%c0_12, %c0_13] : memref<512x512xbf16, #tpu.memory_space<vmem>>, vector<512x512xbf16>
    %cst_14 = arith.constant dense<0.000000e+00> : vector<8x512xf32>
    %19 = tpu.matmul %17, %18, %cst_14 {dimension_numbers = #tpu.dot_dimension_numbers<[1], [0], [0], [1], [0, 0, 1, 1], [], []>} : vector<8x512xbf16>, vector<512x512xbf16>, vector<8x512xf32> -> vector<8x512xf32>
    %c0_15 = arith.constant 0 : index
    %c0_16 = arith.constant 0 : index
    %20 = vector.load %arg7[%c0_15, %c0_16] : memref<1x512xf32, #tpu.memory_space<vmem>>, vector<1x512xf32>
    %21 = vector.broadcast %20 : vector<1x512xf32> to vector<8x512xf32>
    %22 = arith.addf %19, %21 : vector<8x512xf32>
    %cst_17 = arith.constant 0.000000e+00 : f32
    %23 = vector.broadcast %cst_17 : f32 to vector<8x512xf32>
    %24 = arith.maximumf %22, %23 : vector<8x512xf32>
    %25 = arith.truncf %24 : vector<8x512xf32> to vector<8x512xbf16>
    %c0_18 = arith.constant 0 : index
    %c0_19 = arith.constant 0 : index
    %26 = vector.load %arg8[%c0_18, %c0_19] : memref<512x512xbf16, #tpu.memory_space<vmem>>, vector<512x512xbf16>
    %cst_20 = arith.constant dense<0.000000e+00> : vector<8x512xf32>
    %27 = tpu.matmul %25, %26, %cst_20 {dimension_numbers = #tpu.dot_dimension_numbers<[1], [0], [0], [1], [0, 0, 1, 1], [], []>} : vector<8x512xbf16>, vector<512x512xbf16>, vector<8x512xf32> -> vector<8x512xf32>
    %c0_21 = arith.constant 0 : index
    %c0_22 = arith.constant 0 : index
    %28 = vector.load %arg9[%c0_21, %c0_22] : memref<1x512xf32, #tpu.memory_space<vmem>>, vector<1x512xf32>
    %29 = vector.broadcast %28 : vector<1x512xf32> to vector<8x512xf32>
    %30 = arith.addf %27, %29 : vector<8x512xf32>
    %c0_23 = arith.constant 0 : index
    %c0_24 = arith.constant 0 : index
    %31 = vector.load %arg10[%c0_23, %c0_24] : memref<8x512xf32, #tpu.memory_space<vmem>>, vector<8x512xf32>
    tpu.vector_store %arg10[%c0_23, %c0_24], %30 {strides = array<i32>} : memref<8x512xf32, #tpu.memory_space<vmem>>, vector<8x512xf32>,
    return
  }
  func.func @transform_0(%arg0: i32) -> (i32, i32) {
    %c0_i32 = arith.constant 0 : i32
    %c0_i32_0 = arith.constant 0 : i32
    return %arg0, %c0_i32 : i32, i32
  }
  func.func @transform_1(%arg0: i32) -> (i32, i32) {
    %c0_i32 = arith.constant 0 : i32
    %c0_i32_0 = arith.constant 0 : i32
    %c0_i32_1 = arith.constant 0 : i32
    return %c0_i32, %c0_i32_0 : i32, i32
  }
  func.func @transform_2(%arg0: i32) -> (i32, i32) {
    %c0_i32 = arith.constant 0 : i32
    %c0_i32_0 = arith.constant 0 : i32
    %c0_i32_1 = arith.constant 0 : i32
    return %c0_i32, %c0_i32_0 : i32, i32
  }
  func.func @transform_3(%arg0: i32) -> (i32, i32) {
    %c0_i32 = arith.constant 0 : i32
    %c0_i32_0 = arith.constant 0 : i32
    %c0_i32_1 = arith.constant 0 : i32
    return %c0_i32, %c0_i32_0 : i32, i32
  }
  func.func @transform_4(%arg0: i32) -> (i32, i32) {
    %c0_i32 = arith.constant 0 : i32
    %c0_i32_0 = arith.constant 0 : i32
    %c0_i32_1 = arith.constant 0 : i32
    return %c0_i32, %c0_i32_0 : i32, i32
  }
  func.func @transform_5(%arg0: i32) -> (i32, i32) {
    %c0_i32 = arith.constant 0 : i32
    %c0_i32_0 = arith.constant 0 : i32
    %c0_i32_1 = arith.constant 0 : i32
    return %c0_i32, %c0_i32_0 : i32, i32
  }
  func.func @transform_6(%arg0: i32) -> (i32, i32) {
    %c0_i32 = arith.constant 0 : i32
    %c0_i32_0 = arith.constant 0 : i32
    %c0_i32_1 = arith.constant 0 : i32
    return %c0_i32, %c0_i32_0 : i32, i32
  }
  func.func @transform_7(%arg0: i32) -> (i32, i32) {
    %c0_i32 = arith.constant 0 : i32
    %c0_i32_0 = arith.constant 0 : i32
    %c0_i32_1 = arith.constant 0 : i32
    return %c0_i32, %c0_i32_0 : i32, i32
  }
  func.func @transform_8(%arg0: i32) -> (i32, i32) {
    %c0_i32 = arith.constant 0 : i32
    %c0_i32_0 = arith.constant 0 : i32
    %c0_i32_1 = arith.constant 0 : i32
    return %c0_i32, %c0_i32_0 : i32, i32
  }
  func.func @transform_9(%arg0: i32) -> (i32, i32) {
    %c0_i32 = arith.constant 0 : i32
    %c0_i32_0 = arith.constant 0 : i32
    return %arg0, %c0_i32 : i32, i32
  }
}

</mosaic_0001>

<llo_original>
// kernel: autoencoder_forward.1
$region0: #{autoencoder_forward.1}
  #allocation0 [shape = 'u32[]', space=smem, size = 0x4, offset = 0x4, fixed_abs, tag = 'smem constant byte address 0x4 - core index']
  #allocation1 [shape = 'u32[72,128]{1,0:T(1,128)}', space=vmem, size = 0x9000, scoped, tag = 'internal scratch']
  %s0 = inlined_call_operand.hbm [shape: f32[8,512], index: 0, kind: input, shape index: {}]
  %s1 = inlined_call_operand.hbm [shape: bf16[512,512], index: 1, kind: input, shape index: {}]
  %s2 = inlined_call_operand.hbm [shape: f32[1,512], index: 2, kind: input, shape index: {}]
  %s3 = inlined_call_operand.hbm [shape: bf16[512,512], index: 3, kind: input, shape index: {}]
  %s4 = inlined_call_operand.hbm [shape: f32[1,512], index: 4, kind: input, shape index: {}]
  %s5 = inlined_call_operand.hbm [shape: bf16[512,512], index: 5, kind: input, shape index: {}]
  %s6 = inlined_call_operand.hbm [shape: f32[1,512], index: 6, kind: input, shape index: {}]
  %s7 = inlined_call_operand.hbm [shape: bf16[512,512], index: 7, kind: input, shape index: {}]
  %s8 = inlined_call_operand.hbm [shape: f32[1,512], index: 8, kind: input, shape index: {}]
  %s9 = inlined_call_operand.hbm [shape: f32[8,512], index: 9, kind: output, shape index: {}]
  %s10 = sld [smem:[#allocation0]]
  $region82: #{autoencoder_forward.1} parent=0
    _
  %s12 = ssub.s32 1, %s10
  %s13 = scalar_select 0, %s12, %s10
  $region1: #{autoencoder_forward.1} parent=0
    #allocation2 [shape = 'u8[16384]{0}', space=vmem, size = 0x4000, scoped, tag = 'input window, operand 0, single buffered']
    #allocation3 [shape = 's32[1]{0}', space=sflag, size = 0x4, scoped, tag = 'scoped memory for autoencoder_forward.1']
    #allocation4 [shape = 's32[1]{0}', space=sflag, size = 0x4, scoped, tag = 'scoped memory for autoencoder_forward.1']
    #allocation5 [shape = 'u8[524288]{0}', space=vmem, size = 0x80000, scoped, tag = 'input window, operand 1, single buffered']
    #allocation6 [shape = 's32[1]{0}', space=sflag, size = 0x4, scoped, tag = 'scoped memory for autoencoder_forward.1']
    #allocation7 [shape = 'u8[2048]{0}', space=vmem, size = 0x800, scoped, tag = 'input window, operand 2, single buffered']
    #allocation8 [shape = 'u8[524288]{0}', space=vmem, size = 0x80000, scoped, tag = 'input window, operand 3, single buffered']
    #allocation9 [shape = 's32[1]{0}', space=sflag, size = 0x4, scoped, tag = 'scoped memory for autoencoder_forward.1']
    #allocation10 [shape = 'u8[2048]{0}', space=vmem, size = 0x800, scoped, tag = 'input window, operand 4, single buffered']
    #allocation11 [shape = 'u8[524288]{0}', space=vmem, size = 0x80000, scoped, tag = 'input window, operand 5, single buffered']
    #allocation12 [shape = 's32[1]{0}', space=sflag, size = 0x4, scoped, tag = 'scoped memory for autoencoder_forward.1']
    #allocation13 [shape = 'u8[2048]{0}', space=vmem, size = 0x800, scoped, tag = 'input window, operand 6, single buffered']
    #allocation14 [shape = 'u8[524288]{0}', space=vmem, size = 0x80000, scoped, tag = 'input window, operand 7, single buffered']
    #allocation15 [shape = 's32[1]{0}', space=sflag, size = 0x4, scoped, tag = 'scoped memory for autoencoder_forward.1']
    #allocation16 [shape = 'u8[2048]{0}', space=vmem, size = 0x800, scoped, tag = 'input window, operand 8, single buffered']
    #allocation17 [shape = 'u8[16384]{0}', space=vmem, size = 0x4000, scoped, tag = 'output window, operand 0, single buffered']
    %14 = vsyncpa [#allocation3], 0
    %15 = vsyncpa [#allocation6], 0
    %16 = vsyncpa [#allocation9], 0
    %17 = vsyncpa [#allocation12], 0
    %18 = vsyncpa [#allocation15], 0
    %19 = vsyncpa [#allocation4], 0
    // Predicated region
    $region2: #{autoencoder_forward.1} parent=1 // pred_check
      _
    $region3: #{autoencoder_forward.1} parent=1 // pred_check_branch
      %21 = sbr.rel (0) target = $region5
    $region4: #{autoencoder_forward.1} parent=1 // pred_region
      %23 = vsyncadd [#allocation3], 0
      %s25 = sshll.u32 %s0, 4
      %s26 = int_to_ptr.hbm [resolvable:$true] %s25
      %s27 = sshll.u32 [#allocation2], 4
      %s28 = int_to_ptr.vmem [resolvable:$true] %s27
      %30 = dma.hbm_to_vmem [thread:$0]  %s26, 512, %s28, [#allocation3]
    $region5: #{autoencoder_forward.1} parent=1 // pred_fallthru
      _
    // Predicated region
    $region6: #{autoencoder_forward.1} parent=1 // pred_check
      _
    $region7: #{autoencoder_forward.1} parent=1 // pred_check_branch
      %32 = sbr.rel (0) target = $region9
    $region8: #{autoencoder_forward.1} parent=1 // pred_region
      %34 = vsyncadd [#allocation6], 0
      %s35 = sshll.u32 %s1, 4
      %s36 = int_to_ptr.hbm [resolvable:$true] %s35
      %s37 = sshll.u32 [#allocation5], 4
      %s38 = int_to_ptr.vmem [resolvable:$true] %s37
      %43 = dma.hbm_to_vmem [thread:$0]  %s36, 16384, %s38, [#allocation6], 256, 256, 16
    $region9: #{autoencoder_forward.1} parent=1 // pred_fallthru
      _
    // Predicated region
    $region10: #{autoencoder_forward.1} parent=1 // pred_check
      _
    $region11: #{autoencoder_forward.1} parent=1 // pred_check_branch
      %45 = sbr.rel (0) target = $region13
    $region12: #{autoencoder_forward.1} parent=1 // pred_region
      %47 = vsyncadd [#allocation6], 0
      %s49 = sshll.u32 %s2, 4
      %s50 = int_to_ptr.hbm [resolvable:$true] %s49
      %s51 = sshll.u32 [#allocation7], 4
      %s52 = int_to_ptr.vmem [resolvable:$true] %s51
      %54 = dma.hbm_to_vmem [thread:$0]  %s50, 64, %s52, [#allocation6]
    $region13: #{autoencoder_forward.1} parent=1 // pred_fallthru
      _
    // Predicated region
    $region14: #{autoencoder_forward.1} parent=1 // pred_check
      _
    $region15: #{autoencoder_forward.1} parent=1 // pred_check_branch
      %56 = sbr.rel (0) target = $region17
    $region16: #{autoencoder_forward.1} parent=1 // pred_region
      %58 = vsyncadd [#allocation9], 0
      %s59 = sshll.u32 %s3, 4
      %s60 = int_to_ptr.hbm [resolvable:$true] %s59
      %s61 = sshll.u32 [#allocation8], 4
      %s62 = int_to_ptr.vmem [resolvable:$true] %s61
      %67 = dma.hbm_to_vmem [thread:$0]  %s60, 16384, %s62, [#allocation9], 256, 256, 16
    $region17: #{autoencoder_forward.1} parent=1 // pred_fallthru
      _
    // Predicated region
    $region18: #{autoencoder_forward.1} parent=1 // pred_check
      _
    $region19: #{autoencoder_forward.1} parent=1 // pred_check_branch
      %69 = sbr.rel (0) target = $region21
    $region20: #{autoencoder_forward.1} parent=1 // pred_region
      %71 = vsyncadd [#allocation9], 0
      %s73 = sshll.u32 %s4, 4
      %s74 = int_to_ptr.hbm [resolvable:$true] %s73
      %s75 = sshll.u32 [#allocation10], 4
      %s76 = int_to_ptr.vmem [resolvable:$true] %s75
      %78 = dma.hbm_to_vmem [thread:$0]  %s74, 64, %s76, [#allocation9]
    $region21: #{autoencoder_forward.1} parent=1 // pred_fallthru
      _
    // Predicated region
    $region22: #{autoencoder_forward.1} parent=1 // pred_check
      _
    $region23: #{autoencoder_forward.1} parent=1 // pred_check_branch
      %80 = sbr.rel (0) target = $region25
    $region24: #{autoencoder_forward.1} parent=1 // pred_region
      %82 = vsyncadd [#allocation12], 0
      %s83 = sshll.u32 %s5, 4
      %s84 = int_to_ptr.hbm [resolvable:$true] %s83
      %s85 = sshll.u32 [#allocation11], 4
      %s86 = int_to_ptr.vmem [resolvable:$true] %s85
      %91 = dma.hbm_to_vmem [thread:$0]  %s84, 16384, %s86, [#allocation12], 256, 256, 16
    $region25: #{autoencoder_forward.1} parent=1 // pred_fallthru
      _
    // Predicated region
    $region26: #{autoencoder_forward.1} parent=1 // pred_check
      _
    $region27: #{autoencoder_forward.1} parent=1 // pred_check_branch
      %93 = sbr.rel (0) target = $region29
    $region28: #{autoencoder_forward.1} parent=1 // pred_region
      %95 = vsyncadd [#allocation12], 0
      %s97 = sshll.u32 %s6, 4
      %s98 = int_to_ptr.hbm [resolvable:$true] %s97
      %s99 = sshll.u32 [#allocation13], 4
      %s100 = int_to_ptr.vmem [resolvable:$true] %s99
      %102 = dma.hbm_to_vmem [thread:$0]  %s98, 64, %s100, [#allocation12]
    $region29: #{autoencoder_forward.1} parent=1 // pred_fallthru
      _
    // Predicated region
    $region30: #{autoencoder_forward.1} parent=1 // pred_check
      _
    $region31: #{autoencoder_forward.1} parent=1 // pred_check_branch
      %104 = sbr.rel (0) target = $region33
    $region32: #{autoencoder_forward.1} parent=1 // pred_region
      %106 = vsyncadd [#allocation15], 0
      %s107 = sshll.u32 %s7, 4
      %s108 = int_to_ptr.hbm [resolvable:$true] %s107
      %s109 = sshll.u32 [#allocation14], 4
      %s110 = int_to_ptr.vmem [resolvable:$true] %s109
      %115 = dma.hbm_to_vmem [thread:$0]  %s108, 16384, %s110, [#allocation15], 256, 256, 16
    $region33: #{autoencoder_forward.1} parent=1 // pred_fallthru
      _
    // Predicated region
    $region34: #{autoencoder_forward.1} parent=1 // pred_check
      _
    $region35: #{autoencoder_forward.1} parent=1 // pred_check_branch
      %117 = sbr.rel (0) target = $region37
    $region36: #{autoencoder_forward.1} parent=1 // pred_region
      %119 = vsyncadd [#allocation15], 0
      %s121 = sshll.u32 %s8, 4
      %s122 = int_to_ptr.hbm [resolvable:$true] %s121
      %s123 = sshll.u32 [#allocation16], 4
      %s124 = int_to_ptr.vmem [resolvable:$true] %s123
      %126 = dma.hbm_to_vmem [thread:$0]  %s122, 64, %s124, [#allocation15]
    $region37: #{autoencoder_forward.1} parent=1 // pred_fallthru
      _
    // Predicated region
    $region38: #{autoencoder_forward.1} parent=1 // pred_check
      _
    $region39: #{autoencoder_forward.1} parent=1 // pred_check_branch
      %128 = sbr.rel (0) target = $region41
    $region40: #{autoencoder_forward.1} parent=1 // pred_region
      %130 = dma.done [#allocation3], 512
    $region41: #{autoencoder_forward.1} parent=1 // pred_fallthru
      _
    // Predicated region
    $region42: #{autoencoder_forward.1} parent=1 // pred_check
      _
    $region43: #{autoencoder_forward.1} parent=1 // pred_check_branch
      %132 = sbr.rel (0) target = $region45
    $region44: #{autoencoder_forward.1} parent=1 // pred_region
      %134 = dma.done [#allocation6], 16384
    $region45: #{autoencoder_forward.1} parent=1 // pred_fallthru
      _
    // Predicated region
    $region46: #{autoencoder_forward.1} parent=1 // pred_check
      _
    $region47: #{autoencoder_forward.1} parent=1 // pred_check_branch
      %136 = sbr.rel (0) target = $region49
    $region48: #{autoencoder_forward.1} parent=1 // pred_region
      %138 = dma.done [#allocation6], 64
    $region49: #{autoencoder_forward.1} parent=1 // pred_fallthru
      _
    // Predicated region
    $region50: #{autoencoder_forward.1} parent=1 // pred_check
      _
    $region51: #{autoencoder_forward.1} parent=1 // pred_check_branch
      %140 = sbr.rel (0) target = $region53
    $region52: #{autoencoder_forward.1} parent=1 // pred_region
      %142 = dma.done [#allocation9], 16384
    $region53: #{autoencoder_forward.1} parent=1 // pred_fallthru
      _
    // Predicated region
    $region54: #{autoencoder_forward.1} parent=1 // pred_check
      _
    $region55: #{autoencoder_forward.1} parent=1 // pred_check_branch
      %144 = sbr.rel (0) target = $region57
    $region56: #{autoencoder_forward.1} parent=1 // pred_region
      %146 = dma.done [#allocation9], 64
    $region57: #{autoencoder_forward.1} parent=1 // pred_fallthru
      _
    // Predicated region
    $region58: #{autoencoder_forward.1} parent=1 // pred_check
      _
    $region59: #{autoencoder_forward.1} parent=1 // pred_check_branch
      %148 = sbr.rel (0) target = $region61
    $region60: #{autoencoder_forward.1} parent=1 // pred_region
      %150 = dma.done [#allocation12], 16384
    $region61: #{autoencoder_forward.1} parent=1 // pred_fallthru
      _
    // Predicated region
    $region62: #{autoencoder_forward.1} parent=1 // pred_check
      _
    $region63: #{autoencoder_forward.1} parent=1 // pred_check_branch
      %152 = sbr.rel (0) target = $region65
    $region64: #{autoencoder_forward.1} parent=1 // pred_region
      %154 = dma.done [#allocation12], 64
    $region65: #{autoencoder_forward.1} parent=1 // pred_fallthru
      _
    // Predicated region
    $region66: #{autoencoder_forward.1} parent=1 // pred_check
      _
    $region67: #{autoencoder_forward.1} parent=1 // pred_check_branch
      %156 = sbr.rel (0) target = $region69
    $region68: #{autoencoder_forward.1} parent=1 // pred_region
      %158 = dma.done [#allocation15], 16384
    $region69: #{autoencoder_forward.1} parent=1 // pred_fallthru
      _
    // Predicated region
    $region70: #{autoencoder_forward.1} parent=1 // pred_check
      _
    $region71: #{autoencoder_forward.1} parent=1 // pred_check_branch
      %160 = sbr.rel (0) target = $region73
    $region72: #{autoencoder_forward.1} parent=1 // pred_region
      %162 = dma.done [#allocation15], 64
    $region73: #{autoencoder_forward.1} parent=1 // pred_fallthru
      _
    %v163 = vld [vmem:[#allocation2] sm:$0xff]
    %v164 = vld [vmem:[#allocation2 + $0x8] sm:$0xff]
    %v165 = vld [vmem:[#allocation2 + $0x10] sm:$0xff]
    %v166 = vld [vmem:[#allocation2 + $0x18] sm:$0xff]
    %v167 = vpack.c.bf16 %v163, %v163
    %v168 = vpack.c.bf16 %v164, %v164
    %v169 = vpack.c.bf16 %v165, %v165
    %v170 = vpack.c.bf16 %v166, %v166
    %v171 = vld [vmem:[#allocation5] sm:$0xff]
    %v172 = vld [vmem:[#allocation5 + $0x8] sm:$0xff]
    %v173 = vld [vmem:[#allocation5 + $0x10] sm:$0xff]
    %v174 = vld [vmem:[#allocation5 + $0x18] sm:$0xff]
    %v175 = vld [vmem:[#allocation5 + $0x20] sm:$0xff]
    %v176 = vld [vmem:[#allocation5 + $0x28] sm:$0xff]
    %v177 = vld [vmem:[#allocation5 + $0x30] sm:$0xff]
    %v178 = vld [vmem:[#allocation5 + $0x38] sm:$0xff]
    %v179 = vld [vmem:[#allocation5 + $0x40] sm:$0xff]
    %v180 = vld [vmem:[#allocation5 + $0x48] sm:$0xff]
    %v181 = vld [vmem:[#allocation5 + $0x50] sm:$0xff]
    %v182 = vld [vmem:[#allocation5 + $0x58] sm:$0xff]
    %v183 = vld [vmem:[#allocation5 + $0x60] sm:$0xff]
    %v184 = vld [vmem:[#allocation5 + $0x68] sm:$0xff]
    %v185 = vld [vmem:[#allocation5 + $0x70] sm:$0xff]
    %v186 = vld [vmem:[#allocation5 + $0x78] sm:$0xff]
    %v187 = vld [vmem:[#allocation5 + $0x80] sm:$0xff]
    %v188 = vld [vmem:[#allocation5 + $0x88] sm:$0xff]
    %v189 = vld [vmem:[#allocation5 + $0x90] sm:$0xff]
    %v190 = vld [vmem:[#allocation5 + $0x98] sm:$0xff]
    %v191 = vld [vmem:[#allocation5 + $0xa0] sm:$0xff]
    %v192 = vld [vmem:[#allocation5 + $0xa8] sm:$0xff]
    %v193 = vld [vmem:[#allocation5 + $0xb0] sm:$0xff]
    %v194 = vld [vmem:[#allocation5 + $0xb8] sm:$0xff]
    %v195 = vld [vmem:[#allocation5 + $0xc0] sm:$0xff]
    %v196 = vld [vmem:[#allocation5 + $0xc8] sm:$0xff]
    %v197 = vld [vmem:[#allocation5 + $0xd0] sm:$0xff]
    %v198 = vld [vmem:[#allocation5 + $0xd8] sm:$0xff]
    %v199 = vld [vmem:[#allocation5 + $0xe0] sm:$0xff]
    %v200 = vld [vmem:[#allocation5 + $0xe8] sm:$0xff]
    %v201 = vld [vmem:[#allocation5 + $0xf0] sm:$0xff]
    %v202 = vld [vmem:[#allocation5 + $0xf8] sm:$0xff]
    %v203 = vld [vmem:[#allocation5 + $0x100] sm:$0xff]
    %v204 = vld [vmem:[#allocation5 + $0x108] sm:$0xff]
    %v205 = vld [vmem:[#allocation5 + $0x110] sm:$0xff]
    %v206 = vld [vmem:[#allocation5 + $0x118] sm:$0xff]
    %v207 = vld [vmem:[#allocation5 + $0x120] sm:$0xff]
    %v208 = vld [vmem:[#allocation5 + $0x128] sm:$0xff]
    %v209 = vld [vmem:[#allocation5 + $0x130] sm:$0xff]
    %v210 = vld [vmem:[#allocation5 + $0x138] sm:$0xff]
    %v211 = vld [vmem:[#allocation5 + $0x140] sm:$0xff]
    %v212 = vld [vmem:[#allocation5 + $0x148] sm:$0xff]
    %v213 = vld [vmem:[#allocation5 + $0x150] sm:$0xff]
    %v214 = vld [vmem:[#allocation5 + $0x158] sm:$0xff]
    %v215 = vld [vmem:[#allocation5 + $0x160] sm:$0xff]
    %v216 = vld [vmem:[#allocation5 + $0x168] sm:$0xff]
    %v217 = vld [vmem:[#allocation5 + $0x170] sm:$0xff]
    %v218 = vld [vmem:[#allocation5 + $0x178] sm:$0xff]
    %v219 = vld [vmem:[#allocation5 + $0x180] sm:$0xff]
    %v220 = vld [vmem:[#allocation5 + $0x188] sm:$0xff]
    %v221 = vld [vmem:[#allocation5 + $0x190] sm:$0xff]
    %v222 = vld [vmem:[#allocation5 + $0x198] sm:$0xff]
    %v223 = vld [vmem:[#allocation5 + $0x1a0] sm:$0xff]
    %v224 = vld [vmem:[#allocation5 + $0x1a8] sm:$0xff]
    %v225 = vld [vmem:[#allocation5 + $0x1b0] sm:$0xff]
    %v226 = vld [vmem:[#allocation5 + $0x1b8] sm:$0xff]
    %v227 = vld [vmem:[#allocation5 + $0x1c0] sm:$0xff]
    %v228 = vld [vmem:[#allocation5 + $0x1c8] sm:$0xff]
    %v229 = vld [vmem:[#allocation5 + $0x1d0] sm:$0xff]
    %v230 = vld [vmem:[#allocation5 + $0x1d8] sm:$0xff]
    %v231 = vld [vmem:[#allocation5 + $0x1e0] sm:$0xff]
    %v232 = vld [vmem:[#allocation5 + $0x1e8] sm:$0xff]
    %v233 = vld [vmem:[#allocation5 + $0x1f0] sm:$0xff]
    %v234 = vld [vmem:[#allocation5 + $0x1f8] sm:$0xff]
    %v235 = vld [vmem:[#allocation5 + $0x200] sm:$0xff]
    %v236 = vld [vmem:[#allocation5 + $0x208] sm:$0xff]
    %v237 = vld [vmem:[#allocation5 + $0x210] sm:$0xff]
    %v238 = vld [vmem:[#allocation5 + $0x218] sm:$0xff]
    %v239 = vld [vmem:[#allocation5 + $0x220] sm:$0xff]
    %v240 = vld [vmem:[#allocation5 + $0x228] sm:$0xff]
    %v241 = vld [vmem:[#allocation5 + $0x230] sm:$0xff]
    %v242 = vld [vmem:[#allocation5 + $0x238] sm:$0xff]
    %v243 = vld [vmem:[#allocation5 + $0x240] sm:$0xff]
    %v244 = vld [vmem:[#allocation5 + $0x248] sm:$0xff]
    %v245 = vld [vmem:[#allocation5 + $0x250] sm:$0xff]
    %v246 = vld [vmem:[#allocation5 + $0x258] sm:$0xff]
    %v247 = vld [vmem:[#allocation5 + $0x260] sm:$0xff]
    %v248 = vld [vmem:[#allocation5 + $0x268] sm:$0xff]
    %v249 = vld [vmem:[#allocation5 + $0x270] sm:$0xff]
    %v250 = vld [vmem:[#allocation5 + $0x278] sm:$0xff]
    %v251 = vld [vmem:[#allocation5 + $0x280] sm:$0xff]
    %v252 = vld [vmem:[#allocation5 + $0x288] sm:$0xff]
    %v253 = vld [vmem:[#allocation5 + $0x290] sm:$0xff]
    %v254 = vld [vmem:[#allocation5 + $0x298] sm:$0xff]
    %v255 = vld [vmem:[#allocation5 + $0x2a0] sm:$0xff]
    %v256 = vld [vmem:[#allocation5 + $0x2a8] sm:$0xff]
    %v257 = vld [vmem:[#allocation5 + $0x2b0] sm:$0xff]
    %v258 = vld [vmem:[#allocation5 + $0x2b8] sm:$0xff]
    %v259 = vld [vmem:[#allocation5 + $0x2c0] sm:$0xff]
    %v260 = vld [vmem:[#allocation5 + $0x2c8] sm:$0xff]
    %v261 = vld [vmem:[#allocation5 + $0x2d0] sm:$0xff]
    %v262 = vld [vmem:[#allocation5 + $0x2d8] sm:$0xff]
    %v263 = vld [vmem:[#allocation5 + $0x2e0] sm:$0xff]
    %v264 = vld [vmem:[#allocation5 + $0x2e8] sm:$0xff]
    %v265 = vld [vmem:[#allocation5 + $0x2f0] sm:$0xff]
    %v266 = vld [vmem:[#allocation5 + $0x2f8] sm:$0xff]
    %v267 = vld [vmem:[#allocation5 + $0x300] sm:$0xff]
    %v268 = vld [vmem:[#allocation5 + $0x308] sm:$0xff]
    %v269 = vld [vmem:[#allocation5 + $0x310] sm:$0xff]
    %v270 = vld [vmem:[#allocation5 + $0x318] sm:$0xff]
    %v271 = vld [vmem:[#allocation5 + $0x320] sm:$0xff]
    %v272 = vld [vmem:[#allocation5 + $0x328] sm:$0xff]
    %v273 = vld [vmem:[#allocation5 + $0x330] sm:$0xff]
    %v274 = vld [vmem:[#allocation5 + $0x338] sm:$0xff]
    %v275 = vld [vmem:[#allocation5 + $0x340] sm:$0xff]
    %v276 = vld [vmem:[#allocation5 + $0x348] sm:$0xff]
    %v277 = vld [vmem:[#allocation5 + $0x350] sm:$0xff]
    %v278 = vld [vmem:[#allocation5 + $0x358] sm:$0xff]
    %v279 = vld [vmem:[#allocation5 + $0x360] sm:$0xff]
    %v280 = vld [vmem:[#allocation5 + $0x368] sm:$0xff]
    %v281 = vld [vmem:[#allocation5 + $0x370] sm:$0xff]
    %v282 = vld [vmem:[#allocation5 + $0x378] sm:$0xff]
    %v283 = vld [vmem:[#allocation5 + $0x380] sm:$0xff]
    %v284 = vld [vmem:[#allocation5 + $0x388] sm:$0xff]
    %v285 = vld [vmem:[#allocation5 + $0x390] sm:$0xff]
    %v286 = vld [vmem:[#allocation5 + $0x398] sm:$0xff]
    %v287 = vld [vmem:[#allocation5 + $0x3a0] sm:$0xff]
    %v288 = vld [vmem:[#allocation5 + $0x3a8] sm:$0xff]
    %v289 = vld [vmem:[#allocation5 + $0x3b0] sm:$0xff]
    %v290 = vld [vmem:[#allocation5 + $0x3b8] sm:$0xff]
    %v291 = vld [vmem:[#allocation5 + $0x3c0] sm:$0xff]
    %v292 = vld [vmem:[#allocation5 + $0x3c8] sm:$0xff]
    %v293 = vld [vmem:[#allocation5 + $0x3d0] sm:$0xff]
    %v294 = vld [vmem:[#allocation5 + $0x3d8] sm:$0xff]
    %v295 = vld [vmem:[#allocation5 + $0x3e0] sm:$0xff]
    %v296 = vld [vmem:[#allocation5 + $0x3e8] sm:$0xff]
    %v297 = vld [vmem:[#allocation5 + $0x3f0] sm:$0xff]
    %v298 = vld [vmem:[#allocation5 + $0x3f8] sm:$0xff]
    %v299 = vld [vmem:[#allocation7] sm:$0xf]
    %v301 = vperm.slane %v299, 0
    %v302 = vperm.slane %v299, 1
    %v303 = vperm.slane %v299, 2
    %v304 = vperm.slane %v299, 3
    %v437 = vunpack.c.l.b16 %v171
    %v438 = vunpack.c.h.b16 %v171
    %v439 = vunpack.c.l.b16 %v172
    %v440 = vunpack.c.h.b16 %v172
    %v441 = vunpack.c.l.b16 %v173
    %v442 = vunpack.c.h.b16 %v173
    %v443 = vunpack.c.l.b16 %v174
    %v444 = vunpack.c.h.b16 %v174
    %v445 = vunpack.c.l.b16 %v175
    %v446 = vunpack.c.h.b16 %v175
    %v447 = vunpack.c.l.b16 %v176
    %v448 = vunpack.c.h.b16 %v176
    %v449 = vunpack.c.l.b16 %v177
    %v450 = vunpack.c.h.b16 %v177
    %v451 = vunpack.c.l.b16 %v178
    %v452 = vunpack.c.h.b16 %v178
    %v453 = vunpack.c.l.b16 %v179
    %v454 = vunpack.c.h.b16 %v179
    %v455 = vunpack.c.l.b16 %v180
    %v456 = vunpack.c.h.b16 %v180
    %v457 = vunpack.c.l.b16 %v181
    %v458 = vunpack.c.h.b16 %v181
    %v459 = vunpack.c.l.b16 %v182
    %v460 = vunpack.c.h.b16 %v182
    %v461 = vunpack.c.l.b16 %v183
    %v462 = vunpack.c.h.b16 %v183
    %v463 = vunpack.c.l.b16 %v184
    %v464 = vunpack.c.h.b16 %v184
    %v465 = vunpack.c.l.b16 %v185
    %v466 = vunpack.c.h.b16 %v185
    %v467 = vunpack.c.l.b16 %v186
    %v468 = vunpack.c.h.b16 %v186
    %v469 = vunpack.c.l.b16 %v187
    %v470 = vunpack.c.h.b16 %v187
    %v471 = vunpack.c.l.b16 %v188
    %v472 = vunpack.c.h.b16 %v188
    %v473 = vunpack.c.l.b16 %v189
    %v474 = vunpack.c.h.b16 %v189
    %v475 = vunpack.c.l.b16 %v190
    %v476 = vunpack.c.h.b16 %v190
    %v477 = vunpack.c.l.b16 %v191
    %v478 = vunpack.c.h.b16 %v191
    %v479 = vunpack.c.l.b16 %v192
    %v480 = vunpack.c.h.b16 %v192
    %v481 = vunpack.c.l.b16 %v193
    %v482 = vunpack.c.h.b16 %v193
    %v483 = vunpack.c.l.b16 %v194
    %v484 = vunpack.c.h.b16 %v194
    %v485 = vunpack.c.l.b16 %v195
    %v486 = vunpack.c.h.b16 %v195
    %v487 = vunpack.c.l.b16 %v196
    %v488 = vunpack.c.h.b16 %v196
    %v489 = vunpack.c.l.b16 %v197
    %v490 = vunpack.c.h.b16 %v197
    %v491 = vunpack.c.l.b16 %v198
    %v492 = vunpack.c.h.b16 %v198
    %v493 = vunpack.c.l.b16 %v199
    %v494 = vunpack.c.h.b16 %v199
    %v495 = vunpack.c.l.b16 %v200
    %v496 = vunpack.c.h.b16 %v200
    %v497 = vunpack.c.l.b16 %v201
    %v498 = vunpack.c.h.b16 %v201
    %v499 = vunpack.c.l.b16 %v202
    %v500 = vunpack.c.h.b16 %v202
    %v501 = vunpack.c.l.b16 %v203
    %v502 = vunpack.c.h.b16 %v203
    %v503 = vunpack.c.l.b16 %v204
    %v504 = vunpack.c.h.b16 %v204
    %v505 = vunpack.c.l.b16 %v205
    %v506 = vunpack.c.h.b16 %v205
    %v507 = vunpack.c.l.b16 %v206
    %v508 = vunpack.c.h.b16 %v206
    %v509 = vunpack.c.l.b16 %v207
    %v510 = vunpack.c.h.b16 %v207
    %v511 = vunpack.c.l.b16 %v208
    %v512 = vunpack.c.h.b16 %v208
    %v513 = vunpack.c.l.b16 %v209
    %v514 = vunpack.c.h.b16 %v209
    %v515 = vunpack.c.l.b16 %v210
    %v516 = vunpack.c.h.b16 %v210
    %v517 = vunpack.c.l.b16 %v211
    %v518 = vunpack.c.h.b16 %v211
    %v519 = vunpack.c.l.b16 %v212
    %v520 = vunpack.c.h.b16 %v212
    %v521 = vunpack.c.l.b16 %v213
    %v522 = vunpack.c.h.b16 %v213
    %v523 = vunpack.c.l.b16 %v214
    %v524 = vunpack.c.h.b16 %v214
    %v525 = vunpack.c.l.b16 %v215
    %v526 = vunpack.c.h.b16 %v215
    %v527 = vunpack.c.l.b16 %v216
    %v528 = vunpack.c.h.b16 %v216
    %v529 = vunpack.c.l.b16 %v217
    %v530 = vunpack.c.h.b16 %v217
    %v531 = vunpack.c.l.b16 %v218
    %v532 = vunpack.c.h.b16 %v218
    %v533 = vunpack.c.l.b16 %v219
    %v534 = vunpack.c.h.b16 %v219
    %v535 = vunpack.c.l.b16 %v220
    %v536 = vunpack.c.h.b16 %v220
    %v537 = vunpack.c.l.b16 %v221
    %v538 = vunpack.c.h.b16 %v221
    %v539 = vunpack.c.l.b16 %v222
    %v540 = vunpack.c.h.b16 %v222
    %v541 = vunpack.c.l.b16 %v223
    %v542 = vunpack.c.h.b16 %v223
    %v543 = vunpack.c.l.b16 %v224
    %v544 = vunpack.c.h.b16 %v224
    %v545 = vunpack.c.l.b16 %v225
    %v546 = vunpack.c.h.b16 %v225
    %v547 = vunpack.c.l.b16 %v226
    %v548 = vunpack.c.h.b16 %v226
    %v549 = vunpack.c.l.b16 %v227
    %v550 = vunpack.c.h.b16 %v227
    %v551 = vunpack.c.l.b16 %v228
    %v552 = vunpack.c.h.b16 %v228
    %v553 = vunpack.c.l.b16 %v229
    %v554 = vunpack.c.h.b16 %v229
    %v555 = vunpack.c.l.b16 %v230
    %v556 = vunpack.c.h.b16 %v230
    %v557 = vunpack.c.l.b16 %v231
    %v558 = vunpack.c.h.b16 %v231
    %v559 = vunpack.c.l.b16 %v232
    %v560 = vunpack.c.h.b16 %v232
    %v561 = vunpack.c.l.b16 %v233
    %v562 = vunpack.c.h.b16 %v233
    %v563 = vunpack.c.l.b16 %v234
    %v564 = vunpack.c.h.b16 %v234
    %v565 = vunpack.c.l.b16 %v235
    %v566 = vunpack.c.h.b16 %v235
    %v567 = vunpack.c.l.b16 %v236
    %v568 = vunpack.c.h.b16 %v236
    %v569 = vunpack.c.l.b16 %v237
    %v570 = vunpack.c.h.b16 %v237
    %v571 = vunpack.c.l.b16 %v238
    %v572 = vunpack.c.h.b16 %v238
    %v573 = vunpack.c.l.b16 %v239
    %v574 = vunpack.c.h.b16 %v239
    %v575 = vunpack.c.l.b16 %v240
    %v576 = vunpack.c.h.b16 %v240
    %v577 = vunpack.c.l.b16 %v241
    %v578 = vunpack.c.h.b16 %v241
    %v579 = vunpack.c.l.b16 %v242
    %v580 = vunpack.c.h.b16 %v242
    %v581 = vunpack.c.l.b16 %v243
    %v582 = vunpack.c.h.b16 %v243
    %v583 = vunpack.c.l.b16 %v244
    %v584 = vunpack.c.h.b16 %v244
    %v585 = vunpack.c.l.b16 %v245
    %v586 = vunpack.c.h.b16 %v245
    %v587 = vunpack.c.l.b16 %v246
    %v588 = vunpack.c.h.b16 %v246
    %v589 = vunpack.c.l.b16 %v247
    %v590 = vunpack.c.h.b16 %v247
    %v591 = vunpack.c.l.b16 %v248
    %v592 = vunpack.c.h.b16 %v248
    %v593 = vunpack.c.l.b16 %v249
    %v594 = vunpack.c.h.b16 %v249
    %v595 = vunpack.c.l.b16 %v250
    %v596 = vunpack.c.h.b16 %v250
    %v597 = vunpack.c.l.b16 %v251
    %v598 = vunpack.c.h.b16 %v251
    %v599 = vunpack.c.l.b16 %v252
    %v600 = vunpack.c.h.b16 %v252
    %v601 = vunpack.c.l.b16 %v253
    %v602 = vunpack.c.h.b16 %v253
    %v603 = vunpack.c.l.b16 %v254
    %v604 = vunpack.c.h.b16 %v254
    %v605 = vunpack.c.l.b16 %v255
    %v606 = vunpack.c.h.b16 %v255
    %v607 = vunpack.c.l.b16 %v256
    %v608 = vunpack.c.h.b16 %v256
    %v609 = vunpack.c.l.b16 %v257
    %v610 = vunpack.c.h.b16 %v257
    %v611 = vunpack.c.l.b16 %v258
    %v612 = vunpack.c.h.b16 %v258
    %v613 = vunpack.c.l.b16 %v259
    %v614 = vunpack.c.h.b16 %v259
    %v615 = vunpack.c.l.b16 %v260
    %v616 = vunpack.c.h.b16 %v260
    %v617 = vunpack.c.l.b16 %v261
    %v618 = vunpack.c.h.b16 %v261
    %v619 = vunpack.c.l.b16 %v262
    %v620 = vunpack.c.h.b16 %v262
    %v621 = vunpack.c.l.b16 %v263
    %v622 = vunpack.c.h.b16 %v263
    %v623 = vunpack.c.l.b16 %v264
    %v624 = vunpack.c.h.b16 %v264
    %v625 = vunpack.c.l.b16 %v265
    %v626 = vunpack.c.h.b16 %v265
    %v627 = vunpack.c.l.b16 %v266
    %v628 = vunpack.c.h.b16 %v266
    %v629 = vunpack.c.l.b16 %v267
    %v630 = vunpack.c.h.b16 %v267
    %v631 = vunpack.c.l.b16 %v268
    %v632 = vunpack.c.h.b16 %v268
    %v633 = vunpack.c.l.b16 %v269
    %v634 = vunpack.c.h.b16 %v269
    %v635 = vunpack.c.l.b16 %v270
    %v636 = vunpack.c.h.b16 %v270
    %v637 = vunpack.c.l.b16 %v271
    %v638 = vunpack.c.h.b16 %v271
    %v639 = vunpack.c.l.b16 %v272
    %v640 = vunpack.c.h.b16 %v272
    %v641 = vunpack.c.l.b16 %v273
    %v642 = vunpack.c.h.b16 %v273
    %v643 = vunpack.c.l.b16 %v274
    %v644 = vunpack.c.h.b16 %v274
    %v645 = vunpack.c.l.b16 %v275
    %v646 = vunpack.c.h.b16 %v275
    %v647 = vunpack.c.l.b16 %v276
    %v648 = vunpack.c.h.b16 %v276
    %v649 = vunpack.c.l.b16 %v277
    %v650 = vunpack.c.h.b16 %v277
    %v651 = vunpack.c.l.b16 %v278
    %v652 = vunpack.c.h.b16 %v278
    %v653 = vunpack.c.l.b16 %v279
    %v654 = vunpack.c.h.b16 %v279
    %v655 = vunpack.c.l.b16 %v280
    %v656 = vunpack.c.h.b16 %v280
    %v657 = vunpack.c.l.b16 %v281
    %v658 = vunpack.c.h.b16 %v281
    %v659 = vunpack.c.l.b16 %v282
    %v660 = vunpack.c.h.b16 %v282
    %v661 = vunpack.c.l.b16 %v283
    %v662 = vunpack.c.h.b16 %v283
    %v663 = vunpack.c.l.b16 %v284
    %v664 = vunpack.c.h.b16 %v284
    %v665 = vunpack.c.l.b16 %v285
    %v666 = vunpack.c.h.b16 %v285
    %v667 = vunpack.c.l.b16 %v286
    %v668 = vunpack.c.h.b16 %v286
    %v669 = vunpack.c.l.b16 %v287
    %v670 = vunpack.c.h.b16 %v287
    %v671 = vunpack.c.l.b16 %v288
    %v672 = vunpack.c.h.b16 %v288
    %v673 = vunpack.c.l.b16 %v289
    %v674 = vunpack.c.h.b16 %v289
    %v675 = vunpack.c.l.b16 %v290
    %v676 = vunpack.c.h.b16 %v290
    %v677 = vunpack.c.l.b16 %v291
    %v678 = vunpack.c.h.b16 %v291
    %v679 = vunpack.c.l.b16 %v292
    %v680 = vunpack.c.h.b16 %v292
    %v681 = vunpack.c.l.b16 %v293
    %v682 = vunpack.c.h.b16 %v293
    %v683 = vunpack.c.l.b16 %v294
    %v684 = vunpack.c.h.b16 %v294
    %v685 = vunpack.c.l.b16 %v295
    %v686 = vunpack.c.h.b16 %v295
    %v687 = vunpack.c.l.b16 %v296
    %v688 = vunpack.c.h.b16 %v296
    %v689 = vunpack.c.l.b16 %v297
    %v690 = vunpack.c.h.b16 %v297
    %v691 = vunpack.c.l.b16 %v298
    %v692 = vunpack.c.h.b16 %v298
    %v693 = vpack.c.b16 %v441, %v437
    %v694 = vpack.c.b16 %v442, %v438
    %v695 = vpack.c.b16 %v443, %v439
    %v696 = vpack.c.b16 %v444, %v440
    %v697 = vpack.c.b16 %v449, %v445
    %v698 = vpack.c.b16 %v450, %v446
    %v699 = vpack.c.b16 %v451, %v447
    %v700 = vpack.c.b16 %v452, %v448
    %v701 = vpack.c.b16 %v457, %v453
    %v702 = vpack.c.b16 %v458, %v454
    %v703 = vpack.c.b16 %v459, %v455
    %v704 = vpack.c.b16 %v460, %v456
    %v705 = vpack.c.b16 %v465, %v461
    %v706 = vpack.c.b16 %v466, %v462
    %v707 = vpack.c.b16 %v467, %v463
    %v708 = vpack.c.b16 %v468, %v464
    %v709 = vpack.c.b16 %v473, %v469
    %v710 = vpack.c.b16 %v474, %v470
    %v711 = vpack.c.b16 %v475, %v471
    %v712 = vpack.c.b16 %v476, %v472
    %v713 = vpack.c.b16 %v481, %v477
    %v714 = vpack.c.b16 %v482, %v478
    %v715 = vpack.c.b16 %v483, %v479
    %v716 = vpack.c.b16 %v484, %v480
    %v717 = vpack.c.b16 %v489, %v485
    %v718 = vpack.c.b16 %v490, %v486
    %v719 = vpack.c.b16 %v491, %v487
    %v720 = vpack.c.b16 %v492, %v488
    %v721 = vpack.c.b16 %v497, %v493
    %v722 = vpack.c.b16 %v498, %v494
    %v723 = vpack.c.b16 %v499, %v495
    %v724 = vpack.c.b16 %v500, %v496
    %v725 = vpack.c.b16 %v505, %v501
    %v726 = vpack.c.b16 %v506, %v502
    %v727 = vpack.c.b16 %v507, %v503
    %v728 = vpack.c.b16 %v508, %v504
    %v729 = vpack.c.b16 %v513, %v509
    %v730 = vpack.c.b16 %v514, %v510
    %v731 = vpack.c.b16 %v515, %v511
    %v732 = vpack.c.b16 %v516, %v512
    %v733 = vpack.c.b16 %v521, %v517
    %v734 = vpack.c.b16 %v522, %v518
    %v735 = vpack.c.b16 %v523, %v519
    %v736 = vpack.c.b16 %v524, %v520
    %v737 = vpack.c.b16 %v529, %v525
    %v738 = vpack.c.b16 %v530, %v526
    %v739 = vpack.c.b16 %v531, %v527
    %v740 = vpack.c.b16 %v532, %v528
    %v741 = vpack.c.b16 %v537, %v533
    %v742 = vpack.c.b16 %v538, %v534
    %v743 = vpack.c.b16 %v539, %v535
    %v744 = vpack.c.b16 %v540, %v536
    %v745 = vpack.c.b16 %v545, %v541
    %v746 = vpack.c.b16 %v546, %v542
    %v747 = vpack.c.b16 %v547, %v543
    %v748 = vpack.c.b16 %v548, %v544
    %v749 = vpack.c.b16 %v553, %v549
    %v750 = vpack.c.b16 %v554, %v550
    %v751 = vpack.c.b16 %v555, %v551
    %v752 = vpack.c.b16 %v556, %v552
    %v753 = vpack.c.b16 %v561, %v557
    %v754 = vpack.c.b16 %v562, %v558
    %v755 = vpack.c.b16 %v563, %v559
    %v756 = vpack.c.b16 %v564, %v560
    %v757 = vpack.c.b16 %v569, %v565
    %v758 = vpack.c.b16 %v570, %v566
    %v759 = vpack.c.b16 %v571, %v567
    %v760 = vpack.c.b16 %v572, %v568
    %v761 = vpack.c.b16 %v577, %v573
    %v762 = vpack.c.b16 %v578, %v574
    %v763 = vpack.c.b16 %v579, %v575
    %v764 = vpack.c.b16 %v580, %v576
    %v765 = vpack.c.b16 %v585, %v581
    %v766 = vpack.c.b16 %v586, %v582
    %v767 = vpack.c.b16 %v587, %v583
    %v768 = vpack.c.b16 %v588, %v584
    %v769 = vpack.c.b16 %v593, %v589
    %v770 = vpack.c.b16 %v594, %v590
    %v771 = vpack.c.b16 %v595, %v591
    %v772 = vpack.c.b16 %v596, %v592
    %v773 = vpack.c.b16 %v601, %v597
    %v774 = vpack.c.b16 %v602, %v598
    %v775 = vpack.c.b16 %v603, %v599
    %v776 = vpack.c.b16 %v604, %v600
    %v777 = vpack.c.b16 %v609, %v605
    %v778 = vpack.c.b16 %v610, %v606
    %v779 = vpack.c.b16 %v611, %v607
    %v780 = vpack.c.b16 %v612, %v608
    %v781 = vpack.c.b16 %v617, %v613
    %v782 = vpack.c.b16 %v618, %v614
    %v783 = vpack.c.b16 %v619, %v615
    %v784 = vpack.c.b16 %v620, %v616
    %v785 = vpack.c.b16 %v625, %v621
    %v786 = vpack.c.b16 %v626, %v622
    %v787 = vpack.c.b16 %v627, %v623
    %v788 = vpack.c.b16 %v628, %v624
    %v789 = vpack.c.b16 %v633, %v629
    %v790 = vpack.c.b16 %v634, %v630
    %v791 = vpack.c.b16 %v635, %v631
    %v792 = vpack.c.b16 %v636, %v632
    %v793 = vpack.c.b16 %v641, %v637
    %v794 = vpack.c.b16 %v642, %v638
    %v795 = vpack.c.b16 %v643, %v639
    %v796 = vpack.c.b16 %v644, %v640
    %v797 = vpack.c.b16 %v649, %v645
    %v798 = vpack.c.b16 %v650, %v646
    %v799 = vpack.c.b16 %v651, %v647
    %v800 = vpack.c.b16 %v652, %v648
    %v801 = vpack.c.b16 %v657, %v653
    %v802 = vpack.c.b16 %v658, %v654
    %v803 = vpack.c.b16 %v659, %v655
    %v804 = vpack.c.b16 %v660, %v656
    %v805 = vpack.c.b16 %v665, %v661
    %v806 = vpack.c.b16 %v666, %v662
    %v807 = vpack.c.b16 %v667, %v663
    %v808 = vpack.c.b16 %v668, %v664
    %v809 = vpack.c.b16 %v673, %v669
    %v810 = vpack.c.b16 %v674, %v670
    %v811 = vpack.c.b16 %v675, %v671
    %v812 = vpack.c.b16 %v676, %v672
    %v813 = vpack.c.b16 %v681, %v677
    %v814 = vpack.c.b16 %v682, %v678
    %v815 = vpack.c.b16 %v683, %v679
    %v816 = vpack.c.b16 %v684, %v680
    %v817 = vpack.c.b16 %v689, %v685
    %v818 = vpack.c.b16 %v690, %v686
    %v819 = vpack.c.b16 %v691, %v687
    %v820 = vpack.c.b16 %v692, %v688
    %949 = vmatpush.bf16.msra.mxu0 %v721
    %950 = vmatpush.bf16.msra.mxu0 %v717
    %951 = vmatpush.bf16.msra.mxu0 %v713
    %952 = vmatpush.bf16.msra.mxu0 %v709
    %953 = vmatpush.bf16.msra.mxu0 %v705
    %954 = vmatpush.bf16.msra.mxu0 %v701
    %955 = vmatpush.bf16.msra.mxu0 %v697
    %956 = vmatpush.bf16.msra.mxu0 %v693
    %957 = vmatmul.bf16.gmra.mxu0 %v167
    %v958 = vpop.f32.mrf.mxu0
    %v959 = vadd.f32 %v301, %v958
    %v960 = vpop.f32.mrf.mxu0
    %961 = vdwg.mxu0
    %962 = vmatpush.bf16.msra.mxu0 %v753
    %963 = vmatpush.bf16.msra.mxu0 %v749
    %964 = vmatpush.bf16.msra.mxu0 %v745
    %965 = vmatpush.bf16.msra.mxu0 %v741
    %966 = vmatpush.bf16.msra.mxu0 %v737
    %967 = vmatpush.bf16.msra.mxu0 %v733
    %968 = vmatpush.bf16.msra.mxu0 %v729
    %969 = vmatpush.bf16.msra.mxu0 %v725
    %970 = vmatmul.bf16.gmra.mxu0 %v168
    %v971 = vpop.f32.mrf.mxu0
    %v972 = vadd.f32 %v959, %v971
    %v973 = vpop.f32.mrf.mxu0
    %974 = vdwg.mxu0
    %975 = vmatpush.bf16.msra.mxu0 %v785
    %976 = vmatpush.bf16.msra.mxu0 %v781
    %977 = vmatpush.bf16.msra.mxu0 %v777
    %978 = vmatpush.bf16.msra.mxu0 %v773
    %979 = vmatpush.bf16.msra.mxu0 %v769
    %980 = vmatpush.bf16.msra.mxu0 %v765
    %981 = vmatpush.bf16.msra.mxu0 %v761
    %982 = vmatpush.bf16.msra.mxu0 %v757
    %983 = vmatmul.bf16.gmra.mxu0 %v169
    %v984 = vpop.f32.mrf.mxu0
    %v985 = vadd.f32 %v972, %v984
    %v986 = vpop.f32.mrf.mxu0
    %987 = vdwg.mxu0
    %988 = vmatpush.bf16.msra.mxu0 %v817
    %989 = vmatpush.bf16.msra.mxu0 %v813
    %990 = vmatpush.bf16.msra.mxu0 %v809
    %991 = vmatpush.bf16.msra.mxu0 %v805
    %992 = vmatpush.bf16.msra.mxu0 %v801
    %993 = vmatpush.bf16.msra.mxu0 %v797
    %994 = vmatpush.bf16.msra.mxu0 %v793
    %995 = vmatpush.bf16.msra.mxu0 %v789
    %996 = vmatmul.bf16.gmra.mxu0 %v170
    %v997 = vpop.f32.mrf.mxu0
    %v998 = vadd.f32 %v985, %v997
    %v999 = vpop.f32.mrf.mxu0
    %1000 = vdwg.mxu0
    %1001 = vmatpush.bf16.msra.mxu0 %v722
    %1002 = vmatpush.bf16.msra.mxu0 %v718
    %1003 = vmatpush.bf16.msra.mxu0 %v714
    %1004 = vmatpush.bf16.msra.mxu0 %v710
    %1005 = vmatpush.bf16.msra.mxu0 %v706
    %1006 = vmatpush.bf16.msra.mxu0 %v702
    %1007 = vmatpush.bf16.msra.mxu0 %v698
    %1008 = vmatpush.bf16.msra.mxu0 %v694
    %1009 = vmatmul.bf16.gmra.mxu0 %v167
    %v1010 = vpop.f32.mrf.mxu0
    %v1011 = vadd.f32 %v302, %v1010
    %v1012 = vpop.f32.mrf.mxu0
    %1013 = vdwg.mxu0
    %1014 = vmatpush.bf16.msra.mxu0 %v754
    %1015 = vmatpush.bf16.msra.mxu0 %v750
    %1016 = vmatpush.bf16.msra.mxu0 %v746
    %1017 = vmatpush.bf16.msra.mxu0 %v742
    %1018 = vmatpush.bf16.msra.mxu0 %v738
    %1019 = vmatpush.bf16.msra.mxu0 %v734
    %1020 = vmatpush.bf16.msra.mxu0 %v730
    %1021 = vmatpush.bf16.msra.mxu0 %v726
    %1022 = vmatmul.bf16.gmra.mxu0 %v168
    %v1023 = vpop.f32.mrf.mxu0
    %v1024 = vadd.f32 %v1011, %v1023
    %v1025 = vpop.f32.mrf.mxu0
    %1026 = vdwg.mxu0
    %1027 = vmatpush.bf16.msra.mxu0 %v786
    %1028 = vmatpush.bf16.msra.mxu0 %v782
    %1029 = vmatpush.bf16.msra.mxu0 %v778
    %1030 = vmatpush.bf16.msra.mxu0 %v774
    %1031 = vmatpush.bf16.msra.mxu0 %v770
    %1032 = vmatpush.bf16.msra.mxu0 %v766
    %1033 = vmatpush.bf16.msra.mxu0 %v762
    %1034 = vmatpush.bf16.msra.mxu0 %v758
    %1035 = vmatmul.bf16.gmra.mxu0 %v169
    %v1036 = vpop.f32.mrf.mxu0
    %v1037 = vadd.f32 %v1024, %v1036
    %v1038 = vpop.f32.mrf.mxu0
    %1039 = vdwg.mxu0
    %1040 = vmatpush.bf16.msra.mxu0 %v818
    %1041 = vmatpush.bf16.msra.mxu0 %v814
    %1042 = vmatpush.bf16.msra.mxu0 %v810
    %1043 = vmatpush.bf16.msra.mxu0 %v806
    %1044 = vmatpush.bf16.msra.mxu0 %v802
    %1045 = vmatpush.bf16.msra.mxu0 %v798
    %1046 = vmatpush.bf16.msra.mxu0 %v794
    %1047 = vmatpush.bf16.msra.mxu0 %v790
    %1048 = vmatmul.bf16.gmra.mxu0 %v170
    %v1049 = vpop.f32.mrf.mxu0
    %v1050 = vadd.f32 %v1037, %v1049
    %v1051 = vpop.f32.mrf.mxu0
    %1052 = vdwg.mxu0
    %1053 = vmatpush.bf16.msra.mxu0 %v723
    %1054 = vmatpush.bf16.msra.mxu0 %v719
    %1055 = vmatpush.bf16.msra.mxu0 %v715
    %1056 = vmatpush.bf16.msra.mxu0 %v711
    %1057 = vmatpush.bf16.msra.mxu0 %v707
    %1058 = vmatpush.bf16.msra.mxu0 %v703
    %1059 = vmatpush.bf16.msra.mxu0 %v699
    %1060 = vmatpush.bf16.msra.mxu0 %v695
    %1061 = vmatmul.bf16.gmra.mxu0 %v167
    %v1062 = vpop.f32.mrf.mxu0
    %v1063 = vadd.f32 %v303, %v1062
    %v1064 = vpop.f32.mrf.mxu0
    %1065 = vdwg.mxu0
    %1066 = vmatpush.bf16.msra.mxu0 %v755
    %1067 = vmatpush.bf16.msra.mxu0 %v751
    %1068 = vmatpush.bf16.msra.mxu0 %v747
    %1069 = vmatpush.bf16.msra.mxu0 %v743
    %1070 = vmatpush.bf16.msra.mxu0 %v739
    %1071 = vmatpush.bf16.msra.mxu0 %v735
    %1072 = vmatpush.bf16.msra.mxu0 %v731
    %1073 = vmatpush.bf16.msra.mxu0 %v727
    %1074 = vmatmul.bf16.gmra.mxu0 %v168
    %v1075 = vpop.f32.mrf.mxu0
    %v1076 = vadd.f32 %v1063, %v1075
    %v1077 = vpop.f32.mrf.mxu0
    %1078 = vdwg.mxu0
    %1079 = vmatpush.bf16.msra.mxu0 %v787
    %1080 = vmatpush.bf16.msra.mxu0 %v783
    %1081 = vmatpush.bf16.msra.mxu0 %v779
    %1082 = vmatpush.bf16.msra.mxu0 %v775
    %1083 = vmatpush.bf16.msra.mxu0 %v771
    %1084 = vmatpush.bf16.msra.mxu0 %v767
    %1085 = vmatpush.bf16.msra.mxu0 %v763
    %1086 = vmatpush.bf16.msra.mxu0 %v759
    %1087 = vmatmul.bf16.gmra.mxu0 %v169
    %v1088 = vpop.f32.mrf.mxu0
    %v1089 = vadd.f32 %v1076, %v1088
    %v1090 = vpop.f32.mrf.mxu0
    %1091 = vdwg.mxu0
    %1092 = vmatpush.bf16.msra.mxu0 %v819
    %1093 = vmatpush.bf16.msra.mxu0 %v815
    %1094 = vmatpush.bf16.msra.mxu0 %v811
    %1095 = vmatpush.bf16.msra.mxu0 %v807
    %1096 = vmatpush.bf16.msra.mxu0 %v803
    %1097 = vmatpush.bf16.msra.mxu0 %v799
    %1098 = vmatpush.bf16.msra.mxu0 %v795
    %1099 = vmatpush.bf16.msra.mxu0 %v791
    %1100 = vmatmul.bf16.gmra.mxu0 %v170
    %v1101 = vpop.f32.mrf.mxu0
    %v1102 = vadd.f32 %v1089, %v1101
    %v1103 = vpop.f32.mrf.mxu0
    %1104 = vdwg.mxu0
    %1105 = vmatpush.bf16.msra.mxu0 %v724
    %1106 = vmatpush.bf16.msra.mxu0 %v720
    %1107 = vmatpush.bf16.msra.mxu0 %v716
    %1108 = vmatpush.bf16.msra.mxu0 %v712
    %1109 = vmatpush.bf16.msra.mxu0 %v708
    %1110 = vmatpush.bf16.msra.mxu0 %v704
    %1111 = vmatpush.bf16.msra.mxu0 %v700
    %1112 = vmatpush.bf16.msra.mxu0 %v696
    %1113 = vmatmul.bf16.gmra.mxu0 %v167
    %v1114 = vpop.f32.mrf.mxu0
    %v1115 = vadd.f32 %v304, %v1114
    %v1116 = vpop.f32.mrf.mxu0
    %1117 = vdwg.mxu0
    %1118 = vmatpush.bf16.msra.mxu0 %v756
    %1119 = vmatpush.bf16.msra.mxu0 %v752
    %1120 = vmatpush.bf16.msra.mxu0 %v748
    %1121 = vmatpush.bf16.msra.mxu0 %v744
    %1122 = vmatpush.bf16.msra.mxu0 %v740
    %1123 = vmatpush.bf16.msra.mxu0 %v736
    %1124 = vmatpush.bf16.msra.mxu0 %v732
    %1125 = vmatpush.bf16.msra.mxu0 %v728
    %1126 = vmatmul.bf16.gmra.mxu0 %v168
    %v1127 = vpop.f32.mrf.mxu0
    %v1128 = vadd.f32 %v1115, %v1127
    %v1129 = vpop.f32.mrf.mxu0
    %1130 = vdwg.mxu0
    %1131 = vmatpush.bf16.msra.mxu0 %v788
    %1132 = vmatpush.bf16.msra.mxu0 %v784
    %1133 = vmatpush.bf16.msra.mxu0 %v780
    %1134 = vmatpush.bf16.msra.mxu0 %v776
    %1135 = vmatpush.bf16.msra.mxu0 %v772
    %1136 = vmatpush.bf16.msra.mxu0 %v768
    %1137 = vmatpush.bf16.msra.mxu0 %v764
    %1138 = vmatpush.bf16.msra.mxu0 %v760
    %1139 = vmatmul.bf16.gmra.mxu0 %v169
    %v1140 = vpop.f32.mrf.mxu0
    %v1141 = vadd.f32 %v1128, %v1140
    %v1142 = vpop.f32.mrf.mxu0
    %1143 = vdwg.mxu0
    %1144 = vmatpush.bf16.msra.mxu0 %v820
    %1145 = vmatpush.bf16.msra.mxu0 %v816
    %1146 = vmatpush.bf16.msra.mxu0 %v812
    %1147 = vmatpush.bf16.msra.mxu0 %v808
    %1148 = vmatpush.bf16.msra.mxu0 %v804
    %1149 = vmatpush.bf16.msra.mxu0 %v800
    %1150 = vmatpush.bf16.msra.mxu0 %v796
    %1151 = vmatpush.bf16.msra.mxu0 %v792
    %1152 = vmatmul.bf16.gmra.mxu0 %v170
    %v1153 = vpop.f32.mrf.mxu0
    %v1154 = vadd.f32 %v1141, %v1153
    %v1155 = vpop.f32.mrf.mxu0
    %1156 = vdwg.mxu0
    %v1157 = vmax.f32 %v998, 0.0
    %v1158 = vmax.f32 %v1050, 0.0
    %v1159 = vmax.f32 %v1102, 0.0
    %v1160 = vmax.f32 %v1154, 0.0
    %v1161 = vpack.c.bf16 %v1157, %v1157
    %v1162 = vpack.c.bf16 %v1158, %v1158
    %v1163 = vpack.c.bf16 %v1159, %v1159
    %v1164 = vpack.c.bf16 %v1160, %v1160
    %v1165 = vld [vmem:[#allocation8] sm:$0xff]
    %v1166 = vld [vmem:[#allocation8 + $0x8] sm:$0xff]
    %v1167 = vld [vmem:[#allocation8 + $0x10] sm:$0xff]
    %v1168 = vld [vmem:[#allocation8 + $0x18] sm:$0xff]
    %v1169 = vld [vmem:[#allocation8 + $0x20] sm:$0xff]
    %v1170 = vld [vmem:[#allocation8 + $0x28] sm:$0xff]
    %v1171 = vld [vmem:[#allocation8 + $0x30] sm:$0xff]
    %v1172 = vld [vmem:[#allocation8 + $0x38] sm:$0xff]
    %v1173 = vld [vmem:[#allocation8 + $0x40] sm:$0xff]
    %v1174 = vld [vmem:[#allocation8 + $0x48] sm:$0xff]
    %v1175 = vld [vmem:[#allocation8 + $0x50] sm:$0xff]
    %v1176 = vld [vmem:[#allocation8 + $0x58] sm:$0xff]
    %v1177 = vld [vmem:[#allocation8 + $0x60] sm:$0xff]
    %v1178 = vld [vmem:[#allocation8 + $0x68] sm:$0xff]
    %v1179 = vld [vmem:[#allocation8 + $0x70] sm:$0xff]
    %v1180 = vld [vmem:[#allocation8 + $0x78] sm:$0xff]
    %v1181 = vld [vmem:[#allocation8 + $0x80] sm:$0xff]
    %v1182 = vld [vmem:[#allocation8 + $0x88] sm:$0xff]
    %v1183 = vld [vmem:[#allocation8 + $0x90] sm:$0xff]
    %v1184 = vld [vmem:[#allocation8 + $0x98] sm:$0xff]
    %v1185 = vld [vmem:[#allocation8 + $0xa0] sm:$0xff]
    %v1186 = vld [vmem:[#allocation8 + $0xa8] sm:$0xff]
    %v1187 = vld [vmem:[#allocation8 + $0xb0] sm:$0xff]
    %v1188 = vld [vmem:[#allocation8 + $0xb8] sm:$0xff]
    %v1189 = vld [vmem:[#allocation8 + $0xc0] sm:$0xff]
    %v1190 = vld [vmem:[#allocation8 + $0xc8] sm:$0xff]
    %v1191 = vld [vmem:[#allocation8 + $0xd0] sm:$0xff]
    %v1192 = vld [vmem:[#allocation8 + $0xd8] sm:$0xff]
    %v1193 = vld [vmem:[#allocation8 + $0xe0] sm:$0xff]
    %v1194 = vld [vmem:[#allocation8 + $0xe8] sm:$0xff]
    %v1195 = vld [vmem:[#allocation8 + $0xf0] sm:$0xff]
    %v1196 = vld [vmem:[#allocation8 + $0xf8] sm:$0xff]
    %v1197 = vld [vmem:[#allocation8 + $0x100] sm:$0xff]
    %v1198 = vld [vmem:[#allocation8 + $0x108] sm:$0xff]
    %v1199 = vld [vmem:[#allocation8 + $0x110] sm:$0xff]
    %v1200 = vld [vmem:[#allocation8 + $0x118] sm:$0xff]
    %v1201 = vld [vmem:[#allocation8 + $0x120] sm:$0xff]
    %v1202 = vld [vmem:[#allocation8 + $0x128] sm:$0xff]
    %v1203 = vld [vmem:[#allocation8 + $0x130] sm:$0xff]
    %v1204 = vld [vmem:[#allocation8 + $0x138] sm:$0xff]
    %v1205 = vld [vmem:[#allocation8 + $0x140] sm:$0xff]
    %v1206 = vld [vmem:[#allocation8 + $0x148] sm:$0xff]
    %v1207 = vld [vmem:[#allocation8 + $0x150] sm:$0xff]
    %v1208 = vld [vmem:[#allocation8 + $0x158] sm:$0xff]
    %v1209 = vld [vmem:[#allocation8 + $0x160] sm:$0xff]
    %v1210 = vld [vmem:[#allocation8 + $0x168] sm:$0xff]
    %v1211 = vld [vmem:[#allocation8 + $0x170] sm:$0xff]
    %v1212 = vld [vmem:[#allocation8 + $0x178] sm:$0xff]
    %v1213 = vld [vmem:[#allocation8 + $0x180] sm:$0xff]
    %v1214 = vld [vmem:[#allocation8 + $0x188] sm:$0xff]
    %v1215 = vld [vmem:[#allocation8 + $0x190] sm:$0xff]
    %v1216 = vld [vmem:[#allocation8 + $0x198] sm:$0xff]
    %v1217 = vld [vmem:[#allocation8 + $0x1a0] sm:$0xff]
    %v1218 = vld [vmem:[#allocation8 + $0x1a8] sm:$0xff]
    %v1219 = vld [vmem:[#allocation8 + $0x1b0] sm:$0xff]
    %v1220 = vld [vmem:[#allocation8 + $0x1b8] sm:$0xff]
    %v1221 = vld [vmem:[#allocation8 + $0x1c0] sm:$0xff]
    %v1222 = vld [vmem:[#allocation8 + $0x1c8] sm:$0xff]
    %v1223 = vld [vmem:[#allocation8 + $0x1d0] sm:$0xff]
    %v1224 = vld [vmem:[#allocation8 + $0x1d8] sm:$0xff]
    %v1225 = vld [vmem:[#allocation8 + $0x1e0] sm:$0xff]
    %v1226 = vld [vmem:[#allocation8 + $0x1e8] sm:$0xff]
    %v1227 = vld [vmem:[#allocation8 + $0x1f0] sm:$0xff]
    %v1228 = vld [vmem:[#allocation8 + $0x1f8] sm:$0xff]
    %v1229 = vld [vmem:[#allocation8 + $0x200] sm:$0xff]
    %v1230 = vld [vmem:[#allocation8 + $0x208] sm:$0xff]
    %v1231 = vld [vmem:[#allocation8 + $0x210] sm:$0xff]
    %v1232 = vld [vmem:[#allocation8 + $0x218] sm:$0xff]
    %v1233 = vld [vmem:[#allocation8 + $0x220] sm:$0xff]
    %v1234 = vld [vmem:[#allocation8 + $0x228] sm:$0xff]
    %v1235 = vld [vmem:[#allocation8 + $0x230] sm:$0xff]
    %v1236 = vld [vmem:[#allocation8 + $0x238] sm:$0xff]
    %v1237 = vld [vmem:[#allocation8 + $0x240] sm:$0xff]
    %v1238 = vld [vmem:[#allocation8 + $0x248] sm:$0xff]
    %v1239 = vld [vmem:[#allocation8 + $0x250] sm:$0xff]
    %v1240 = vld [vmem:[#allocation8 + $0x258] sm:$0xff]
    %v1241 = vld [vmem:[#allocation8 + $0x260] sm:$0xff]
    %v1242 = vld [vmem:[#allocation8 + $0x268] sm:$0xff]
    %v1243 = vld [vmem:[#allocation8 + $0x270] sm:$0xff]
    %v1244 = vld [vmem:[#allocation8 + $0x278] sm:$0xff]
    %v1245 = vld [vmem:[#allocation8 + $0x280] sm:$0xff]
    %v1246 = vld [vmem:[#allocation8 + $0x288] sm:$0xff]
    %v1247 = vld [vmem:[#allocation8 + $0x290] sm:$0xff]
    %v1248 = vld [vmem:[#allocation8 + $0x298] sm:$0xff]
    %v1249 = vld [vmem:[#allocation8 + $0x2a0] sm:$0xff]
    %v1250 = vld [vmem:[#allocation8 + $0x2a8] sm:$0xff]
    %v1251 = vld [vmem:[#allocation8 + $0x2b0] sm:$0xff]
    %v1252 = vld [vmem:[#allocation8 + $0x2b8] sm:$0xff]
    %v1253 = vld [vmem:[#allocation8 + $0x2c0] sm:$0xff]
    %v1254 = vld [vmem:[#allocation8 + $0x2c8] sm:$0xff]
    %v1255 = vld [vmem:[#allocation8 + $0x2d0] sm:$0xff]
    %v1256 = vld [vmem:[#allocation8 + $0x2d8] sm:$0xff]
    %v1257 = vld [vmem:[#allocation8 + $0x2e0] sm:$0xff]
    %v1258 = vld [vmem:[#allocation8 + $0x2e8] sm:$0xff]
    %v1259 = vld [vmem:[#allocation8 + $0x2f0] sm:$0xff]
    %v1260 = vld [vmem:[#allocation8 + $0x2f8] sm:$0xff]
    %v1261 = vld [vmem:[#allocation8 + $0x300] sm:$0xff]
    %v1262 = vld [vmem:[#allocation8 + $0x308] sm:$0xff]
    %v1263 = vld [vmem:[#allocation8 + $0x310] sm:$0xff]
    %v1264 = vld [vmem:[#allocation8 + $0x318] sm:$0xff]
    %v1265 = vld [vmem:[#allocation8 + $0x320] sm:$0xff]
    %v1266 = vld [vmem:[#allocation8 + $0x328] sm:$0xff]
    %v1267 = vld [vmem:[#allocation8 + $0x330] sm:$0xff]
    %v1268 = vld [vmem:[#allocation8 + $0x338] sm:$0xff]
    %v1269 = vld [vmem:[#allocation8 + $0x340] sm:$0xff]
    %v1270 = vld [vmem:[#allocation8 + $0x348] sm:$0xff]
    %v1271 = vld [vmem:[#allocation8 + $0x350] sm:$0xff]
    %v1272 = vld [vmem:[#allocation8 + $0x358] sm:$0xff]
    %v1273 = vld [vmem:[#allocation8 + $0x360] sm:$0xff]
    %v1274 = vld [vmem:[#allocation8 + $0x368] sm:$0xff]
    %v1275 = vld [vmem:[#allocation8 + $0x370] sm:$0xff]
    %v1276 = vld [vmem:[#allocation8 + $0x378] sm:$0xff]
    %v1277 = vld [vmem:[#allocation8 + $0x380] sm:$0xff]
    %v1278 = vld [vmem:[#allocation8 + $0x388] sm:$0xff]
    %v1279 = vld [vmem:[#allocation8 + $0x390] sm:$0xff]
    %v1280 = vld [vmem:[#allocation8 + $0x398] sm:$0xff]
    %v1281 = vld [vmem:[#allocation8 + $0x3a0] sm:$0xff]
    %v1282 = vld [vmem:[#allocation8 + $0x3a8] sm:$0xff]
    %v1283 = vld [vmem:[#allocation8 + $0x3b0] sm:$0xff]
    %v1284 = vld [vmem:[#allocation8 + $0x3b8] sm:$0xff]
    %v1285 = vld [vmem:[#allocation8 + $0x3c0] sm:$0xff]
    %v1286 = vld [vmem:[#allocation8 + $0x3c8] sm:$0xff]
    %v1287 = vld [vmem:[#allocation8 + $0x3d0] sm:$0xff]
    %v1288 = vld [vmem:[#allocation8 + $0x3d8] sm:$0xff]
    %v1289 = vld [vmem:[#allocation8 + $0x3e0] sm:$0xff]
    %v1290 = vld [vmem:[#allocation8 + $0x3e8] sm:$0xff]
    %v1291 = vld [vmem:[#allocation8 + $0x3f0] sm:$0xff]
    %v1292 = vld [vmem:[#allocation8 + $0x3f8] sm:$0xff]
    %v1293 = vld [vmem:[#allocation10] sm:$0xf]
    %v1295 = vperm.slane %v1293, 0
    %v1296 = vperm.slane %v1293, 1
    %v1297 = vperm.slane %v1293, 2
    %v1298 = vperm.slane %v1293, 3
    %v1431 = vunpack.c.l.b16 %v1165
    %v1432 = vunpack.c.h.b16 %v1165
    %v1433 = vunpack.c.l.b16 %v1166
    %v1434 = vunpack.c.h.b16 %v1166
    %v1435 = vunpack.c.l.b16 %v1167
    %v1436 = vunpack.c.h.b16 %v1167
    %v1437 = vunpack.c.l.b16 %v1168
    %v1438 = vunpack.c.h.b16 %v1168
    %v1439 = vunpack.c.l.b16 %v1169
    %v1440 = vunpack.c.h.b16 %v1169
    %v1441 = vunpack.c.l.b16 %v1170
    %v1442 = vunpack.c.h.b16 %v1170
    %v1443 = vunpack.c.l.b16 %v1171
    %v1444 = vunpack.c.h.b16 %v1171
    %v1445 = vunpack.c.l.b16 %v1172
    %v1446 = vunpack.c.h.b16 %v1172
    %v1447 = vunpack.c.l.b16 %v1173
    %v1448 = vunpack.c.h.b16 %v1173
    %v1449 = vunpack.c.l.b16 %v1174
    %v1450 = vunpack.c.h.b16 %v1174
    %v1451 = vunpack.c.l.b16 %v1175
    %v1452 = vunpack.c.h.b16 %v1175
    %v1453 = vunpack.c.l.b16 %v1176
    %v1454 = vunpack.c.h.b16 %v1176
    %v1455 = vunpack.c.l.b16 %v1177
    %v1456 = vunpack.c.h.b16 %v1177
    %v1457 = vunpack.c.l.b16 %v1178
    %v1458 = vunpack.c.h.b16 %v1178
    %v1459 = vunpack.c.l.b16 %v1179
    %v1460 = vunpack.c.h.b16 %v1179
    %v1461 = vunpack.c.l.b16 %v1180
    %v1462 = vunpack.c.h.b16 %v1180
    %v1463 = vunpack.c.l.b16 %v1181
    %v1464 = vunpack.c.h.b16 %v1181
    %v1465 = vunpack.c.l.b16 %v1182
    %v1466 = vunpack.c.h.b16 %v1182
    %v1467 = vunpack.c.l.b16 %v1183
    %v1468 = vunpack.c.h.b16 %v1183
    %v1469 = vunpack.c.l.b16 %v1184
    %v1470 = vunpack.c.h.b16 %v1184
    %v1471 = vunpack.c.l.b16 %v1185
    %v1472 = vunpack.c.h.b16 %v1185
    %v1473 = vunpack.c.l.b16 %v1186
    %v1474 = vunpack.c.h.b16 %v1186
    %v1475 = vunpack.c.l.b16 %v1187
    %v1476 = vunpack.c.h.b16 %v1187
    %v1477 = vunpack.c.l.b16 %v1188
    %v1478 = vunpack.c.h.b16 %v1188
    %v1479 = vunpack.c.l.b16 %v1189
    %v1480 = vunpack.c.h.b16 %v1189
    %v1481 = vunpack.c.l.b16 %v1190
    %v1482 = vunpack.c.h.b16 %v1190
    %v1483 = vunpack.c.l.b16 %v1191
    %v1484 = vunpack.c.h.b16 %v1191
    %v1485 = vunpack.c.l.b16 %v1192
    %v1486 = vunpack.c.h.b16 %v1192
    %v1487 = vunpack.c.l.b16 %v1193
    %v1488 = vunpack.c.h.b16 %v1193
    %v1489 = vunpack.c.l.b16 %v1194
    %v1490 = vunpack.c.h.b16 %v1194
    %v1491 = vunpack.c.l.b16 %v1195
    %v1492 = vunpack.c.h.b16 %v1195
    %v1493 = vunpack.c.l.b16 %v1196
    %v1494 = vunpack.c.h.b16 %v1196
    %v1495 = vunpack.c.l.b16 %v1197
    %v1496 = vunpack.c.h.b16 %v1197
    %v1497 = vunpack.c.l.b16 %v1198
    %v1498 = vunpack.c.h.b16 %v1198
    %v1499 = vunpack.c.l.b16 %v1199
    %v1500 = vunpack.c.h.b16 %v1199
    %v1501 = vunpack.c.l.b16 %v1200
    %v1502 = vunpack.c.h.b16 %v1200
    %v1503 = vunpack.c.l.b16 %v1201
    %v1504 = vunpack.c.h.b16 %v1201
    %v1505 = vunpack.c.l.b16 %v1202
    %v1506 = vunpack.c.h.b16 %v1202
    %v1507 = vunpack.c.l.b16 %v1203
    %v1508 = vunpack.c.h.b16 %v1203
    %v1509 = vunpack.c.l.b16 %v1204
    %v1510 = vunpack.c.h.b16 %v1204
    %v1511 = vunpack.c.l.b16 %v1205
    %v1512 = vunpack.c.h.b16 %v1205
    %v1513 = vunpack.c.l.b16 %v1206
    %v1514 = vunpack.c.h.b16 %v1206
    %v1515 = vunpack.c.l.b16 %v1207
    %v1516 = vunpack.c.h.b16 %v1207
    %v1517 = vunpack.c.l.b16 %v1208
    %v1518 = vunpack.c.h.b16 %v1208
    %v1519 = vunpack.c.l.b16 %v1209
    %v1520 = vunpack.c.h.b16 %v1209
    %v1521 = vunpack.c.l.b16 %v1210
    %v1522 = vunpack.c.h.b16 %v1210
    %v1523 = vunpack.c.l.b16 %v1211
    %v1524 = vunpack.c.h.b16 %v1211
    %v1525 = vunpack.c.l.b16 %v1212
    %v1526 = vunpack.c.h.b16 %v1212
    %v1527 = vunpack.c.l.b16 %v1213
    %v1528 = vunpack.c.h.b16 %v1213
    %v1529 = vunpack.c.l.b16 %v1214
    %v1530 = vunpack.c.h.b16 %v1214
    %v1531 = vunpack.c.l.b16 %v1215
    %v1532 = vunpack.c.h.b16 %v1215
    %v1533 = vunpack.c.l.b16 %v1216
    %v1534 = vunpack.c.h.b16 %v1216
    %v1535 = vunpack.c.l.b16 %v1217
    %v1536 = vunpack.c.h.b16 %v1217
    %v1537 = vunpack.c.l.b16 %v1218
    %v1538 = vunpack.c.h.b16 %v1218
    %v1539 = vunpack.c.l.b16 %v1219
    %v1540 = vunpack.c.h.b16 %v1219
    %v1541 = vunpack.c.l.b16 %v1220
    %v1542 = vunpack.c.h.b16 %v1220
    %v1543 = vunpack.c.l.b16 %v1221
    %v1544 = vunpack.c.h.b16 %v1221
    %v1545 = vunpack.c.l.b16 %v1222
    %v1546 = vunpack.c.h.b16 %v1222
    %v1547 = vunpack.c.l.b16 %v1223
    %v1548 = vunpack.c.h.b16 %v1223
    %v1549 = vunpack.c.l.b16 %v1224
    %v1550 = vunpack.c.h.b16 %v1224
    %v1551 = vunpack.c.l.b16 %v1225
    %v1552 = vunpack.c.h.b16 %v1225
    %v1553 = vunpack.c.l.b16 %v1226
    %v1554 = vunpack.c.h.b16 %v1226
    %v1555 = vunpack.c.l.b16 %v1227
    %v1556 = vunpack.c.h.b16 %v1227
    %v1557 = vunpack.c.l.b16 %v1228
    %v1558 = vunpack.c.h.b16 %v1228
    %v1559 = vunpack.c.l.b16 %v1229
    %v1560 = vunpack.c.h.b16 %v1229
    %v1561 = vunpack.c.l.b16 %v1230
    %v1562 = vunpack.c.h.b16 %v1230
    %v1563 = vunpack.c.l.b16 %v1231
    %v1564 = vunpack.c.h.b16 %v1231
    %v1565 = vunpack.c.l.b16 %v1232
    %v1566 = vunpack.c.h.b16 %v1232
    %v1567 = vunpack.c.l.b16 %v1233
    %v1568 = vunpack.c.h.b16 %v1233
    %v1569 = vunpack.c.l.b16 %v1234
    %v1570 = vunpack.c.h.b16 %v1234
    %v1571 = vunpack.c.l.b16 %v1235
    %v1572 = vunpack.c.h.b16 %v1235
    %v1573 = vunpack.c.l.b16 %v1236
    %v1574 = vunpack.c.h.b16 %v1236
    %v1575 = vunpack.c.l.b16 %v1237
    %v1576 = vunpack.c.h.b16 %v1237
    %v1577 = vunpack.c.l.b16 %v1238
    %v1578 = vunpack.c.h.b16 %v1238
    %v1579 = vunpack.c.l.b16 %v1239
    %v1580 = vunpack.c.h.b16 %v1239
    %v1581 = vunpack.c.l.b16 %v1240
    %v1582 = vunpack.c.h.b16 %v1240
    %v1583 = vunpack.c.l.b16 %v1241
    %v1584 = vunpack.c.h.b16 %v1241
    %v1585 = vunpack.c.l.b16 %v1242
    %v1586 = vunpack.c.h.b16 %v1242
    %v1587 = vunpack.c.l.b16 %v1243
    %v1588 = vunpack.c.h.b16 %v1243
    %v1589 = vunpack.c.l.b16 %v1244
    %v1590 = vunpack.c.h.b16 %v1244
    %v1591 = vunpack.c.l.b16 %v1245
    %v1592 = vunpack.c.h.b16 %v1245
    %v1593 = vunpack.c.l.b16 %v1246
    %v1594 = vunpack.c.h.b16 %v1246
    %v1595 = vunpack.c.l.b16 %v1247
    %v1596 = vunpack.c.h.b16 %v1247
    %v1597 = vunpack.c.l.b16 %v1248
    %v1598 = vunpack.c.h.b16 %v1248
    %v1599 = vunpack.c.l.b16 %v1249
    %v1600 = vunpack.c.h.b16 %v1249
    %v1601 = vunpack.c.l.b16 %v1250
    %v1602 = vunpack.c.h.b16 %v1250
    %v1603 = vunpack.c.l.b16 %v1251
    %v1604 = vunpack.c.h.b16 %v1251
    %v1605 = vunpack.c.l.b16 %v1252
    %v1606 = vunpack.c.h.b16 %v1252
    %v1607 = vunpack.c.l.b16 %v1253
    %v1608 = vunpack.c.h.b16 %v1253
    %v1609 = vunpack.c.l.b16 %v1254
    %v1610 = vunpack.c.h.b16 %v1254
    %v1611 = vunpack.c.l.b16 %v1255
    %v1612 = vunpack.c.h.b16 %v1255
    %v1613 = vunpack.c.l.b16 %v1256
    %v1614 = vunpack.c.h.b16 %v1256
    %v1615 = vunpack.c.l.b16 %v1257
    %v1616 = vunpack.c.h.b16 %v1257
    %v1617 = vunpack.c.l.b16 %v1258
    %v1618 = vunpack.c.h.b16 %v1258
    %v1619 = vunpack.c.l.b16 %v1259
    %v1620 = vunpack.c.h.b16 %v1259
    %v1621 = vunpack.c.l.b16 %v1260
    %v1622 = vunpack.c.h.b16 %v1260
    %v1623 = vunpack.c.l.b16 %v1261
    %v1624 = vunpack.c.h.b16 %v1261
    %v1625 = vunpack.c.l.b16 %v1262
    %v1626 = vunpack.c.h.b16 %v1262
    %v1627 = vunpack.c.l.b16 %v1263
    %v1628 = vunpack.c.h.b16 %v1263
    %v1629 = vunpack.c.l.b16 %v1264
    %v1630 = vunpack.c.h.b16 %v1264
    %v1631 = vunpack.c.l.b16 %v1265
    %v1632 = vunpack.c.h.b16 %v1265
    %v1633 = vunpack.c.l.b16 %v1266
    %v1634 = vunpack.c.h.b16 %v1266
    %v1635 = vunpack.c.l.b16 %v1267
    %v1636 = vunpack.c.h.b16 %v1267
    %v1637 = vunpack.c.l.b16 %v1268
    %v1638 = vunpack.c.h.b16 %v1268
    %v1639 = vunpack.c.l.b16 %v1269
    %v1640 = vunpack.c.h.b16 %v1269
    %v1641 = vunpack.c.l.b16 %v1270
    %v1642 = vunpack.c.h.b16 %v1270
    %v1643 = vunpack.c.l.b16 %v1271
    %v1644 = vunpack.c.h.b16 %v1271
    %v1645 = vunpack.c.l.b16 %v1272
    %v1646 = vunpack.c.h.b16 %v1272
    %v1647 = vunpack.c.l.b16 %v1273
    %v1648 = vunpack.c.h.b16 %v1273
    %v1649 = vunpack.c.l.b16 %v1274
    %v1650 = vunpack.c.h.b16 %v1274
    %v1651 = vunpack.c.l.b16 %v1275
    %v1652 = vunpack.c.h.b16 %v1275
    %v1653 = vunpack.c.l.b16 %v1276
    %v1654 = vunpack.c.h.b16 %v1276
    %v1655 = vunpack.c.l.b16 %v1277
    %v1656 = vunpack.c.h.b16 %v1277
    %v1657 = vunpack.c.l.b16 %v1278
    %v1658 = vunpack.c.h.b16 %v1278
    %v1659 = vunpack.c.l.b16 %v1279
    %v1660 = vunpack.c.h.b16 %v1279
    %v1661 = vunpack.c.l.b16 %v1280
    %v1662 = vunpack.c.h.b16 %v1280
    %v1663 = vunpack.c.l.b16 %v1281
    %v1664 = vunpack.c.h.b16 %v1281
    %v1665 = vunpack.c.l.b16 %v1282
    %v1666 = vunpack.c.h.b16 %v1282
    %v1667 = vunpack.c.l.b16 %v1283
    %v1668 = vunpack.c.h.b16 %v1283
    %v1669 = vunpack.c.l.b16 %v1284
    %v1670 = vunpack.c.h.b16 %v1284
    %v1671 = vunpack.c.l.b16 %v1285
    %v1672 = vunpack.c.h.b16 %v1285
    %v1673 = vunpack.c.l.b16 %v1286
    %v1674 = vunpack.c.h.b16 %v1286
    %v1675 = vunpack.c.l.b16 %v1287
    %v1676 = vunpack.c.h.b16 %v1287
    %v1677 = vunpack.c.l.b16 %v1288
    %v1678 = vunpack.c.h.b16 %v1288
    %v1679 = vunpack.c.l.b16 %v1289
    %v1680 = vunpack.c.h.b16 %v1289
    %v1681 = vunpack.c.l.b16 %v1290
    %v1682 = vunpack.c.h.b16 %v1290
    %v1683 = vunpack.c.l.b16 %v1291
    %v1684 = vunpack.c.h.b16 %v1291
    %v1685 = vunpack.c.l.b16 %v1292
    %v1686 = vunpack.c.h.b16 %v1292
    %v1687 = vpack.c.b16 %v1435, %v1431
    %v1688 = vpack.c.b16 %v1436, %v1432
    %v1689 = vpack.c.b16 %v1437, %v1433
    %v1690 = vpack.c.b16 %v1438, %v1434
    %v1691 = vpack.c.b16 %v1443, %v1439
    %v1692 = vpack.c.b16 %v1444, %v1440
    %v1693 = vpack.c.b16 %v1445, %v1441
    %v1694 = vpack.c.b16 %v1446, %v1442
    %v1695 = vpack.c.b16 %v1451, %v1447
    %v1696 = vpack.c.b16 %v1452, %v1448
    %v1697 = vpack.c.b16 %v1453, %v1449
    %v1698 = vpack.c.b16 %v1454, %v1450
    %v1699 = vpack.c.b16 %v1459, %v1455
    %v1700 = vpack.c.b16 %v1460, %v1456
    %v1701 = vpack.c.b16 %v1461, %v1457
    %v1702 = vpack.c.b16 %v1462, %v1458
    %v1703 = vpack.c.b16 %v1467, %v1463
    %v1704 = vpack.c.b16 %v1468, %v1464
    %v1705 = vpack.c.b16 %v1469, %v1465
    %v1706 = vpack.c.b16 %v1470, %v1466
    %v1707 = vpack.c.b16 %v1475, %v1471
    %v1708 = vpack.c.b16 %v1476, %v1472
    %v1709 = vpack.c.b16 %v1477, %v1473
    %v1710 = vpack.c.b16 %v1478, %v1474
    %v1711 = vpack.c.b16 %v1483, %v1479
    %v1712 = vpack.c.b16 %v1484, %v1480
    %v1713 = vpack.c.b16 %v1485, %v1481
    %v1714 = vpack.c.b16 %v1486, %v1482
    %v1715 = vpack.c.b16 %v1491, %v1487
    %v1716 = vpack.c.b16 %v1492, %v1488
    %v1717 = vpack.c.b16 %v1493, %v1489
    %v1718 = vpack.c.b16 %v1494, %v1490
    %v1719 = vpack.c.b16 %v1499, %v1495
    %v1720 = vpack.c.b16 %v1500, %v1496
    %v1721 = vpack.c.b16 %v1501, %v1497
    %v1722 = vpack.c.b16 %v1502, %v1498
    %v1723 = vpack.c.b16 %v1507, %v1503
    %v1724 = vpack.c.b16 %v1508, %v1504
    %v1725 = vpack.c.b16 %v1509, %v1505
    %v1726 = vpack.c.b16 %v1510, %v1506
    %v1727 = vpack.c.b16 %v1515, %v1511
    %v1728 = vpack.c.b16 %v1516, %v1512
    %v1729 = vpack.c.b16 %v1517, %v1513
    %v1730 = vpack.c.b16 %v1518, %v1514
    %v1731 = vpack.c.b16 %v1523, %v1519
    %v1732 = vpack.c.b16 %v1524, %v1520
    %v1733 = vpack.c.b16 %v1525, %v1521
    %v1734 = vpack.c.b16 %v1526, %v1522
    %v1735 = vpack.c.b16 %v1531, %v1527
    %v1736 = vpack.c.b16 %v1532, %v1528
    %v1737 = vpack.c.b16 %v1533, %v1529
    %v1738 = vpack.c.b16 %v1534, %v1530
    %v1739 = vpack.c.b16 %v1539, %v1535
    %v1740 = vpack.c.b16 %v1540, %v1536
    %v1741 = vpack.c.b16 %v1541, %v1537
    %v1742 = vpack.c.b16 %v1542, %v1538
    %v1743 = vpack.c.b16 %v1547, %v1543
    %v1744 = vpack.c.b16 %v1548, %v1544
    %v1745 = vpack.c.b16 %v1549, %v1545
    %v1746 = vpack.c.b16 %v1550, %v1546
    %v1747 = vpack.c.b16 %v1555, %v1551
    %v1748 = vpack.c.b16 %v1556, %v1552
    %v1749 = vpack.c.b16 %v1557, %v1553
    %v1750 = vpack.c.b16 %v1558, %v1554
    %v1751 = vpack.c.b16 %v1563, %v1559
    %v1752 = vpack.c.b16 %v1564, %v1560
    %v1753 = vpack.c.b16 %v1565, %v1561
    %v1754 = vpack.c.b16 %v1566, %v1562
    %v1755 = vpack.c.b16 %v1571, %v1567
    %v1756 = vpack.c.b16 %v1572, %v1568
    %v1757 = vpack.c.b16 %v1573, %v1569
    %v1758 = vpack.c.b16 %v1574, %v1570
    %v1759 = vpack.c.b16 %v1579, %v1575
    %v1760 = vpack.c.b16 %v1580, %v1576
    %v1761 = vpack.c.b16 %v1581, %v1577
    %v1762 = vpack.c.b16 %v1582, %v1578
    %v1763 = vpack.c.b16 %v1587, %v1583
    %v1764 = vpack.c.b16 %v1588, %v1584
    %v1765 = vpack.c.b16 %v1589, %v1585
    %v1766 = vpack.c.b16 %v1590, %v1586
    %v1767 = vpack.c.b16 %v1595, %v1591
    %v1768 = vpack.c.b16 %v1596, %v1592
    %v1769 = vpack.c.b16 %v1597, %v1593
    %v1770 = vpack.c.b16 %v1598, %v1594
    %v1771 = vpack.c.b16 %v1603, %v1599
    %v1772 = vpack.c.b16 %v1604, %v1600
    %v1773 = vpack.c.b16 %v1605, %v1601
    %v1774 = vpack.c.b16 %v1606, %v1602
    %v1775 = vpack.c.b16 %v1611, %v1607
    %v1776 = vpack.c.b16 %v1612, %v1608
    %v1777 = vpack.c.b16 %v1613, %v1609
    %v1778 = vpack.c.b16 %v1614, %v1610
    %v1779 = vpack.c.b16 %v1619, %v1615
    %v1780 = vpack.c.b16 %v1620, %v1616
    %v1781 = vpack.c.b16 %v1621, %v1617
    %v1782 = vpack.c.b16 %v1622, %v1618
    %v1783 = vpack.c.b16 %v1627, %v1623
    %v1784 = vpack.c.b16 %v1628, %v1624
    %v1785 = vpack.c.b16 %v1629, %v1625
    %v1786 = vpack.c.b16 %v1630, %v1626
    %v1787 = vpack.c.b16 %v1635, %v1631
    %v1788 = vpack.c.b16 %v1636, %v1632
    %v1789 = vpack.c.b16 %v1637, %v1633
    %v1790 = vpack.c.b16 %v1638, %v1634
    %v1791 = vpack.c.b16 %v1643, %v1639
    %v1792 = vpack.c.b16 %v1644, %v1640
    %v1793 = vpack.c.b16 %v1645, %v1641
    %v1794 = vpack.c.b16 %v1646, %v1642
    %v1795 = vpack.c.b16 %v1651, %v1647
    %v1796 = vpack.c.b16 %v1652, %v1648
    %v1797 = vpack.c.b16 %v1653, %v1649
    %v1798 = vpack.c.b16 %v1654, %v1650
    %v1799 = vpack.c.b16 %v1659, %v1655
    %v1800 = vpack.c.b16 %v1660, %v1656
    %v1801 = vpack.c.b16 %v1661, %v1657
    %v1802 = vpack.c.b16 %v1662, %v1658
    %v1803 = vpack.c.b16 %v1667, %v1663
    %v1804 = vpack.c.b16 %v1668, %v1664
    %v1805 = vpack.c.b16 %v1669, %v1665
    %v1806 = vpack.c.b16 %v1670, %v1666
    %v1807 = vpack.c.b16 %v1675, %v1671
    %v1808 = vpack.c.b16 %v1676, %v1672
    %v1809 = vpack.c.b16 %v1677, %v1673
    %v1810 = vpack.c.b16 %v1678, %v1674
    %v1811 = vpack.c.b16 %v1683, %v1679
    %v1812 = vpack.c.b16 %v1684, %v1680
    %v1813 = vpack.c.b16 %v1685, %v1681
    %v1814 = vpack.c.b16 %v1686, %v1682
    %1943 = vmatpush.bf16.msra.mxu0 %v1715
    %1944 = vmatpush.bf16.msra.mxu0 %v1711
    %1945 = vmatpush.bf16.msra.mxu0 %v1707
    %1946 = vmatpush.bf16.msra.mxu0 %v1703
    %1947 = vmatpush.bf16.msra.mxu0 %v1699
    %1948 = vmatpush.bf16.msra.mxu0 %v1695
    %1949 = vmatpush.bf16.msra.mxu0 %v1691
    %1950 = vmatpush.bf16.msra.mxu0 %v1687
    %1951 = vmatmul.bf16.gmra.mxu0 %v1161
    %v1952 = vpop.f32.mrf.mxu0
    %v1953 = vadd.f32 %v1295, %v1952
    %v1954 = vpop.f32.mrf.mxu0
    %1955 = vdwg.mxu0
    %1956 = vmatpush.bf16.msra.mxu0 %v1747
    %1957 = vmatpush.bf16.msra.mxu0 %v1743
    %1958 = vmatpush.bf16.msra.mxu0 %v1739
    %1959 = vmatpush.bf16.msra.mxu0 %v1735
    %1960 = vmatpush.bf16.msra.mxu0 %v1731
    %1961 = vmatpush.bf16.msra.mxu0 %v1727
    %1962 = vmatpush.bf16.msra.mxu0 %v1723
    %1963 = vmatpush.bf16.msra.mxu0 %v1719
    %1964 = vmatmul.bf16.gmra.mxu0 %v1162
    %v1965 = vpop.f32.mrf.mxu0
    %v1966 = vadd.f32 %v1953, %v1965
    %v1967 = vpop.f32.mrf.mxu0
    %1968 = vdwg.mxu0
    %1969 = vmatpush.bf16.msra.mxu0 %v1779
    %1970 = vmatpush.bf16.msra.mxu0 %v1775
    %1971 = vmatpush.bf16.msra.mxu0 %v1771
    %1972 = vmatpush.bf16.msra.mxu0 %v1767
    %1973 = vmatpush.bf16.msra.mxu0 %v1763
    %1974 = vmatpush.bf16.msra.mxu0 %v1759
    %1975 = vmatpush.bf16.msra.mxu0 %v1755
    %1976 = vmatpush.bf16.msra.mxu0 %v1751
    %1977 = vmatmul.bf16.gmra.mxu0 %v1163
    %v1978 = vpop.f32.mrf.mxu0
    %v1979 = vadd.f32 %v1966, %v1978
    %v1980 = vpop.f32.mrf.mxu0
    %1981 = vdwg.mxu0
    %1982 = vmatpush.bf16.msra.mxu0 %v1811
    %1983 = vmatpush.bf16.msra.mxu0 %v1807
    %1984 = vmatpush.bf16.msra.mxu0 %v1803
    %1985 = vmatpush.bf16.msra.mxu0 %v1799
    %1986 = vmatpush.bf16.msra.mxu0 %v1795
    %1987 = vmatpush.bf16.msra.mxu0 %v1791
    %1988 = vmatpush.bf16.msra.mxu0 %v1787
    %1989 = vmatpush.bf16.msra.mxu0 %v1783
    %1990 = vmatmul.bf16.gmra.mxu0 %v1164
    %v1991 = vpop.f32.mrf.mxu0
    %v1992 = vadd.f32 %v1979, %v1991
    %v1993 = vpop.f32.mrf.mxu0
    %1994 = vdwg.mxu0
    %1995 = vmatpush.bf16.msra.mxu0 %v1716
    %1996 = vmatpush.bf16.msra.mxu0 %v1712
    %1997 = vmatpush.bf16.msra.mxu0 %v1708
    %1998 = vmatpush.bf16.msra.mxu0 %v1704
    %1999 = vmatpush.bf16.msra.mxu0 %v1700
    %2000 = vmatpush.bf16.msra.mxu0 %v1696
    %2001 = vmatpush.bf16.msra.mxu0 %v1692
    %2002 = vmatpush.bf16.msra.mxu0 %v1688
    %2003 = vmatmul.bf16.gmra.mxu0 %v1161
    %v2004 = vpop.f32.mrf.mxu0
    %v2005 = vadd.f32 %v1296, %v2004
    %v2006 = vpop.f32.mrf.mxu0
    %2007 = vdwg.mxu0
    %2008 = vmatpush.bf16.msra.mxu0 %v1748
    %2009 = vmatpush.bf16.msra.mxu0 %v1744
    %2010 = vmatpush.bf16.msra.mxu0 %v1740
    %2011 = vmatpush.bf16.msra.mxu0 %v1736
    %2012 = vmatpush.bf16.msra.mxu0 %v1732
    %2013 = vmatpush.bf16.msra.mxu0 %v1728
    %2014 = vmatpush.bf16.msra.mxu0 %v1724
    %2015 = vmatpush.bf16.msra.mxu0 %v1720
    %2016 = vmatmul.bf16.gmra.mxu0 %v1162
    %v2017 = vpop.f32.mrf.mxu0
    %v2018 = vadd.f32 %v2005, %v2017
    %v2019 = vpop.f32.mrf.mxu0
    %2020 = vdwg.mxu0
    %2021 = vmatpush.bf16.msra.mxu0 %v1780
    %2022 = vmatpush.bf16.msra.mxu0 %v1776
    %2023 = vmatpush.bf16.msra.mxu0 %v1772
    %2024 = vmatpush.bf16.msra.mxu0 %v1768
    %2025 = vmatpush.bf16.msra.mxu0 %v1764
    %2026 = vmatpush.bf16.msra.mxu0 %v1760
    %2027 = vmatpush.bf16.msra.mxu0 %v1756
    %2028 = vmatpush.bf16.msra.mxu0 %v1752
    %2029 = vmatmul.bf16.gmra.mxu0 %v1163
    %v2030 = vpop.f32.mrf.mxu0
    %v2031 = vadd.f32 %v2018, %v2030
    %v2032 = vpop.f32.mrf.mxu0
    %2033 = vdwg.mxu0
    %2034 = vmatpush.bf16.msra.mxu0 %v1812
    %2035 = vmatpush.bf16.msra.mxu0 %v1808
    %2036 = vmatpush.bf16.msra.mxu0 %v1804
    %2037 = vmatpush.bf16.msra.mxu0 %v1800
    %2038 = vmatpush.bf16.msra.mxu0 %v1796
    %2039 = vmatpush.bf16.msra.mxu0 %v1792
    %2040 = vmatpush.bf16.msra.mxu0 %v1788
    %2041 = vmatpush.bf16.msra.mxu0 %v1784
    %2042 = vmatmul.bf16.gmra.mxu0 %v1164
    %v2043 = vpop.f32.mrf.mxu0
    %v2044 = vadd.f32 %v2031, %v2043
    %v2045 = vpop.f32.mrf.mxu0
    %2046 = vdwg.mxu0
    %2047 = vmatpush.bf16.msra.mxu0 %v1717
    %2048 = vmatpush.bf16.msra.mxu0 %v1713
    %2049 = vmatpush.bf16.msra.mxu0 %v1709
    %2050 = vmatpush.bf16.msra.mxu0 %v1705
    %2051 = vmatpush.bf16.msra.mxu0 %v1701
    %2052 = vmatpush.bf16.msra.mxu0 %v1697
    %2053 = vmatpush.bf16.msra.mxu0 %v1693
    %2054 = vmatpush.bf16.msra.mxu0 %v1689
    %2055 = vmatmul.bf16.gmra.mxu0 %v1161
    %v2056 = vpop.f32.mrf.mxu0
    %v2057 = vadd.f32 %v1297, %v2056
    %v2058 = vpop.f32.mrf.mxu0
    %2059 = vdwg.mxu0
    %2060 = vmatpush.bf16.msra.mxu0 %v1749
    %2061 = vmatpush.bf16.msra.mxu0 %v1745
    %2062 = vmatpush.bf16.msra.mxu0 %v1741
    %2063 = vmatpush.bf16.msra.mxu0 %v1737
    %2064 = vmatpush.bf16.msra.mxu0 %v1733
    %2065 = vmatpush.bf16.msra.mxu0 %v1729
    %2066 = vmatpush.bf16.msra.mxu0 %v1725
    %2067 = vmatpush.bf16.msra.mxu0 %v1721
    %2068 = vmatmul.bf16.gmra.mxu0 %v1162
    %v2069 = vpop.f32.mrf.mxu0
    %v2070 = vadd.f32 %v2057, %v2069
    %v2071 = vpop.f32.mrf.mxu0
    %2072 = vdwg.mxu0
    %2073 = vmatpush.bf16.msra.mxu0 %v1781
    %2074 = vmatpush.bf16.msra.mxu0 %v1777
    %2075 = vmatpush.bf16.msra.mxu0 %v1773
    %2076 = vmatpush.bf16.msra.mxu0 %v1769
    %2077 = vmatpush.bf16.msra.mxu0 %v1765
    %2078 = vmatpush.bf16.msra.mxu0 %v1761
    %2079 = vmatpush.bf16.msra.mxu0 %v1757
    %2080 = vmatpush.bf16.msra.mxu0 %v1753
    %2081 = vmatmul.bf16.gmra.mxu0 %v1163
    %v2082 = vpop.f32.mrf.mxu0
    %v2083 = vadd.f32 %v2070, %v2082
    %v2084 = vpop.f32.mrf.mxu0
    %2085 = vdwg.mxu0
    %2086 = vmatpush.bf16.msra.mxu0 %v1813
    %2087 = vmatpush.bf16.msra.mxu0 %v1809
    %2088 = vmatpush.bf16.msra.mxu0 %v1805
    %2089 = vmatpush.bf16.msra.mxu0 %v1801
    %2090 = vmatpush.bf16.msra.mxu0 %v1797
    %2091 = vmatpush.bf16.msra.mxu0 %v1793
    %2092 = vmatpush.bf16.msra.mxu0 %v1789
    %2093 = vmatpush.bf16.msra.mxu0 %v1785
    %2094 = vmatmul.bf16.gmra.mxu0 %v1164
    %v2095 = vpop.f32.mrf.mxu0
    %v2096 = vadd.f32 %v2083, %v2095
    %v2097 = vpop.f32.mrf.mxu0
    %2098 = vdwg.mxu0
    %2099 = vmatpush.bf16.msra.mxu0 %v1718
    %2100 = vmatpush.bf16.msra.mxu0 %v1714
    %2101 = vmatpush.bf16.msra.mxu0 %v1710
    %2102 = vmatpush.bf16.msra.mxu0 %v1706
    %2103 = vmatpush.bf16.msra.mxu0 %v1702
    %2104 = vmatpush.bf16.msra.mxu0 %v1698
    %2105 = vmatpush.bf16.msra.mxu0 %v1694
    %2106 = vmatpush.bf16.msra.mxu0 %v1690
    %2107 = vmatmul.bf16.gmra.mxu0 %v1161
    %v2108 = vpop.f32.mrf.mxu0
    %v2109 = vadd.f32 %v1298, %v2108
    %v2110 = vpop.f32.mrf.mxu0
    %2111 = vdwg.mxu0
    %2112 = vmatpush.bf16.msra.mxu0 %v1750
    %2113 = vmatpush.bf16.msra.mxu0 %v1746
    %2114 = vmatpush.bf16.msra.mxu0 %v1742
    %2115 = vmatpush.bf16.msra.mxu0 %v1738
    %2116 = vmatpush.bf16.msra.mxu0 %v1734
    %2117 = vmatpush.bf16.msra.mxu0 %v1730
    %2118 = vmatpush.bf16.msra.mxu0 %v1726
    %2119 = vmatpush.bf16.msra.mxu0 %v1722
    %2120 = vmatmul.bf16.gmra.mxu0 %v1162
    %v2121 = vpop.f32.mrf.mxu0
    %v2122 = vadd.f32 %v2109, %v2121
    %v2123 = vpop.f32.mrf.mxu0
    %2124 = vdwg.mxu0
    %2125 = vmatpush.bf16.msra.mxu0 %v1782
    %2126 = vmatpush.bf16.msra.mxu0 %v1778
    %2127 = vmatpush.bf16.msra.mxu0 %v1774
    %2128 = vmatpush.bf16.msra.mxu0 %v1770
    %2129 = vmatpush.bf16.msra.mxu0 %v1766
    %2130 = vmatpush.bf16.msra.mxu0 %v1762
    %2131 = vmatpush.bf16.msra.mxu0 %v1758
    %2132 = vmatpush.bf16.msra.mxu0 %v1754
    %2133 = vmatmul.bf16.gmra.mxu0 %v1163
    %v2134 = vpop.f32.mrf.mxu0
    %v2135 = vadd.f32 %v2122, %v2134
    %v2136 = vpop.f32.mrf.mxu0
    %2137 = vdwg.mxu0
    %2138 = vmatpush.bf16.msra.mxu0 %v1814
    %2139 = vmatpush.bf16.msra.mxu0 %v1810
    %2140 = vmatpush.bf16.msra.mxu0 %v1806
    %2141 = vmatpush.bf16.msra.mxu0 %v1802
    %2142 = vmatpush.bf16.msra.mxu0 %v1798
    %2143 = vmatpush.bf16.msra.mxu0 %v1794
    %2144 = vmatpush.bf16.msra.mxu0 %v1790
    %2145 = vmatpush.bf16.msra.mxu0 %v1786
    %2146 = vmatmul.bf16.gmra.mxu0 %v1164
    %v2147 = vpop.f32.mrf.mxu0
    %v2148 = vadd.f32 %v2135, %v2147
    %v2149 = vpop.f32.mrf.mxu0
    %2150 = vdwg.mxu0
    %v2151 = vmax.f32 %v1992, 0.0
    %v2152 = vmax.f32 %v2044, 0.0
    %v2153 = vmax.f32 %v2096, 0.0
    %v2154 = vmax.f32 %v2148, 0.0
    %v2155 = vpack.c.bf16 %v2151, %v2151
    %v2156 = vpack.c.bf16 %v2152, %v2152
    %v2157 = vpack.c.bf16 %v2153, %v2153
    %v2158 = vpack.c.bf16 %v2154, %v2154
    %v2159 = vld [vmem:[#allocation11] sm:$0xff]
    %v2160 = vld [vmem:[#allocation11 + $0x8] sm:$0xff]
    %v2161 = vld [vmem:[#allocation11 + $0x10] sm:$0xff]
    %v2162 = vld [vmem:[#allocation11 + $0x18] sm:$0xff]
    %v2163 = vld [vmem:[#allocation11 + $0x20] sm:$0xff]
    %v2164 = vld [vmem:[#allocation11 + $0x28] sm:$0xff]
    %v2165 = vld [vmem:[#allocation11 + $0x30] sm:$0xff]
    %v2166 = vld [vmem:[#allocation11 + $0x38] sm:$0xff]
    %v2167 = vld [vmem:[#allocation11 + $0x40] sm:$0xff]
    %v2168 = vld [vmem:[#allocation11 + $0x48] sm:$0xff]
    %v2169 = vld [vmem:[#allocation11 + $0x50] sm:$0xff]
    %v2170 = vld [vmem:[#allocation11 + $0x58] sm:$0xff]
    %v2171 = vld [vmem:[#allocation11 + $0x60] sm:$0xff]
    %v2172 = vld [vmem:[#allocation11 + $0x68] sm:$0xff]
    %v2173 = vld [vmem:[#allocation11 + $0x70] sm:$0xff]
    %v2174 = vld [vmem:[#allocation11 + $0x78] sm:$0xff]
    %v2175 = vld [vmem:[#allocation11 + $0x80] sm:$0xff]
    %v2176 = vld [vmem:[#allocation11 + $0x88] sm:$0xff]
    %v2177 = vld [vmem:[#allocation11 + $0x90] sm:$0xff]
    %v2178 = vld [vmem:[#allocation11 + $0x98] sm:$0xff]
    %v2179 = vld [vmem:[#allocation11 + $0xa0] sm:$0xff]
    %v2180 = vld [vmem:[#allocation11 + $0xa8] sm:$0xff]
    %v2181 = vld [vmem:[#allocation11 + $0xb0] sm:$0xff]
    %v2182 = vld [vmem:[#allocation11 + $0xb8] sm:$0xff]
    %v2183 = vld [vmem:[#allocation11 + $0xc0] sm:$0xff]
    %v2184 = vld [vmem:[#allocation11 + $0xc8] sm:$0xff]
    %v2185 = vld [vmem:[#allocation11 + $0xd0] sm:$0xff]
    %v2186 = vld [vmem:[#allocation11 + $0xd8] sm:$0xff]
    %v2187 = vld [vmem:[#allocation11 + $0xe0] sm:$0xff]
    %v2188 = vld [vmem:[#allocation11 + $0xe8] sm:$0xff]
    %v2189 = vld [vmem:[#allocation11 + $0xf0] sm:$0xff]
    %v2190 = vld [vmem:[#allocation11 + $0xf8] sm:$0xff]
    %v2191 = vld [vmem:[#allocation11 + $0x100] sm:$0xff]
    %v2192 = vld [vmem:[#allocation11 + $0x108] sm:$0xff]
    %v2193 = vld [vmem:[#allocation11 + $0x110] sm:$0xff]
    %v2194 = vld [vmem:[#allocation11 + $0x118] sm:$0xff]
    %v2195 = vld [vmem:[#allocation11 + $0x120] sm:$0xff]
    %v2196 = vld [vmem:[#allocation11 + $0x128] sm:$0xff]
    %v2197 = vld [vmem:[#allocation11 + $0x130] sm:$0xff]
    %v2198 = vld [vmem:[#allocation11 + $0x138] sm:$0xff]
    %v2199 = vld [vmem:[#allocation11 + $0x140] sm:$0xff]
    %v2200 = vld [vmem:[#allocation11 + $0x148] sm:$0xff]
    %v2201 = vld [vmem:[#allocation11 + $0x150] sm:$0xff]
    %v2202 = vld [vmem:[#allocation11 + $0x158] sm:$0xff]
    %v2203 = vld [vmem:[#allocation11 + $0x160] sm:$0xff]
    %v2204 = vld [vmem:[#allocation11 + $0x168] sm:$0xff]
    %v2205 = vld [vmem:[#allocation11 + $0x170] sm:$0xff]
    %v2206 = vld [vmem:[#allocation11 + $0x178] sm:$0xff]
    %v2207 = vld [vmem:[#allocation11 + $0x180] sm:$0xff]
    %v2208 = vld [vmem:[#allocation11 + $0x188] sm:$0xff]
    %v2209 = vld [vmem:[#allocation11 + $0x190] sm:$0xff]
    %v2210 = vld [vmem:[#allocation11 + $0x198] sm:$0xff]
    %v2211 = vld [vmem:[#allocation11 + $0x1a0] sm:$0xff]
    %v2212 = vld [vmem:[#allocation11 + $0x1a8] sm:$0xff]
    %v2213 = vld [vmem:[#allocation11 + $0x1b0] sm:$0xff]
    %v2214 = vld [vmem:[#allocation11 + $0x1b8] sm:$0xff]
    %v2215 = vld [vmem:[#allocation11 + $0x1c0] sm:$0xff]
    %v2216 = vld [vmem:[#allocation11 + $0x1c8] sm:$0xff]
    %v2217 = vld [vmem:[#allocation11 + $0x1d0] sm:$0xff]
    %v2218 = vld [vmem:[#allocation11 + $0x1d8] sm:$0xff]
    %v2219 = vld [vmem:[#allocation11 + $0x1e0] sm:$0xff]
    %v2220 = vld [vmem:[#allocation11 + $0x1e8] sm:$0xff]
    %v2221 = vld [vmem:[#allocation11 + $0x1f0] sm:$0xff]
    %v2222 = vld [vmem:[#allocation11 + $0x1f8] sm:$0xff]
    %v2223 = vld [vmem:[#allocation11 + $0x200] sm:$0xff]
    %v2224 = vld [vmem:[#allocation11 + $0x208] sm:$0xff]
    %v2225 = vld [vmem:[#allocation11 + $0x210] sm:$0xff]
    %v2226 = vld [vmem:[#allocation11 + $0x218] sm:$0xff]
    %v2227 = vld [vmem:[#allocation11 + $0x220] sm:$0xff]
    %v2228 = vld [vmem:[#allocation11 + $0x228] sm:$0xff]
    %v2229 = vld [vmem:[#allocation11 + $0x230] sm:$0xff]
    %v2230 = vld [vmem:[#allocation11 + $0x238] sm:$0xff]
    %v2231 = vld [vmem:[#allocation11 + $0x240] sm:$0xff]
    %v2232 = vld [vmem:[#allocation11 + $0x248] sm:$0xff]
    %v2233 = vld [vmem:[#allocation11 + $0x250] sm:$0xff]
    %v2234 = vld [vmem:[#allocation11 + $0x258] sm:$0xff]
    %v2235 = vld [vmem:[#allocation11 + $0x260] sm:$0xff]
    %v2236 = vld [vmem:[#allocation11 + $0x268] sm:$0xff]
    %v2237 = vld [vmem:[#allocation11 + $0x270] sm:$0xff]
    %v2238 = vld [vmem:[#allocation11 + $0x278] sm:$0xff]
    %v2239 = vld [vmem:[#allocation11 + $0x280] sm:$0xff]
    %v2240 = vld [vmem:[#allocation11 + $0x288] sm:$0xff]
    %v2241 = vld [vmem:[#allocation11 + $0x290] sm:$0xff]
    %v2242 = vld [vmem:[#allocation11 + $0x298] sm:$0xff]
    %v2243 = vld [vmem:[#allocation11 + $0x2a0] sm:$0xff]
    %v2244 = vld [vmem:[#allocation11 + $0x2a8] sm:$0xff]
    %v2245 = vld [vmem:[#allocation11 + $0x2b0] sm:$0xff]
    %v2246 = vld [vmem:[#allocation11 + $0x2b8] sm:$0xff]
    %v2247 = vld [vmem:[#allocation11 + $0x2c0] sm:$0xff]
    %v2248 = vld [vmem:[#allocation11 + $0x2c8] sm:$0xff]
    %v2249 = vld [vmem:[#allocation11 + $0x2d0] sm:$0xff]
    %v2250 = vld [vmem:[#allocation11 + $0x2d8] sm:$0xff]
    %v2251 = vld [vmem:[#allocation11 + $0x2e0] sm:$0xff]
    %v2252 = vld [vmem:[#allocation11 + $0x2e8] sm:$0xff]
    %v2253 = vld [vmem:[#allocation11 + $0x2f0] sm:$0xff]
    %v2254 = vld [vmem:[#allocation11 + $0x2f8] sm:$0xff]
    %v2255 = vld [vmem:[#allocation11 + $0x300] sm:$0xff]
    %v2256 = vld [vmem:[#allocation11 + $0x308] sm:$0xff]
    %v2257 = vld [vmem:[#allocation11 + $0x310] sm:$0xff]
    %v2258 = vld [vmem:[#allocation11 + $0x318] sm:$0xff]
    %v2259 = vld [vmem:[#allocation11 + $0x320] sm:$0xff]
    %v2260 = vld [vmem:[#allocation11 + $0x328] sm:$0xff]
    %v2261 = vld [vmem:[#allocation11 + $0x330] sm:$0xff]
    %v2262 = vld [vmem:[#allocation11 + $0x338] sm:$0xff]
    %v2263 = vld [vmem:[#allocation11 + $0x340] sm:$0xff]
    %v2264 = vld [vmem:[#allocation11 + $0x348] sm:$0xff]
    %v2265 = vld [vmem:[#allocation11 + $0x350] sm:$0xff]
    %v2266 = vld [vmem:[#allocation11 + $0x358] sm:$0xff]
    %v2267 = vld [vmem:[#allocation11 + $0x360] sm:$0xff]
    %v2268 = vld [vmem:[#allocation11 + $0x368] sm:$0xff]
    %v2269 = vld [vmem:[#allocation11 + $0x370] sm:$0xff]
    %v2270 = vld [vmem:[#allocation11 + $0x378] sm:$0xff]
    %v2271 = vld [vmem:[#allocation11 + $0x380] sm:$0xff]
    %v2272 = vld [vmem:[#allocation11 + $0x388] sm:$0xff]
    %v2273 = vld [vmem:[#allocation11 + $0x390] sm:$0xff]
    %v2274 = vld [vmem:[#allocation11 + $0x398] sm:$0xff]
    %v2275 = vld [vmem:[#allocation11 + $0x3a0] sm:$0xff]
    %v2276 = vld [vmem:[#allocation11 + $0x3a8] sm:$0xff]
    %v2277 = vld [vmem:[#allocation11 + $0x3b0] sm:$0xff]
    %v2278 = vld [vmem:[#allocation11 + $0x3b8] sm:$0xff]
    %v2279 = vld [vmem:[#allocation11 + $0x3c0] sm:$0xff]
    %v2280 = vld [vmem:[#allocation11 + $0x3c8] sm:$0xff]
    %v2281 = vld [vmem:[#allocation11 + $0x3d0] sm:$0xff]
    %v2282 = vld [vmem:[#allocation11 + $0x3d8] sm:$0xff]
    %v2283 = vld [vmem:[#allocation11 + $0x3e0] sm:$0xff]
    %v2284 = vld [vmem:[#allocation11 + $0x3e8] sm:$0xff]
    %v2285 = vld [vmem:[#allocation11 + $0x3f0] sm:$0xff]
    %v2286 = vld [vmem:[#allocation11 + $0x3f8] sm:$0xff]
    %v2287 = vld [vmem:[#allocation13] sm:$0xf]
    %v2289 = vperm.slane %v2287, 0
    %v2290 = vperm.slane %v2287, 1
    %v2291 = vperm.slane %v2287, 2
    %v2292 = vperm.slane %v2287, 3
    %v2425 = vunpack.c.l.b16 %v2159
    %v2426 = vunpack.c.h.b16 %v2159
    %v2427 = vunpack.c.l.b16 %v2160
    %v2428 = vunpack.c.h.b16 %v2160
    %v2429 = vunpack.c.l.b16 %v2161
    %v2430 = vunpack.c.h.b16 %v2161
    %v2431 = vunpack.c.l.b16 %v2162
    %v2432 = vunpack.c.h.b16 %v2162
    %v2433 = vunpack.c.l.b16 %v2163
    %v2434 = vunpack.c.h.b16 %v2163
    %v2435 = vunpack.c.l.b16 %v2164
    %v2436 = vunpack.c.h.b16 %v2164
    %v2437 = vunpack.c.l.b16 %v2165
    %v2438 = vunpack.c.h.b16 %v2165
    %v2439 = vunpack.c.l.b16 %v2166
    %v2440 = vunpack.c.h.b16 %v2166
    %v2441 = vunpack.c.l.b16 %v2167
    %v2442 = vunpack.c.h.b16 %v2167
    %v2443 = vunpack.c.l.b16 %v2168
    %v2444 = vunpack.c.h.b16 %v2168
    %v2445 = vunpack.c.l.b16 %v2169
    %v2446 = vunpack.c.h.b16 %v2169
    %v2447 = vunpack.c.l.b16 %v2170
    %v2448 = vunpack.c.h.b16 %v2170
    %v2449 = vunpack.c.l.b16 %v2171
    %v2450 = vunpack.c.h.b16 %v2171
    %v2451 = vunpack.c.l.b16 %v2172
    %v2452 = vunpack.c.h.b16 %v2172
    %v2453 = vunpack.c.l.b16 %v2173
    %v2454 = vunpack.c.h.b16 %v2173
    %v2455 = vunpack.c.l.b16 %v2174
    %v2456 = vunpack.c.h.b16 %v2174
    %v2457 = vunpack.c.l.b16 %v2175
    %v2458 = vunpack.c.h.b16 %v2175
    %v2459 = vunpack.c.l.b16 %v2176
    %v2460 = vunpack.c.h.b16 %v2176
    %v2461 = vunpack.c.l.b16 %v2177
    %v2462 = vunpack.c.h.b16 %v2177
    %v2463 = vunpack.c.l.b16 %v2178
    %v2464 = vunpack.c.h.b16 %v2178
    %v2465 = vunpack.c.l.b16 %v2179
    %v2466 = vunpack.c.h.b16 %v2179
    %v2467 = vunpack.c.l.b16 %v2180
    %v2468 = vunpack.c.h.b16 %v2180
    %v2469 = vunpack.c.l.b16 %v2181
    %v2470 = vunpack.c.h.b16 %v2181
    %v2471 = vunpack.c.l.b16 %v2182
    %v2472 = vunpack.c.h.b16 %v2182
    %v2473 = vunpack.c.l.b16 %v2183
    %v2474 = vunpack.c.h.b16 %v2183
    %v2475 = vunpack.c.l.b16 %v2184
    %v2476 = vunpack.c.h.b16 %v2184
    %v2477 = vunpack.c.l.b16 %v2185
    %v2478 = vunpack.c.h.b16 %v2185
    %v2479 = vunpack.c.l.b16 %v2186
    %v2480 = vunpack.c.h.b16 %v2186
    %v2481 = vunpack.c.l.b16 %v2187
    %v2482 = vunpack.c.h.b16 %v2187
    %v2483 = vunpack.c.l.b16 %v2188
    %v2484 = vunpack.c.h.b16 %v2188
    %v2485 = vunpack.c.l.b16 %v2189
    %v2486 = vunpack.c.h.b16 %v2189
    %v2487 = vunpack.c.l.b16 %v2190
    %v2488 = vunpack.c.h.b16 %v2190
    %v2489 = vunpack.c.l.b16 %v2191
    %v2490 = vunpack.c.h.b16 %v2191
    %v2491 = vunpack.c.l.b16 %v2192
    %v2492 = vunpack.c.h.b16 %v2192
    %v2493 = vunpack.c.l.b16 %v2193
    %v2494 = vunpack.c.h.b16 %v2193
    %v2495 = vunpack.c.l.b16 %v2194
    %v2496 = vunpack.c.h.b16 %v2194
    %v2497 = vunpack.c.l.b16 %v2195
    %v2498 = vunpack.c.h.b16 %v2195
    %v2499 = vunpack.c.l.b16 %v2196
    %v2500 = vunpack.c.h.b16 %v2196
    %v2501 = vunpack.c.l.b16 %v2197
    %v2502 = vunpack.c.h.b16 %v2197
    %v2503 = vunpack.c.l.b16 %v2198
    %v2504 = vunpack.c.h.b16 %v2198
    %v2505 = vunpack.c.l.b16 %v2199
    %v2506 = vunpack.c.h.b16 %v2199
    %v2507 = vunpack.c.l.b16 %v2200
    %v2508 = vunpack.c.h.b16 %v2200
    %v2509 = vunpack.c.l.b16 %v2201
    %v2510 = vunpack.c.h.b16 %v2201
    %v2511 = vunpack.c.l.b16 %v2202
    %v2512 = vunpack.c.h.b16 %v2202
    %v2513 = vunpack.c.l.b16 %v2203
    %v2514 = vunpack.c.h.b16 %v2203
    %v2515 = vunpack.c.l.b16 %v2204
    %v2516 = vunpack.c.h.b16 %v2204
    %v2517 = vunpack.c.l.b16 %v2205
    %v2518 = vunpack.c.h.b16 %v2205
    %v2519 = vunpack.c.l.b16 %v2206
    %v2520 = vunpack.c.h.b16 %v2206
    %v2521 = vunpack.c.l.b16 %v2207
    %v2522 = vunpack.c.h.b16 %v2207
    %v2523 = vunpack.c.l.b16 %v2208
    %v2524 = vunpack.c.h.b16 %v2208
    %v2525 = vunpack.c.l.b16 %v2209
    %v2526 = vunpack.c.h.b16 %v2209
    %v2527 = vunpack.c.l.b16 %v2210
    %v2528 = vunpack.c.h.b16 %v2210
    %v2529 = vunpack.c.l.b16 %v2211
    %v2530 = vunpack.c.h.b16 %v2211
    %v2531 = vunpack.c.l.b16 %v2212
    %v2532 = vunpack.c.h.b16 %v2212
    %v2533 = vunpack.c.l.b16 %v2213
    %v2534 = vunpack.c.h.b16 %v2213
    %v2535 = vunpack.c.l.b16 %v2214
    %v2536 = vunpack.c.h.b16 %v2214
    %v2537 = vunpack.c.l.b16 %v2215
    %v2538 = vunpack.c.h.b16 %v2215
    %v2539 = vunpack.c.l.b16 %v2216
    %v2540 = vunpack.c.h.b16 %v2216
    %v2541 = vunpack.c.l.b16 %v2217
    %v2542 = vunpack.c.h.b16 %v2217
    %v2543 = vunpack.c.l.b16 %v2218
    %v2544 = vunpack.c.h.b16 %v2218
    %v2545 = vunpack.c.l.b16 %v2219
    %v2546 = vunpack.c.h.b16 %v2219
    %v2547 = vunpack.c.l.b16 %v2220
    %v2548 = vunpack.c.h.b16 %v2220
    %v2549 = vunpack.c.l.b16 %v2221
    %v2550 = vunpack.c.h.b16 %v2221
    %v2551 = vunpack.c.l.b16 %v2222
    %v2552 = vunpack.c.h.b16 %v2222
    %v2553 = vunpack.c.l.b16 %v2223
    %v2554 = vunpack.c.h.b16 %v2223
    %v2555 = vunpack.c.l.b16 %v2224
    %v2556 = vunpack.c.h.b16 %v2224
    %v2557 = vunpack.c.l.b16 %v2225
    %v2558 = vunpack.c.h.b16 %v2225
    %v2559 = vunpack.c.l.b16 %v2226
    %v2560 = vunpack.c.h.b16 %v2226
    %v2561 = vunpack.c.l.b16 %v2227
    %v2562 = vunpack.c.h.b16 %v2227
    %v2563 = vunpack.c.l.b16 %v2228
    %v2564 = vunpack.c.h.b16 %v2228
    %v2565 = vunpack.c.l.b16 %v2229
    %v2566 = vunpack.c.h.b16 %v2229
    %v2567 = vunpack.c.l.b16 %v2230
    %v2568 = vunpack.c.h.b16 %v2230
    %v2569 = vunpack.c.l.b16 %v2231
    %v2570 = vunpack.c.h.b16 %v2231
    %v2571 = vunpack.c.l.b16 %v2232
    %v2572 = vunpack.c.h.b16 %v2232
    %v2573 = vunpack.c.l.b16 %v2233
    %v2574 = vunpack.c.h.b16 %v2233
    %v2575 = vunpack.c.l.b16 %v2234
    %v2576 = vunpack.c.h.b16 %v2234
    %v2577 = vunpack.c.l.b16 %v2235
    %v2578 = vunpack.c.h.b16 %v2235
    %v2579 = vunpack.c.l.b16 %v2236
    %v2580 = vunpack.c.h.b16 %v2236
    %v2581 = vunpack.c.l.b16 %v2237
    %v2582 = vunpack.c.h.b16 %v2237
    %v2583 = vunpack.c.l.b16 %v2238
    %v2584 = vunpack.c.h.b16 %v2238
    %v2585 = vunpack.c.l.b16 %v2239
    %v2586 = vunpack.c.h.b16 %v2239
    %v2587 = vunpack.c.l.b16 %v2240
    %v2588 = vunpack.c.h.b16 %v2240
    %v2589 = vunpack.c.l.b16 %v2241
    %v2590 = vunpack.c.h.b16 %v2241
    %v2591 = vunpack.c.l.b16 %v2242
    %v2592 = vunpack.c.h.b16 %v2242
    %v2593 = vunpack.c.l.b16 %v2243
    %v2594 = vunpack.c.h.b16 %v2243
    %v2595 = vunpack.c.l.b16 %v2244
    %v2596 = vunpack.c.h.b16 %v2244
    %v2597 = vunpack.c.l.b16 %v2245
    %v2598 = vunpack.c.h.b16 %v2245
    %v2599 = vunpack.c.l.b16 %v2246
    %v2600 = vunpack.c.h.b16 %v2246
    %v2601 = vunpack.c.l.b16 %v2247
    %v2602 = vunpack.c.h.b16 %v2247
    %v2603 = vunpack.c.l.b16 %v2248
    %v2604 = vunpack.c.h.b16 %v2248
    %v2605 = vunpack.c.l.b16 %v2249
    %v2606 = vunpack.c.h.b16 %v2249
    %v2607 = vunpack.c.l.b16 %v2250
    %v2608 = vunpack.c.h.b16 %v2250
    %v2609 = vunpack.c.l.b16 %v2251
    %v2610 = vunpack.c.h.b16 %v2251
    %v2611 = vunpack.c.l.b16 %v2252
    %v2612 = vunpack.c.h.b16 %v2252
    %v2613 = vunpack.c.l.b16 %v2253
    %v2614 = vunpack.c.h.b16 %v2253
    %v2615 = vunpack.c.l.b16 %v2254
    %v2616 = vunpack.c.h.b16 %v2254
    %v2617 = vunpack.c.l.b16 %v2255
    %v2618 = vunpack.c.h.b16 %v2255
    %v2619 = vunpack.c.l.b16 %v2256
    %v2620 = vunpack.c.h.b16 %v2256
    %v2621 = vunpack.c.l.b16 %v2257
    %v2622 = vunpack.c.h.b16 %v2257
    %v2623 = vunpack.c.l.b16 %v2258
    %v2624 = vunpack.c.h.b16 %v2258
    %v2625 = vunpack.c.l.b16 %v2259
    %v2626 = vunpack.c.h.b16 %v2259
    %v2627 = vunpack.c.l.b16 %v2260
    %v2628 = vunpack.c.h.b16 %v2260
    %v2629 = vunpack.c.l.b16 %v2261
    %v2630 = vunpack.c.h.b16 %v2261
    %v2631 = vunpack.c.l.b16 %v2262
    %v2632 = vunpack.c.h.b16 %v2262
    %v2633 = vunpack.c.l.b16 %v2263
    %v2634 = vunpack.c.h.b16 %v2263
    %v2635 = vunpack.c.l.b16 %v2264
    %v2636 = vunpack.c.h.b16 %v2264
    %v2637 = vunpack.c.l.b16 %v2265
    %v2638 = vunpack.c.h.b16 %v2265
    %v2639 = vunpack.c.l.b16 %v2266
    %v2640 = vunpack.c.h.b16 %v2266
    %v2641 = vunpack.c.l.b16 %v2267
    %v2642 = vunpack.c.h.b16 %v2267
    %v2643 = vunpack.c.l.b16 %v2268
    %v2644 = vunpack.c.h.b16 %v2268
    %v2645 = vunpack.c.l.b16 %v2269
    %v2646 = vunpack.c.h.b16 %v2269
    %v2647 = vunpack.c.l.b16 %v2270
    %v2648 = vunpack.c.h.b16 %v2270
    %v2649 = vunpack.c.l.b16 %v2271
    %v2650 = vunpack.c.h.b16 %v2271
    %v2651 = vunpack.c.l.b16 %v2272
    %v2652 = vunpack.c.h.b16 %v2272
    %v2653 = vunpack.c.l.b16 %v2273
    %v2654 = vunpack.c.h.b16 %v2273
    %v2655 = vunpack.c.l.b16 %v2274
    %v2656 = vunpack.c.h.b16 %v2274
    %v2657 = vunpack.c.l.b16 %v2275
    %v2658 = vunpack.c.h.b16 %v2275
    %v2659 = vunpack.c.l.b16 %v2276
    %v2660 = vunpack.c.h.b16 %v2276
    %v2661 = vunpack.c.l.b16 %v2277
    %v2662 = vunpack.c.h.b16 %v2277
    %v2663 = vunpack.c.l.b16 %v2278
    %v2664 = vunpack.c.h.b16 %v2278
    %v2665 = vunpack.c.l.b16 %v2279
    %v2666 = vunpack.c.h.b16 %v2279
    %v2667 = vunpack.c.l.b16 %v2280
    %v2668 = vunpack.c.h.b16 %v2280
    %v2669 = vunpack.c.l.b16 %v2281
    %v2670 = vunpack.c.h.b16 %v2281
    %v2671 = vunpack.c.l.b16 %v2282
    %v2672 = vunpack.c.h.b16 %v2282
    %v2673 = vunpack.c.l.b16 %v2283
    %v2674 = vunpack.c.h.b16 %v2283
    %v2675 = vunpack.c.l.b16 %v2284
    %v2676 = vunpack.c.h.b16 %v2284
    %v2677 = vunpack.c.l.b16 %v2285
    %v2678 = vunpack.c.h.b16 %v2285
    %v2679 = vunpack.c.l.b16 %v2286
    %v2680 = vunpack.c.h.b16 %v2286
    %v2681 = vpack.c.b16 %v2429, %v2425
    %v2682 = vpack.c.b16 %v2430, %v2426
    %v2683 = vpack.c.b16 %v2431, %v2427
    %v2684 = vpack.c.b16 %v2432, %v2428
    %v2685 = vpack.c.b16 %v2437, %v2433
    %v2686 = vpack.c.b16 %v2438, %v2434
    %v2687 = vpack.c.b16 %v2439, %v2435
    %v2688 = vpack.c.b16 %v2440, %v2436
    %v2689 = vpack.c.b16 %v2445, %v2441
    %v2690 = vpack.c.b16 %v2446, %v2442
    %v2691 = vpack.c.b16 %v2447, %v2443
    %v2692 = vpack.c.b16 %v2448, %v2444
    %v2693 = vpack.c.b16 %v2453, %v2449
    %v2694 = vpack.c.b16 %v2454, %v2450
    %v2695 = vpack.c.b16 %v2455, %v2451
    %v2696 = vpack.c.b16 %v2456, %v2452
    %v2697 = vpack.c.b16 %v2461, %v2457
    %v2698 = vpack.c.b16 %v2462, %v2458
    %v2699 = vpack.c.b16 %v2463, %v2459
    %v2700 = vpack.c.b16 %v2464, %v2460
    %v2701 = vpack.c.b16 %v2469, %v2465
    %v2702 = vpack.c.b16 %v2470, %v2466
    %v2703 = vpack.c.b16 %v2471, %v2467
    %v2704 = vpack.c.b16 %v2472, %v2468
    %v2705 = vpack.c.b16 %v2477, %v2473
    %v2706 = vpack.c.b16 %v2478, %v2474
    %v2707 = vpack.c.b16 %v2479, %v2475
    %v2708 = vpack.c.b16 %v2480, %v2476
    %v2709 = vpack.c.b16 %v2485, %v2481
    %v2710 = vpack.c.b16 %v2486, %v2482
    %v2711 = vpack.c.b16 %v2487, %v2483
    %v2712 = vpack.c.b16 %v2488, %v2484
    %v2713 = vpack.c.b16 %v2493, %v2489
    %v2714 = vpack.c.b16 %v2494, %v2490
    %v2715 = vpack.c.b16 %v2495, %v2491
    %v2716 = vpack.c.b16 %v2496, %v2492
    %v2717 = vpack.c.b16 %v2501, %v2497
    %v2718 = vpack.c.b16 %v2502, %v2498
    %v2719 = vpack.c.b16 %v2503, %v2499
    %v2720 = vpack.c.b16 %v2504, %v2500
    %v2721 = vpack.c.b16 %v2509, %v2505
    %v2722 = vpack.c.b16 %v2510, %v2506
    %v2723 = vpack.c.b16 %v2511, %v2507
    %v2724 = vpack.c.b16 %v2512, %v2508
    %v2725 = vpack.c.b16 %v2517, %v2513
    %v2726 = vpack.c.b16 %v2518, %v2514
    %v2727 = vpack.c.b16 %v2519, %v2515
    %v2728 = vpack.c.b16 %v2520, %v2516
    %v2729 = vpack.c.b16 %v2525, %v2521
    %v2730 = vpack.c.b16 %v2526, %v2522
    %v2731 = vpack.c.b16 %v2527, %v2523
    %v2732 = vpack.c.b16 %v2528, %v2524
    %v2733 = vpack.c.b16 %v2533, %v2529
    %v2734 = vpack.c.b16 %v2534, %v2530
    %v2735 = vpack.c.b16 %v2535, %v2531
    %v2736 = vpack.c.b16 %v2536, %v2532
    %v2737 = vpack.c.b16 %v2541, %v2537
    %v2738 = vpack.c.b16 %v2542, %v2538
    %v2739 = vpack.c.b16 %v2543, %v2539
    %v2740 = vpack.c.b16 %v2544, %v2540
    %v2741 = vpack.c.b16 %v2549, %v2545
    %v2742 = vpack.c.b16 %v2550, %v2546
    %v2743 = vpack.c.b16 %v2551, %v2547
    %v2744 = vpack.c.b16 %v2552, %v2548
    %v2745 = vpack.c.b16 %v2557, %v2553
    %v2746 = vpack.c.b16 %v2558, %v2554
    %v2747 = vpack.c.b16 %v2559, %v2555
    %v2748 = vpack.c.b16 %v2560, %v2556
    %v2749 = vpack.c.b16 %v2565, %v2561
    %v2750 = vpack.c.b16 %v2566, %v2562
    %v2751 = vpack.c.b16 %v2567, %v2563
    %v2752 = vpack.c.b16 %v2568, %v2564
    %v2753 = vpack.c.b16 %v2573, %v2569
    %v2754 = vpack.c.b16 %v2574, %v2570
    %v2755 = vpack.c.b16 %v2575, %v2571
    %v2756 = vpack.c.b16 %v2576, %v2572
    %v2757 = vpack.c.b16 %v2581, %v2577
    %v2758 = vpack.c.b16 %v2582, %v2578
    %v2759 = vpack.c.b16 %v2583, %v2579
    %v2760 = vpack.c.b16 %v2584, %v2580
    %v2761 = vpack.c.b16 %v2589, %v2585
    %v2762 = vpack.c.b16 %v2590, %v2586
    %v2763 = vpack.c.b16 %v2591, %v2587
    %v2764 = vpack.c.b16 %v2592, %v2588
    %v2765 = vpack.c.b16 %v2597, %v2593
    %v2766 = vpack.c.b16 %v2598, %v2594
    %v2767 = vpack.c.b16 %v2599, %v2595
    %v2768 = vpack.c.b16 %v2600, %v2596
    %v2769 = vpack.c.b16 %v2605, %v2601
    %v2770 = vpack.c.b16 %v2606, %v2602
    %v2771 = vpack.c.b16 %v2607, %v2603
    %v2772 = vpack.c.b16 %v2608, %v2604
    %v2773 = vpack.c.b16 %v2613, %v2609
    %v2774 = vpack.c.b16 %v2614, %v2610
    %v2775 = vpack.c.b16 %v2615, %v2611
    %v2776 = vpack.c.b16 %v2616, %v2612
    %v2777 = vpack.c.b16 %v2621, %v2617
    %v2778 = vpack.c.b16 %v2622, %v2618
    %v2779 = vpack.c.b16 %v2623, %v2619
    %v2780 = vpack.c.b16 %v2624, %v2620
    %v2781 = vpack.c.b16 %v2629, %v2625
    %v2782 = vpack.c.b16 %v2630, %v2626
    %v2783 = vpack.c.b16 %v2631, %v2627
    %v2784 = vpack.c.b16 %v2632, %v2628
    %v2785 = vpack.c.b16 %v2637, %v2633
    %v2786 = vpack.c.b16 %v2638, %v2634
    %v2787 = vpack.c.b16 %v2639, %v2635
    %v2788 = vpack.c.b16 %v2640, %v2636
    %v2789 = vpack.c.b16 %v2645, %v2641
    %v2790 = vpack.c.b16 %v2646, %v2642
    %v2791 = vpack.c.b16 %v2647, %v2643
    %v2792 = vpack.c.b16 %v2648, %v2644
    %v2793 = vpack.c.b16 %v2653, %v2649
    %v2794 = vpack.c.b16 %v2654, %v2650
    %v2795 = vpack.c.b16 %v2655, %v2651
    %v2796 = vpack.c.b16 %v2656, %v2652
    %v2797 = vpack.c.b16 %v2661, %v2657
    %v2798 = vpack.c.b16 %v2662, %v2658
    %v2799 = vpack.c.b16 %v2663, %v2659
    %v2800 = vpack.c.b16 %v2664, %v2660
    %v2801 = vpack.c.b16 %v2669, %v2665
    %v2802 = vpack.c.b16 %v2670, %v2666
    %v2803 = vpack.c.b16 %v2671, %v2667
    %v2804 = vpack.c.b16 %v2672, %v2668
    %v2805 = vpack.c.b16 %v2677, %v2673
    %v2806 = vpack.c.b16 %v2678, %v2674
    %v2807 = vpack.c.b16 %v2679, %v2675
    %v2808 = vpack.c.b16 %v2680, %v2676
    %2937 = vmatpush.bf16.msra.mxu0 %v2709
    %2938 = vmatpush.bf16.msra.mxu0 %v2705
    %2939 = vmatpush.bf16.msra.mxu0 %v2701
    %2940 = vmatpush.bf16.msra.mxu0 %v2697
    %2941 = vmatpush.bf16.msra.mxu0 %v2693
    %2942 = vmatpush.bf16.msra.mxu0 %v2689
    %2943 = vmatpush.bf16.msra.mxu0 %v2685
    %2944 = vmatpush.bf16.msra.mxu0 %v2681
    %2945 = vmatmul.bf16.gmra.mxu0 %v2155
    %v2946 = vpop.f32.mrf.mxu0
    %v2947 = vadd.f32 %v2289, %v2946
    %v2948 = vpop.f32.mrf.mxu0
    %2949 = vdwg.mxu0
    %2950 = vmatpush.bf16.msra.mxu0 %v2741
    %2951 = vmatpush.bf16.msra.mxu0 %v2737
    %2952 = vmatpush.bf16.msra.mxu0 %v2733
    %2953 = vmatpush.bf16.msra.mxu0 %v2729
    %2954 = vmatpush.bf16.msra.mxu0 %v2725
    %2955 = vmatpush.bf16.msra.mxu0 %v2721
    %2956 = vmatpush.bf16.msra.mxu0 %v2717
    %2957 = vmatpush.bf16.msra.mxu0 %v2713
    %2958 = vmatmul.bf16.gmra.mxu0 %v2156
    %v2959 = vpop.f32.mrf.mxu0
    %v2960 = vadd.f32 %v2947, %v2959
    %v2961 = vpop.f32.mrf.mxu0
    %2962 = vdwg.mxu0
    %2963 = vmatpush.bf16.msra.mxu0 %v2773
    %2964 = vmatpush.bf16.msra.mxu0 %v2769
    %2965 = vmatpush.bf16.msra.mxu0 %v2765
    %2966 = vmatpush.bf16.msra.mxu0 %v2761
    %2967 = vmatpush.bf16.msra.mxu0 %v2757
    %2968 = vmatpush.bf16.msra.mxu0 %v2753
    %2969 = vmatpush.bf16.msra.mxu0 %v2749
    %2970 = vmatpush.bf16.msra.mxu0 %v2745
    %2971 = vmatmul.bf16.gmra.mxu0 %v2157
    %v2972 = vpop.f32.mrf.mxu0
    %v2973 = vadd.f32 %v2960, %v2972
    %v2974 = vpop.f32.mrf.mxu0
    %2975 = vdwg.mxu0
    %2976 = vmatpush.bf16.msra.mxu0 %v2805
    %2977 = vmatpush.bf16.msra.mxu0 %v2801
    %2978 = vmatpush.bf16.msra.mxu0 %v2797
    %2979 = vmatpush.bf16.msra.mxu0 %v2793
    %2980 = vmatpush.bf16.msra.mxu0 %v2789
    %2981 = vmatpush.bf16.msra.mxu0 %v2785
    %2982 = vmatpush.bf16.msra.mxu0 %v2781
    %2983 = vmatpush.bf16.msra.mxu0 %v2777
    %2984 = vmatmul.bf16.gmra.mxu0 %v2158
    %v2985 = vpop.f32.mrf.mxu0
    %v2986 = vadd.f32 %v2973, %v2985
    %v2987 = vpop.f32.mrf.mxu0
    %2988 = vdwg.mxu0
    %2989 = vmatpush.bf16.msra.mxu0 %v2710
    %2990 = vmatpush.bf16.msra.mxu0 %v2706
    %2991 = vmatpush.bf16.msra.mxu0 %v2702
    %2992 = vmatpush.bf16.msra.mxu0 %v2698
    %2993 = vmatpush.bf16.msra.mxu0 %v2694
    %2994 = vmatpush.bf16.msra.mxu0 %v2690
    %2995 = vmatpush.bf16.msra.mxu0 %v2686
    %2996 = vmatpush.bf16.msra.mxu0 %v2682
    %2997 = vmatmul.bf16.gmra.mxu0 %v2155
    %v2998 = vpop.f32.mrf.mxu0
    %v2999 = vadd.f32 %v2290, %v2998
    %v3000 = vpop.f32.mrf.mxu0
    %3001 = vdwg.mxu0
    %3002 = vmatpush.bf16.msra.mxu0 %v2742
    %3003 = vmatpush.bf16.msra.mxu0 %v2738
    %3004 = vmatpush.bf16.msra.mxu0 %v2734
    %3005 = vmatpush.bf16.msra.mxu0 %v2730
    %3006 = vmatpush.bf16.msra.mxu0 %v2726
    %3007 = vmatpush.bf16.msra.mxu0 %v2722
    %3008 = vmatpush.bf16.msra.mxu0 %v2718
    %3009 = vmatpush.bf16.msra.mxu0 %v2714
    %3010 = vmatmul.bf16.gmra.mxu0 %v2156
    %v3011 = vpop.f32.mrf.mxu0
    %v3012 = vadd.f32 %v2999, %v3011
    %v3013 = vpop.f32.mrf.mxu0
    %3014 = vdwg.mxu0
    %3015 = vmatpush.bf16.msra.mxu0 %v2774
    %3016 = vmatpush.bf16.msra.mxu0 %v2770
    %3017 = vmatpush.bf16.msra.mxu0 %v2766
    %3018 = vmatpush.bf16.msra.mxu0 %v2762
    %3019 = vmatpush.bf16.msra.mxu0 %v2758
    %3020 = vmatpush.bf16.msra.mxu0 %v2754
    %3021 = vmatpush.bf16.msra.mxu0 %v2750
    %3022 = vmatpush.bf16.msra.mxu0 %v2746
    %3023 = vmatmul.bf16.gmra.mxu0 %v2157
    %v3024 = vpop.f32.mrf.mxu0
    %v3025 = vadd.f32 %v3012, %v3024
    %v3026 = vpop.f32.mrf.mxu0
    %3027 = vdwg.mxu0
    %3028 = vmatpush.bf16.msra.mxu0 %v2806
    %3029 = vmatpush.bf16.msra.mxu0 %v2802
    %3030 = vmatpush.bf16.msra.mxu0 %v2798
    %3031 = vmatpush.bf16.msra.mxu0 %v2794
    %3032 = vmatpush.bf16.msra.mxu0 %v2790
    %3033 = vmatpush.bf16.msra.mxu0 %v2786
    %3034 = vmatpush.bf16.msra.mxu0 %v2782
    %3035 = vmatpush.bf16.msra.mxu0 %v2778
    %3036 = vmatmul.bf16.gmra.mxu0 %v2158
    %v3037 = vpop.f32.mrf.mxu0
    %v3038 = vadd.f32 %v3025, %v3037
    %v3039 = vpop.f32.mrf.mxu0
    %3040 = vdwg.mxu0
    %3041 = vmatpush.bf16.msra.mxu0 %v2711
    %3042 = vmatpush.bf16.msra.mxu0 %v2707
    %3043 = vmatpush.bf16.msra.mxu0 %v2703
    %3044 = vmatpush.bf16.msra.mxu0 %v2699
    %3045 = vmatpush.bf16.msra.mxu0 %v2695
    %3046 = vmatpush.bf16.msra.mxu0 %v2691
    %3047 = vmatpush.bf16.msra.mxu0 %v2687
    %3048 = vmatpush.bf16.msra.mxu0 %v2683
    %3049 = vmatmul.bf16.gmra.mxu0 %v2155
    %v3050 = vpop.f32.mrf.mxu0
    %v3051 = vadd.f32 %v2291, %v3050
    %v3052 = vpop.f32.mrf.mxu0
    %3053 = vdwg.mxu0
    %3054 = vmatpush.bf16.msra.mxu0 %v2743
    %3055 = vmatpush.bf16.msra.mxu0 %v2739
    %3056 = vmatpush.bf16.msra.mxu0 %v2735
    %3057 = vmatpush.bf16.msra.mxu0 %v2731
    %3058 = vmatpush.bf16.msra.mxu0 %v2727
    %3059 = vmatpush.bf16.msra.mxu0 %v2723
    %3060 = vmatpush.bf16.msra.mxu0 %v2719
    %3061 = vmatpush.bf16.msra.mxu0 %v2715
    %3062 = vmatmul.bf16.gmra.mxu0 %v2156
    %v3063 = vpop.f32.mrf.mxu0
    %v3064 = vadd.f32 %v3051, %v3063
    %v3065 = vpop.f32.mrf.mxu0
    %3066 = vdwg.mxu0
    %3067 = vmatpush.bf16.msra.mxu0 %v2775
    %3068 = vmatpush.bf16.msra.mxu0 %v2771
    %3069 = vmatpush.bf16.msra.mxu0 %v2767
    %3070 = vmatpush.bf16.msra.mxu0 %v2763
    %3071 = vmatpush.bf16.msra.mxu0 %v2759
    %3072 = vmatpush.bf16.msra.mxu0 %v2755
    %3073 = vmatpush.bf16.msra.mxu0 %v2751
    %3074 = vmatpush.bf16.msra.mxu0 %v2747
    %3075 = vmatmul.bf16.gmra.mxu0 %v2157
    %v3076 = vpop.f32.mrf.mxu0
    %v3077 = vadd.f32 %v3064, %v3076
    %v3078 = vpop.f32.mrf.mxu0
    %3079 = vdwg.mxu0
    %3080 = vmatpush.bf16.msra.mxu0 %v2807
    %3081 = vmatpush.bf16.msra.mxu0 %v2803
    %3082 = vmatpush.bf16.msra.mxu0 %v2799
    %3083 = vmatpush.bf16.msra.mxu0 %v2795
    %3084 = vmatpush.bf16.msra.mxu0 %v2791
    %3085 = vmatpush.bf16.msra.mxu0 %v2787
    %3086 = vmatpush.bf16.msra.mxu0 %v2783
    %3087 = vmatpush.bf16.msra.mxu0 %v2779
    %3088 = vmatmul.bf16.gmra.mxu0 %v2158
    %v3089 = vpop.f32.mrf.mxu0
    %v3090 = vadd.f32 %v3077, %v3089
    %v3091 = vpop.f32.mrf.mxu0
    %3092 = vdwg.mxu0
    %3093 = vmatpush.bf16.msra.mxu0 %v2712
    %3094 = vmatpush.bf16.msra.mxu0 %v2708
    %3095 = vmatpush.bf16.msra.mxu0 %v2704
    %3096 = vmatpush.bf16.msra.mxu0 %v2700
    %3097 = vmatpush.bf16.msra.mxu0 %v2696
    %3098 = vmatpush.bf16.msra.mxu0 %v2692
    %3099 = vmatpush.bf16.msra.mxu0 %v2688
    %3100 = vmatpush.bf16.msra.mxu0 %v2684
    %3101 = vmatmul.bf16.gmra.mxu0 %v2155
    %v3102 = vpop.f32.mrf.mxu0
    %v3103 = vadd.f32 %v2292, %v3102
    %v3104 = vpop.f32.mrf.mxu0
    %3105 = vdwg.mxu0
    %3106 = vmatpush.bf16.msra.mxu0 %v2744
    %3107 = vmatpush.bf16.msra.mxu0 %v2740
    %3108 = vmatpush.bf16.msra.mxu0 %v2736
    %3109 = vmatpush.bf16.msra.mxu0 %v2732
    %3110 = vmatpush.bf16.msra.mxu0 %v2728
    %3111 = vmatpush.bf16.msra.mxu0 %v2724
    %3112 = vmatpush.bf16.msra.mxu0 %v2720
    %3113 = vmatpush.bf16.msra.mxu0 %v2716
    %3114 = vmatmul.bf16.gmra.mxu0 %v2156
    %v3115 = vpop.f32.mrf.mxu0
    %v3116 = vadd.f32 %v3103, %v3115
    %v3117 = vpop.f32.mrf.mxu0
    %3118 = vdwg.mxu0
    %3119 = vmatpush.bf16.msra.mxu0 %v2776
    %3120 = vmatpush.bf16.msra.mxu0 %v2772
    %3121 = vmatpush.bf16.msra.mxu0 %v2768
    %3122 = vmatpush.bf16.msra.mxu0 %v2764
    %3123 = vmatpush.bf16.msra.mxu0 %v2760
    %3124 = vmatpush.bf16.msra.mxu0 %v2756
    %3125 = vmatpush.bf16.msra.mxu0 %v2752
    %3126 = vmatpush.bf16.msra.mxu0 %v2748
    %3127 = vmatmul.bf16.gmra.mxu0 %v2157
    %v3128 = vpop.f32.mrf.mxu0
    %v3129 = vadd.f32 %v3116, %v3128
    %v3130 = vpop.f32.mrf.mxu0
    %3131 = vdwg.mxu0
    %3132 = vmatpush.bf16.msra.mxu0 %v2808
    %3133 = vmatpush.bf16.msra.mxu0 %v2804
    %3134 = vmatpush.bf16.msra.mxu0 %v2800
    %3135 = vmatpush.bf16.msra.mxu0 %v2796
    %3136 = vmatpush.bf16.msra.mxu0 %v2792
    %3137 = vmatpush.bf16.msra.mxu0 %v2788
    %3138 = vmatpush.bf16.msra.mxu0 %v2784
    %3139 = vmatpush.bf16.msra.mxu0 %v2780
    %3140 = vmatmul.bf16.gmra.mxu0 %v2158
    %v3141 = vpop.f32.mrf.mxu0
    %v3142 = vadd.f32 %v3129, %v3141
    %v3143 = vpop.f32.mrf.mxu0
    %3144 = vdwg.mxu0
    %v3145 = vmax.f32 %v2986, 0.0
    %v3146 = vmax.f32 %v3038, 0.0
    %v3147 = vmax.f32 %v3090, 0.0
    %v3148 = vmax.f32 %v3142, 0.0
    %v3149 = vpack.c.bf16 %v3145, %v3145
    %v3150 = vpack.c.bf16 %v3146, %v3146
    %v3151 = vpack.c.bf16 %v3147, %v3147
    %v3152 = vpack.c.bf16 %v3148, %v3148
    %v3153 = vld [vmem:[#allocation14] sm:$0xff]
    %v3154 = vld [vmem:[#allocation14 + $0x8] sm:$0xff]
    %v3155 = vld [vmem:[#allocation14 + $0x10] sm:$0xff]
    %v3156 = vld [vmem:[#allocation14 + $0x18] sm:$0xff]
    %v3157 = vld [vmem:[#allocation14 + $0x20] sm:$0xff]
    %v3158 = vld [vmem:[#allocation14 + $0x28] sm:$0xff]
    %v3159 = vld [vmem:[#allocation14 + $0x30] sm:$0xff]
    %v3160 = vld [vmem:[#allocation14 + $0x38] sm:$0xff]
    %v3161 = vld [vmem:[#allocation14 + $0x40] sm:$0xff]
    %v3162 = vld [vmem:[#allocation14 + $0x48] sm:$0xff]
    %v3163 = vld [vmem:[#allocation14 + $0x50] sm:$0xff]
    %v3164 = vld [vmem:[#allocation14 + $0x58] sm:$0xff]
    %v3165 = vld [vmem:[#allocation14 + $0x60] sm:$0xff]
    %v3166 = vld [vmem:[#allocation14 + $0x68] sm:$0xff]
    %v3167 = vld [vmem:[#allocation14 + $0x70] sm:$0xff]
    %v3168 = vld [vmem:[#allocation14 + $0x78] sm:$0xff]
    %v3169 = vld [vmem:[#allocation14 + $0x80] sm:$0xff]
    %v3170 = vld [vmem:[#allocation14 + $0x88] sm:$0xff]
    %v3171 = vld [vmem:[#allocation14 + $0x90] sm:$0xff]
    %v3172 = vld [vmem:[#allocation14 + $0x98] sm:$0xff]
    %v3173 = vld [vmem:[#allocation14 + $0xa0] sm:$0xff]
    %v3174 = vld [vmem:[#allocation14 + $0xa8] sm:$0xff]
    %v3175 = vld [vmem:[#allocation14 + $0xb0] sm:$0xff]
    %v3176 = vld [vmem:[#allocation14 + $0xb8] sm:$0xff]
    %v3177 = vld [vmem:[#allocation14 + $0xc0] sm:$0xff]
    %v3178 = vld [vmem:[#allocation14 + $0xc8] sm:$0xff]
    %v3179 = vld [vmem:[#allocation14 + $0xd0] sm:$0xff]
    %v3180 = vld [vmem:[#allocation14 + $0xd8] sm:$0xff]
    %v3181 = vld [vmem:[#allocation14 + $0xe0] sm:$0xff]
    %v3182 = vld [vmem:[#allocation14 + $0xe8] sm:$0xff]
    %v3183 = vld [vmem:[#allocation14 + $0xf0] sm:$0xff]
    %v3184 = vld [vmem:[#allocation14 + $0xf8] sm:$0xff]
    %v3185 = vld [vmem:[#allocation14 + $0x100] sm:$0xff]
    %v3186 = vld [vmem:[#allocation14 + $0x108] sm:$0xff]
    %v3187 = vld [vmem:[#allocation14 + $0x110] sm:$0xff]
    %v3188 = vld [vmem:[#allocation14 + $0x118] sm:$0xff]
    %v3189 = vld [vmem:[#allocation14 + $0x120] sm:$0xff]
    %v3190 = vld [vmem:[#allocation14 + $0x128] sm:$0xff]
    %v3191 = vld [vmem:[#allocation14 + $0x130] sm:$0xff]
    %v3192 = vld [vmem:[#allocation14 + $0x138] sm:$0xff]
    %v3193 = vld [vmem:[#allocation14 + $0x140] sm:$0xff]
    %v3194 = vld [vmem:[#allocation14 + $0x148] sm:$0xff]
    %v3195 = vld [vmem:[#allocation14 + $0x150] sm:$0xff]
    %v3196 = vld [vmem:[#allocation14 + $0x158] sm:$0xff]
    %v3197 = vld [vmem:[#allocation14 + $0x160] sm:$0xff]
    %v3198 = vld [vmem:[#allocation14 + $0x168] sm:$0xff]
    %v3199 = vld [vmem:[#allocation14 + $0x170] sm:$0xff]
    %v3200 = vld [vmem:[#allocation14 + $0x178] sm:$0xff]
    %v3201 = vld [vmem:[#allocation14 + $0x180] sm:$0xff]
    %v3202 = vld [vmem:[#allocation14 + $0x188] sm:$0xff]
    %v3203 = vld [vmem:[#allocation14 + $0x190] sm:$0xff]
    %v3204 = vld [vmem:[#allocation14 + $0x198] sm:$0xff]
    %v3205 = vld [vmem:[#allocation14 + $0x1a0] sm:$0xff]
    %v3206 = vld [vmem:[#allocation14 + $0x1a8] sm:$0xff]
    %v3207 = vld [vmem:[#allocation14 + $0x1b0] sm:$0xff]
    %v3208 = vld [vmem:[#allocation14 + $0x1b8] sm:$0xff]
    %v3209 = vld [vmem:[#allocation14 + $0x1c0] sm:$0xff]
    %v3210 = vld [vmem:[#allocation14 + $0x1c8] sm:$0xff]
    %v3211 = vld [vmem:[#allocation14 + $0x1d0] sm:$0xff]
    %v3212 = vld [vmem:[#allocation14 + $0x1d8] sm:$0xff]
    %v3213 = vld [vmem:[#allocation14 + $0x1e0] sm:$0xff]
    %v3214 = vld [vmem:[#allocation14 + $0x1e8] sm:$0xff]
    %v3215 = vld [vmem:[#allocation14 + $0x1f0] sm:$0xff]
    %v3216 = vld [vmem:[#allocation14 + $0x1f8] sm:$0xff]
    %v3217 = vld [vmem:[#allocation14 + $0x200] sm:$0xff]
    %v3218 = vld [vmem:[#allocation14 + $0x208] sm:$0xff]
    %v3219 = vld [vmem:[#allocation14 + $0x210] sm:$0xff]
    %v3220 = vld [vmem:[#allocation14 + $0x218] sm:$0xff]
    %v3221 = vld [vmem:[#allocation14 + $0x220] sm:$0xff]
    %v3222 = vld [vmem:[#allocation14 + $0x228] sm:$0xff]
    %v3223 = vld [vmem:[#allocation14 + $0x230] sm:$0xff]
    %v3224 = vld [vmem:[#allocation14 + $0x238] sm:$0xff]
    %v3225 = vld [vmem:[#allocation14 + $0x240] sm:$0xff]
    %v3226 = vld [vmem:[#allocation14 + $0x248] sm:$0xff]
    %v3227 = vld [vmem:[#allocation14 + $0x250] sm:$0xff]
    %v3228 = vld [vmem:[#allocation14 + $0x258] sm:$0xff]
    %v3229 = vld [vmem:[#allocation14 + $0x260] sm:$0xff]
    %v3230 = vld [vmem:[#allocation14 + $0x268] sm:$0xff]
    %v3231 = vld [vmem:[#allocation14 + $0x270] sm:$0xff]
    %v3232 = vld [vmem:[#allocation14 + $0x278] sm:$0xff]
    %v3233 = vld [vmem:[#allocation14 + $0x280] sm:$0xff]
    %v3234 = vld [vmem:[#allocation14 + $0x288] sm:$0xff]
    %v3235 = vld [vmem:[#allocation14 + $0x290] sm:$0xff]
    %v3236 = vld [vmem:[#allocation14 + $0x298] sm:$0xff]
    %v3237 = vld [vmem:[#allocation14 + $0x2a0] sm:$0xff]
    %v3238 = vld [vmem:[#allocation14 + $0x2a8] sm:$0xff]
    %v3239 = vld [vmem:[#allocation14 + $0x2b0] sm:$0xff]
    %v3240 = vld [vmem:[#allocation14 + $0x2b8] sm:$0xff]
    %v3241 = vld [vmem:[#allocation14 + $0x2c0] sm:$0xff]
    %v3242 = vld [vmem:[#allocation14 + $0x2c8] sm:$0xff]
    %v3243 = vld [vmem:[#allocation14 + $0x2d0] sm:$0xff]
    %v3244 = vld [vmem:[#allocation14 + $0x2d8] sm:$0xff]
    %v3245 = vld [vmem:[#allocation14 + $0x2e0] sm:$0xff]
    %v3246 = vld [vmem:[#allocation14 + $0x2e8] sm:$0xff]
    %v3247 = vld [vmem:[#allocation14 + $0x2f0] sm:$0xff]
    %v3248 = vld [vmem:[#allocation14 + $0x2f8] sm:$0xff]
    %v3249 = vld [vmem:[#allocation14 + $0x300] sm:$0xff]
    %v3250 = vld [vmem:[#allocation14 + $0x308] sm:$0xff]
    %v3251 = vld [vmem:[#allocation14 + $0x310] sm:$0xff]
    %v3252 = vld [vmem:[#allocation14 + $0x318] sm:$0xff]
    %v3253 = vld [vmem:[#allocation14 + $0x320] sm:$0xff]
    %v3254 = vld [vmem:[#allocation14 + $0x328] sm:$0xff]
    %v3255 = vld [vmem:[#allocation14 + $0x330] sm:$0xff]
    %v3256 = vld [vmem:[#allocation14 + $0x338] sm:$0xff]
    %v3257 = vld [vmem:[#allocation14 + $0x340] sm:$0xff]
    %v3258 = vld [vmem:[#allocation14 + $0x348] sm:$0xff]
    %v3259 = vld [vmem:[#allocation14 + $0x350] sm:$0xff]
    %v3260 = vld [vmem:[#allocation14 + $0x358] sm:$0xff]
    %v3261 = vld [vmem:[#allocation14 + $0x360] sm:$0xff]
    %v3262 = vld [vmem:[#allocation14 + $0x368] sm:$0xff]
    %v3263 = vld [vmem:[#allocation14 + $0x370] sm:$0xff]
    %v3264 = vld [vmem:[#allocation14 + $0x378] sm:$0xff]
    %v3265 = vld [vmem:[#allocation14 + $0x380] sm:$0xff]
    %v3266 = vld [vmem:[#allocation14 + $0x388] sm:$0xff]
    %v3267 = vld [vmem:[#allocation14 + $0x390] sm:$0xff]
    %v3268 = vld [vmem:[#allocation14 + $0x398] sm:$0xff]
    %v3269 = vld [vmem:[#allocation14 + $0x3a0] sm:$0xff]
    %v3270 = vld [vmem:[#allocation14 + $0x3a8] sm:$0xff]
    %v3271 = vld [vmem:[#allocation14 + $0x3b0] sm:$0xff]
    %v3272 = vld [vmem:[#allocation14 + $0x3b8] sm:$0xff]
    %v3273 = vld [vmem:[#allocation14 + $0x3c0] sm:$0xff]
    %v3274 = vld [vmem:[#allocation14 + $0x3c8] sm:$0xff]
    %v3275 = vld [vmem:[#allocation14 + $0x3d0] sm:$0xff]
    %v3276 = vld [vmem:[#allocation14 + $0x3d8] sm:$0xff]
    %v3277 = vld [vmem:[#allocation14 + $0x3e0] sm:$0xff]
    %v3278 = vld [vmem:[#allocation14 + $0x3e8] sm:$0xff]
    %v3279 = vld [vmem:[#allocation14 + $0x3f0] sm:$0xff]
    %v3280 = vld [vmem:[#allocation14 + $0x3f8] sm:$0xff]
    %v3281 = vld [vmem:[#allocation16] sm:$0xf]
    %v3283 = vperm.slane %v3281, 0
    %v3284 = vperm.slane %v3281, 1
    %v3285 = vperm.slane %v3281, 2
    %v3286 = vperm.slane %v3281, 3
    %v3419 = vunpack.c.l.b16 %v3153
    %v3420 = vunpack.c.h.b16 %v3153
    %v3421 = vunpack.c.l.b16 %v3154
    %v3422 = vunpack.c.h.b16 %v3154
    %v3423 = vunpack.c.l.b16 %v3155
    %v3424 = vunpack.c.h.b16 %v3155
    %v3425 = vunpack.c.l.b16 %v3156
    %v3426 = vunpack.c.h.b16 %v3156
    %v3427 = vunpack.c.l.b16 %v3157
    %v3428 = vunpack.c.h.b16 %v3157
    %v3429 = vunpack.c.l.b16 %v3158
    %v3430 = vunpack.c.h.b16 %v3158
    %v3431 = vunpack.c.l.b16 %v3159
    %v3432 = vunpack.c.h.b16 %v3159
    %v3433 = vunpack.c.l.b16 %v3160
    %v3434 = vunpack.c.h.b16 %v3160
    %v3435 = vunpack.c.l.b16 %v3161
    %v3436 = vunpack.c.h.b16 %v3161
    %v3437 = vunpack.c.l.b16 %v3162
    %v3438 = vunpack.c.h.b16 %v3162
    %v3439 = vunpack.c.l.b16 %v3163
    %v3440 = vunpack.c.h.b16 %v3163
    %v3441 = vunpack.c.l.b16 %v3164
    %v3442 = vunpack.c.h.b16 %v3164
    %v3443 = vunpack.c.l.b16 %v3165
    %v3444 = vunpack.c.h.b16 %v3165
    %v3445 = vunpack.c.l.b16 %v3166
    %v3446 = vunpack.c.h.b16 %v3166
    %v3447 = vunpack.c.l.b16 %v3167
    %v3448 = vunpack.c.h.b16 %v3167
    %v3449 = vunpack.c.l.b16 %v3168
    %v3450 = vunpack.c.h.b16 %v3168
    %v3451 = vunpack.c.l.b16 %v3169
    %v3452 = vunpack.c.h.b16 %v3169
    %v3453 = vunpack.c.l.b16 %v3170
    %v3454 = vunpack.c.h.b16 %v3170
    %v3455 = vunpack.c.l.b16 %v3171
    %v3456 = vunpack.c.h.b16 %v3171
    %v3457 = vunpack.c.l.b16 %v3172
    %v3458 = vunpack.c.h.b16 %v3172
    %v3459 = vunpack.c.l.b16 %v3173
    %v3460 = vunpack.c.h.b16 %v3173
    %v3461 = vunpack.c.l.b16 %v3174
    %v3462 = vunpack.c.h.b16 %v3174
    %v3463 = vunpack.c.l.b16 %v3175
    %v3464 = vunpack.c.h.b16 %v3175
    %v3465 = vunpack.c.l.b16 %v3176
    %v3466 = vunpack.c.h.b16 %v3176
    %v3467 = vunpack.c.l.b16 %v3177
    %v3468 = vunpack.c.h.b16 %v3177
    %v3469 = vunpack.c.l.b16 %v3178
    %v3470 = vunpack.c.h.b16 %v3178
    %v3471 = vunpack.c.l.b16 %v3179
    %v3472 = vunpack.c.h.b16 %v3179
    %v3473 = vunpack.c.l.b16 %v3180
    %v3474 = vunpack.c.h.b16 %v3180
    %v3475 = vunpack.c.l.b16 %v3181
    %v3476 = vunpack.c.h.b16 %v3181
    %v3477 = vunpack.c.l.b16 %v3182
    %v3478 = vunpack.c.h.b16 %v3182
    %v3479 = vunpack.c.l.b16 %v3183
    %v3480 = vunpack.c.h.b16 %v3183
    %v3481 = vunpack.c.l.b16 %v3184
    %v3482 = vunpack.c.h.b16 %v3184
    %v3483 = vunpack.c.l.b16 %v3185
    %v3484 = vunpack.c.h.b16 %v3185
    %v3485 = vunpack.c.l.b16 %v3186
    %v3486 = vunpack.c.h.b16 %v3186
    %v3487 = vunpack.c.l.b16 %v3187
    %v3488 = vunpack.c.h.b16 %v3187
    %v3489 = vunpack.c.l.b16 %v3188
    %v3490 = vunpack.c.h.b16 %v3188
    %v3491 = vunpack.c.l.b16 %v3189
    %v3492 = vunpack.c.h.b16 %v3189
    %v3493 = vunpack.c.l.b16 %v3190
    %v3494 = vunpack.c.h.b16 %v3190
    %v3495 = vunpack.c.l.b16 %v3191
    %v3496 = vunpack.c.h.b16 %v3191
    %v3497 = vunpack.c.l.b16 %v3192
    %v3498 = vunpack.c.h.b16 %v3192
    %v3499 = vunpack.c.l.b16 %v3193
    %v3500 = vunpack.c.h.b16 %v3193
    %v3501 = vunpack.c.l.b16 %v3194
    %v3502 = vunpack.c.h.b16 %v3194
    %v3503 = vunpack.c.l.b16 %v3195
    %v3504 = vunpack.c.h.b16 %v3195
    %v3505 = vunpack.c.l.b16 %v3196
    %v3506 = vunpack.c.h.b16 %v3196
    %v3507 = vunpack.c.l.b16 %v3197
    %v3508 = vunpack.c.h.b16 %v3197
    %v3509 = vunpack.c.l.b16 %v3198
    %v3510 = vunpack.c.h.b16 %v3198
    %v3511 = vunpack.c.l.b16 %v3199
    %v3512 = vunpack.c.h.b16 %v3199
    %v3513 = vunpack.c.l.b16 %v3200
    %v3514 = vunpack.c.h.b16 %v3200
    %v3515 = vunpack.c.l.b16 %v3201
    %v3516 = vunpack.c.h.b16 %v3201
    %v3517 = vunpack.c.l.b16 %v3202
    %v3518 = vunpack.c.h.b16 %v3202
    %v3519 = vunpack.c.l.b16 %v3203
    %v3520 = vunpack.c.h.b16 %v3203
    %v3521 = vunpack.c.l.b16 %v3204
    %v3522 = vunpack.c.h.b16 %v3204
    %v3523 = vunpack.c.l.b16 %v3205
    %v3524 = vunpack.c.h.b16 %v3205
    %v3525 = vunpack.c.l.b16 %v3206
    %v3526 = vunpack.c.h.b16 %v3206
    %v3527 = vunpack.c.l.b16 %v3207
    %v3528 = vunpack.c.h.b16 %v3207
    %v3529 = vunpack.c.l.b16 %v3208
    %v3530 = vunpack.c.h.b16 %v3208
    %v3531 = vunpack.c.l.b16 %v3209
    %v3532 = vunpack.c.h.b16 %v3209
    %v3533 = vunpack.c.l.b16 %v3210
    %v3534 = vunpack.c.h.b16 %v3210
    %v3535 = vunpack.c.l.b16 %v3211
    %v3536 = vunpack.c.h.b16 %v3211
    %v3537 = vunpack.c.l.b16 %v3212
    %v3538 = vunpack.c.h.b16 %v3212
    %v3539 = vunpack.c.l.b16 %v3213
    %v3540 = vunpack.c.h.b16 %v3213
    %v3541 = vunpack.c.l.b16 %v3214
    %v3542 = vunpack.c.h.b16 %v3214
    %v3543 = vunpack.c.l.b16 %v3215
    %v3544 = vunpack.c.h.b16 %v3215
    %v3545 = vunpack.c.l.b16 %v3216
    %v3546 = vunpack.c.h.b16 %v3216
    %v3547 = vunpack.c.l.b16 %v3217
    %v3548 = vunpack.c.h.b16 %v3217
    %v3549 = vunpack.c.l.b16 %v3218
    %v3550 = vunpack.c.h.b16 %v3218
    %v3551 = vunpack.c.l.b16 %v3219
    %v3552 = vunpack.c.h.b16 %v3219
    %v3553 = vunpack.c.l.b16 %v3220
    %v3554 = vunpack.c.h.b16 %v3220
    %v3555 = vunpack.c.l.b16 %v3221
    %v3556 = vunpack.c.h.b16 %v3221
    %v3557 = vunpack.c.l.b16 %v3222
    %v3558 = vunpack.c.h.b16 %v3222
    %v3559 = vunpack.c.l.b16 %v3223
    %v3560 = vunpack.c.h.b16 %v3223
    %v3561 = vunpack.c.l.b16 %v3224
    %v3562 = vunpack.c.h.b16 %v3224
    %v3563 = vunpack.c.l.b16 %v3225
    %v3564 = vunpack.c.h.b16 %v3225
    %v3565 = vunpack.c.l.b16 %v3226
    %v3566 = vunpack.c.h.b16 %v3226
    %v3567 = vunpack.c.l.b16 %v3227
    %v3568 = vunpack.c.h.b16 %v3227
    %v3569 = vunpack.c.l.b16 %v3228
    %v3570 = vunpack.c.h.b16 %v3228
    %v3571 = vunpack.c.l.b16 %v3229
    %v3572 = vunpack.c.h.b16 %v3229
    %v3573 = vunpack.c.l.b16 %v3230
    %v3574 = vunpack.c.h.b16 %v3230
    %v3575 = vunpack.c.l.b16 %v3231
    %v3576 = vunpack.c.h.b16 %v3231
    %v3577 = vunpack.c.l.b16 %v3232
    %v3578 = vunpack.c.h.b16 %v3232
    %v3579 = vunpack.c.l.b16 %v3233
    %v3580 = vunpack.c.h.b16 %v3233
    %v3581 = vunpack.c.l.b16 %v3234
    %v3582 = vunpack.c.h.b16 %v3234
    %v3583 = vunpack.c.l.b16 %v3235
    %v3584 = vunpack.c.h.b16 %v3235
    %v3585 = vunpack.c.l.b16 %v3236
    %v3586 = vunpack.c.h.b16 %v3236
    %v3587 = vunpack.c.l.b16 %v3237
    %v3588 = vunpack.c.h.b16 %v3237
    %v3589 = vunpack.c.l.b16 %v3238
    %v3590 = vunpack.c.h.b16 %v3238
    %v3591 = vunpack.c.l.b16 %v3239
    %v3592 = vunpack.c.h.b16 %v3239
    %v3593 = vunpack.c.l.b16 %v3240
    %v3594 = vunpack.c.h.b16 %v3240
    %v3595 = vunpack.c.l.b16 %v3241
    %v3596 = vunpack.c.h.b16 %v3241
    %v3597 = vunpack.c.l.b16 %v3242
    %v3598 = vunpack.c.h.b16 %v3242
    %v3599 = vunpack.c.l.b16 %v3243
    %v3600 = vunpack.c.h.b16 %v3243
    %v3601 = vunpack.c.l.b16 %v3244
    %v3602 = vunpack.c.h.b16 %v3244
    %v3603 = vunpack.c.l.b16 %v3245
    %v3604 = vunpack.c.h.b16 %v3245
    %v3605 = vunpack.c.l.b16 %v3246
    %v3606 = vunpack.c.h.b16 %v3246
    %v3607 = vunpack.c.l.b16 %v3247
    %v3608 = vunpack.c.h.b16 %v3247
    %v3609 = vunpack.c.l.b16 %v3248
    %v3610 = vunpack.c.h.b16 %v3248
    %v3611 = vunpack.c.l.b16 %v3249
    %v3612 = vunpack.c.h.b16 %v3249
    %v3613 = vunpack.c.l.b16 %v3250
    %v3614 = vunpack.c.h.b16 %v3250
    %v3615 = vunpack.c.l.b16 %v3251
    %v3616 = vunpack.c.h.b16 %v3251
    %v3617 = vunpack.c.l.b16 %v3252
    %v3618 = vunpack.c.h.b16 %v3252
    %v3619 = vunpack.c.l.b16 %v3253
    %v3620 = vunpack.c.h.b16 %v3253
    %v3621 = vunpack.c.l.b16 %v3254
    %v3622 = vunpack.c.h.b16 %v3254
    %v3623 = vunpack.c.l.b16 %v3255
    %v3624 = vunpack.c.h.b16 %v3255
    %v3625 = vunpack.c.l.b16 %v3256
    %v3626 = vunpack.c.h.b16 %v3256
    %v3627 = vunpack.c.l.b16 %v3257
    %v3628 = vunpack.c.h.b16 %v3257
    %v3629 = vunpack.c.l.b16 %v3258
    %v3630 = vunpack.c.h.b16 %v3258
    %v3631 = vunpack.c.l.b16 %v3259
    %v3632 = vunpack.c.h.b16 %v3259
    %v3633 = vunpack.c.l.b16 %v3260
    %v3634 = vunpack.c.h.b16 %v3260
    %v3635 = vunpack.c.l.b16 %v3261
    %v3636 = vunpack.c.h.b16 %v3261
    %v3637 = vunpack.c.l.b16 %v3262
    %v3638 = vunpack.c.h.b16 %v3262
    %v3639 = vunpack.c.l.b16 %v3263
    %v3640 = vunpack.c.h.b16 %v3263
    %v3641 = vunpack.c.l.b16 %v3264
    %v3642 = vunpack.c.h.b16 %v3264
    %v3643 = vunpack.c.l.b16 %v3265
    %v3644 = vunpack.c.h.b16 %v3265
    %v3645 = vunpack.c.l.b16 %v3266
    %v3646 = vunpack.c.h.b16 %v3266
    %v3647 = vunpack.c.l.b16 %v3267
    %v3648 = vunpack.c.h.b16 %v3267
    %v3649 = vunpack.c.l.b16 %v3268
    %v3650 = vunpack.c.h.b16 %v3268
    %v3651 = vunpack.c.l.b16 %v3269
    %v3652 = vunpack.c.h.b16 %v3269
    %v3653 = vunpack.c.l.b16 %v3270
    %v3654 = vunpack.c.h.b16 %v3270
    %v3655 = vunpack.c.l.b16 %v3271
    %v3656 = vunpack.c.h.b16 %v3271
    %v3657 = vunpack.c.l.b16 %v3272
    %v3658 = vunpack.c.h.b16 %v3272
    %v3659 = vunpack.c.l.b16 %v3273
    %v3660 = vunpack.c.h.b16 %v3273
    %v3661 = vunpack.c.l.b16 %v3274
    %v3662 = vunpack.c.h.b16 %v3274
    %v3663 = vunpack.c.l.b16 %v3275
    %v3664 = vunpack.c.h.b16 %v3275
    %v3665 = vunpack.c.l.b16 %v3276
    %v3666 = vunpack.c.h.b16 %v3276
    %v3667 = vunpack.c.l.b16 %v3277
    %v3668 = vunpack.c.h.b16 %v3277
    %v3669 = vunpack.c.l.b16 %v3278
    %v3670 = vunpack.c.h.b16 %v3278
    %v3671 = vunpack.c.l.b16 %v3279
    %v3672 = vunpack.c.h.b16 %v3279
    %v3673 = vunpack.c.l.b16 %v3280
    %v3674 = vunpack.c.h.b16 %v3280
    %v3675 = vpack.c.b16 %v3423, %v3419
    %v3676 = vpack.c.b16 %v3424, %v3420
    %v3677 = vpack.c.b16 %v3425, %v3421
    %v3678 = vpack.c.b16 %v3426, %v3422
    %v3679 = vpack.c.b16 %v3431, %v3427
    %v3680 = vpack.c.b16 %v3432, %v3428
    %v3681 = vpack.c.b16 %v3433, %v3429
    %v3682 = vpack.c.b16 %v3434, %v3430
    %v3683 = vpack.c.b16 %v3439, %v3435
    %v3684 = vpack.c.b16 %v3440, %v3436
    %v3685 = vpack.c.b16 %v3441, %v3437
    %v3686 = vpack.c.b16 %v3442, %v3438
    %v3687 = vpack.c.b16 %v3447, %v3443
    %v3688 = vpack.c.b16 %v3448, %v3444
    %v3689 = vpack.c.b16 %v3449, %v3445
    %v3690 = vpack.c.b16 %v3450, %v3446
    %v3691 = vpack.c.b16 %v3455, %v3451
    %v3692 = vpack.c.b16 %v3456, %v3452
    %v3693 = vpack.c.b16 %v3457, %v3453
    %v3694 = vpack.c.b16 %v3458, %v3454
    %v3695 = vpack.c.b16 %v3463, %v3459
    %v3696 = vpack.c.b16 %v3464, %v3460
    %v3697 = vpack.c.b16 %v3465, %v3461
    %v3698 = vpack.c.b16 %v3466, %v3462
    %v3699 = vpack.c.b16 %v3471, %v3467
    %v3700 = vpack.c.b16 %v3472, %v3468
    %v3701 = vpack.c.b16 %v3473, %v3469
    %v3702 = vpack.c.b16 %v3474, %v3470
    %v3703 = vpack.c.b16 %v3479, %v3475
    %v3704 = vpack.c.b16 %v3480, %v3476
    %v3705 = vpack.c.b16 %v3481, %v3477
    %v3706 = vpack.c.b16 %v3482, %v3478
    %v3707 = vpack.c.b16 %v3487, %v3483
    %v3708 = vpack.c.b16 %v3488, %v3484
    %v3709 = vpack.c.b16 %v3489, %v3485
    %v3710 = vpack.c.b16 %v3490, %v3486
    %v3711 = vpack.c.b16 %v3495, %v3491
    %v3712 = vpack.c.b16 %v3496, %v3492
    %v3713 = vpack.c.b16 %v3497, %v3493
    %v3714 = vpack.c.b16 %v3498, %v3494
    %v3715 = vpack.c.b16 %v3503, %v3499
    %v3716 = vpack.c.b16 %v3504, %v3500
    %v3717 = vpack.c.b16 %v3505, %v3501
    %v3718 = vpack.c.b16 %v3506, %v3502
    %v3719 = vpack.c.b16 %v3511, %v3507
    %v3720 = vpack.c.b16 %v3512, %v3508
    %v3721 = vpack.c.b16 %v3513, %v3509
    %v3722 = vpack.c.b16 %v3514, %v3510
    %v3723 = vpack.c.b16 %v3519, %v3515
    %v3724 = vpack.c.b16 %v3520, %v3516
    %v3725 = vpack.c.b16 %v3521, %v3517
    %v3726 = vpack.c.b16 %v3522, %v3518
    %v3727 = vpack.c.b16 %v3527, %v3523
    %v3728 = vpack.c.b16 %v3528, %v3524
    %v3729 = vpack.c.b16 %v3529, %v3525
    %v3730 = vpack.c.b16 %v3530, %v3526
    %v3731 = vpack.c.b16 %v3535, %v3531
    %v3732 = vpack.c.b16 %v3536, %v3532
    %v3733 = vpack.c.b16 %v3537, %v3533
    %v3734 = vpack.c.b16 %v3538, %v3534
    %v3735 = vpack.c.b16 %v3543, %v3539
    %v3736 = vpack.c.b16 %v3544, %v3540
    %v3737 = vpack.c.b16 %v3545, %v3541
    %v3738 = vpack.c.b16 %v3546, %v3542
    %v3739 = vpack.c.b16 %v3551, %v3547
    %v3740 = vpack.c.b16 %v3552, %v3548
    %v3741 = vpack.c.b16 %v3553, %v3549
    %v3742 = vpack.c.b16 %v3554, %v3550
    %v3743 = vpack.c.b16 %v3559, %v3555
    %v3744 = vpack.c.b16 %v3560, %v3556
    %v3745 = vpack.c.b16 %v3561, %v3557
    %v3746 = vpack.c.b16 %v3562, %v3558
    %v3747 = vpack.c.b16 %v3567, %v3563
    %v3748 = vpack.c.b16 %v3568, %v3564
    %v3749 = vpack.c.b16 %v3569, %v3565
    %v3750 = vpack.c.b16 %v3570, %v3566
    %v3751 = vpack.c.b16 %v3575, %v3571
    %v3752 = vpack.c.b16 %v3576, %v3572
    %v3753 = vpack.c.b16 %v3577, %v3573
    %v3754 = vpack.c.b16 %v3578, %v3574
    %v3755 = vpack.c.b16 %v3583, %v3579
    %v3756 = vpack.c.b16 %v3584, %v3580
    %v3757 = vpack.c.b16 %v3585, %v3581
    %v3758 = vpack.c.b16 %v3586, %v3582
    %v3759 = vpack.c.b16 %v3591, %v3587
    %v3760 = vpack.c.b16 %v3592, %v3588
    %v3761 = vpack.c.b16 %v3593, %v3589
    %v3762 = vpack.c.b16 %v3594, %v3590
    %v3763 = vpack.c.b16 %v3599, %v3595
    %v3764 = vpack.c.b16 %v3600, %v3596
    %v3765 = vpack.c.b16 %v3601, %v3597
    %v3766 = vpack.c.b16 %v3602, %v3598
    %v3767 = vpack.c.b16 %v3607, %v3603
    %v3768 = vpack.c.b16 %v3608, %v3604
    %v3769 = vpack.c.b16 %v3609, %v3605
    %v3770 = vpack.c.b16 %v3610, %v3606
    %v3771 = vpack.c.b16 %v3615, %v3611
    %v3772 = vpack.c.b16 %v3616, %v3612
    %v3773 = vpack.c.b16 %v3617, %v3613
    %v3774 = vpack.c.b16 %v3618, %v3614
    %v3775 = vpack.c.b16 %v3623, %v3619
    %v3776 = vpack.c.b16 %v3624, %v3620
    %v3777 = vpack.c.b16 %v3625, %v3621
    %v3778 = vpack.c.b16 %v3626, %v3622
    %v3779 = vpack.c.b16 %v3631, %v3627
    %v3780 = vpack.c.b16 %v3632, %v3628
    %v3781 = vpack.c.b16 %v3633, %v3629
    %v3782 = vpack.c.b16 %v3634, %v3630
    %v3783 = vpack.c.b16 %v3639, %v3635
    %v3784 = vpack.c.b16 %v3640, %v3636
    %v3785 = vpack.c.b16 %v3641, %v3637
    %v3786 = vpack.c.b16 %v3642, %v3638
    %v3787 = vpack.c.b16 %v3647, %v3643
    %v3788 = vpack.c.b16 %v3648, %v3644
    %v3789 = vpack.c.b16 %v3649, %v3645
    %v3790 = vpack.c.b16 %v3650, %v3646
    %v3791 = vpack.c.b16 %v3655, %v3651
    %v3792 = vpack.c.b16 %v3656, %v3652
    %v3793 = vpack.c.b16 %v3657, %v3653
    %v3794 = vpack.c.b16 %v3658, %v3654
    %v3795 = vpack.c.b16 %v3663, %v3659
    %v3796 = vpack.c.b16 %v3664, %v3660
    %v3797 = vpack.c.b16 %v3665, %v3661
    %v3798 = vpack.c.b16 %v3666, %v3662
    %v3799 = vpack.c.b16 %v3671, %v3667
    %v3800 = vpack.c.b16 %v3672, %v3668
    %v3801 = vpack.c.b16 %v3673, %v3669
    %v3802 = vpack.c.b16 %v3674, %v3670
    %3931 = vmatpush.bf16.msra.mxu0 %v3703
    %3932 = vmatpush.bf16.msra.mxu0 %v3699
    %3933 = vmatpush.bf16.msra.mxu0 %v3695
    %3934 = vmatpush.bf16.msra.mxu0 %v3691
    %3935 = vmatpush.bf16.msra.mxu0 %v3687
    %3936 = vmatpush.bf16.msra.mxu0 %v3683
    %3937 = vmatpush.bf16.msra.mxu0 %v3679
    %3938 = vmatpush.bf16.msra.mxu0 %v3675
    %3939 = vmatmul.bf16.gmra.mxu0 %v3149
    %v3940 = vpop.f32.mrf.mxu0
    %v3941 = vadd.f32 %v3283, %v3940
    %v3942 = vpop.f32.mrf.mxu0
    %3943 = vdwg.mxu0
    %3944 = vmatpush.bf16.msra.mxu0 %v3735
    %3945 = vmatpush.bf16.msra.mxu0 %v3731
    %3946 = vmatpush.bf16.msra.mxu0 %v3727
    %3947 = vmatpush.bf16.msra.mxu0 %v3723
    %3948 = vmatpush.bf16.msra.mxu0 %v3719
    %3949 = vmatpush.bf16.msra.mxu0 %v3715
    %3950 = vmatpush.bf16.msra.mxu0 %v3711
    %3951 = vmatpush.bf16.msra.mxu0 %v3707
    %3952 = vmatmul.bf16.gmra.mxu0 %v3150
    %v3953 = vpop.f32.mrf.mxu0
    %v3954 = vadd.f32 %v3941, %v3953
    %v3955 = vpop.f32.mrf.mxu0
    %3956 = vdwg.mxu0
    %3957 = vmatpush.bf16.msra.mxu0 %v3767
    %3958 = vmatpush.bf16.msra.mxu0 %v3763
    %3959 = vmatpush.bf16.msra.mxu0 %v3759
    %3960 = vmatpush.bf16.msra.mxu0 %v3755
    %3961 = vmatpush.bf16.msra.mxu0 %v3751
    %3962 = vmatpush.bf16.msra.mxu0 %v3747
    %3963 = vmatpush.bf16.msra.mxu0 %v3743
    %3964 = vmatpush.bf16.msra.mxu0 %v3739
    %3965 = vmatmul.bf16.gmra.mxu0 %v3151
    %v3966 = vpop.f32.mrf.mxu0
    %v3967 = vadd.f32 %v3954, %v3966
    %v3968 = vpop.f32.mrf.mxu0
    %3969 = vdwg.mxu0
    %3970 = vmatpush.bf16.msra.mxu0 %v3799
    %3971 = vmatpush.bf16.msra.mxu0 %v3795
    %3972 = vmatpush.bf16.msra.mxu0 %v3791
    %3973 = vmatpush.bf16.msra.mxu0 %v3787
    %3974 = vmatpush.bf16.msra.mxu0 %v3783
    %3975 = vmatpush.bf16.msra.mxu0 %v3779
    %3976 = vmatpush.bf16.msra.mxu0 %v3775
    %3977 = vmatpush.bf16.msra.mxu0 %v3771
    %3978 = vmatmul.bf16.gmra.mxu0 %v3152
    %v3979 = vpop.f32.mrf.mxu0
    %v3980 = vadd.f32 %v3967, %v3979
    %v3981 = vpop.f32.mrf.mxu0
    %3982 = vdwg.mxu0
    %3983 = vmatpush.bf16.msra.mxu0 %v3704
    %3984 = vmatpush.bf16.msra.mxu0 %v3700
    %3985 = vmatpush.bf16.msra.mxu0 %v3696
    %3986 = vmatpush.bf16.msra.mxu0 %v3692
    %3987 = vmatpush.bf16.msra.mxu0 %v3688
    %3988 = vmatpush.bf16.msra.mxu0 %v3684
    %3989 = vmatpush.bf16.msra.mxu0 %v3680
    %3990 = vmatpush.bf16.msra.mxu0 %v3676
    %3991 = vmatmul.bf16.gmra.mxu0 %v3149
    %v3992 = vpop.f32.mrf.mxu0
    %v3993 = vadd.f32 %v3284, %v3992
    %v3994 = vpop.f32.mrf.mxu0
    %3995 = vdwg.mxu0
    %3996 = vmatpush.bf16.msra.mxu0 %v3736
    %3997 = vmatpush.bf16.msra.mxu0 %v3732
    %3998 = vmatpush.bf16.msra.mxu0 %v3728
    %3999 = vmatpush.bf16.msra.mxu0 %v3724
    %4000 = vmatpush.bf16.msra.mxu0 %v3720
    %4001 = vmatpush.bf16.msra.mxu0 %v3716
    %4002 = vmatpush.bf16.msra.mxu0 %v3712
    %4003 = vmatpush.bf16.msra.mxu0 %v3708
    %4004 = vmatmul.bf16.gmra.mxu0 %v3150
    %v4005 = vpop.f32.mrf.mxu0
    %v4006 = vadd.f32 %v3993, %v4005
    %v4007 = vpop.f32.mrf.mxu0
    %4008 = vdwg.mxu0
    %4009 = vmatpush.bf16.msra.mxu0 %v3768
    %4010 = vmatpush.bf16.msra.mxu0 %v3764
    %4011 = vmatpush.bf16.msra.mxu0 %v3760
    %4012 = vmatpush.bf16.msra.mxu0 %v3756
    %4013 = vmatpush.bf16.msra.mxu0 %v3752
    %4014 = vmatpush.bf16.msra.mxu0 %v3748
    %4015 = vmatpush.bf16.msra.mxu0 %v3744
    %4016 = vmatpush.bf16.msra.mxu0 %v3740
    %4017 = vmatmul.bf16.gmra.mxu0 %v3151
    %v4018 = vpop.f32.mrf.mxu0
    %v4019 = vadd.f32 %v4006, %v4018
    %v4020 = vpop.f32.mrf.mxu0
    %4021 = vdwg.mxu0
    %4022 = vmatpush.bf16.msra.mxu0 %v3800
    %4023 = vmatpush.bf16.msra.mxu0 %v3796
    %4024 = vmatpush.bf16.msra.mxu0 %v3792
    %4025 = vmatpush.bf16.msra.mxu0 %v3788
    %4026 = vmatpush.bf16.msra.mxu0 %v3784
    %4027 = vmatpush.bf16.msra.mxu0 %v3780
    %4028 = vmatpush.bf16.msra.mxu0 %v3776
    %4029 = vmatpush.bf16.msra.mxu0 %v3772
    %4030 = vmatmul.bf16.gmra.mxu0 %v3152
    %v4031 = vpop.f32.mrf.mxu0
    %v4032 = vadd.f32 %v4019, %v4031
    %v4033 = vpop.f32.mrf.mxu0
    %4034 = vdwg.mxu0
    %4035 = vmatpush.bf16.msra.mxu0 %v3705
    %4036 = vmatpush.bf16.msra.mxu0 %v3701
    %4037 = vmatpush.bf16.msra.mxu0 %v3697
    %4038 = vmatpush.bf16.msra.mxu0 %v3693
    %4039 = vmatpush.bf16.msra.mxu0 %v3689
    %4040 = vmatpush.bf16.msra.mxu0 %v3685
    %4041 = vmatpush.bf16.msra.mxu0 %v3681
    %4042 = vmatpush.bf16.msra.mxu0 %v3677
    %4043 = vmatmul.bf16.gmra.mxu0 %v3149
    %v4044 = vpop.f32.mrf.mxu0
    %v4045 = vadd.f32 %v3285, %v4044
    %v4046 = vpop.f32.mrf.mxu0
    %4047 = vdwg.mxu0
    %4048 = vmatpush.bf16.msra.mxu0 %v3737
    %4049 = vmatpush.bf16.msra.mxu0 %v3733
    %4050 = vmatpush.bf16.msra.mxu0 %v3729
    %4051 = vmatpush.bf16.msra.mxu0 %v3725
    %4052 = vmatpush.bf16.msra.mxu0 %v3721
    %4053 = vmatpush.bf16.msra.mxu0 %v3717
    %4054 = vmatpush.bf16.msra.mxu0 %v3713
    %4055 = vmatpush.bf16.msra.mxu0 %v3709
    %4056 = vmatmul.bf16.gmra.mxu0 %v3150
    %v4057 = vpop.f32.mrf.mxu0
    %v4058 = vadd.f32 %v4045, %v4057
    %v4059 = vpop.f32.mrf.mxu0
    %4060 = vdwg.mxu0
    %4061 = vmatpush.bf16.msra.mxu0 %v3769
    %4062 = vmatpush.bf16.msra.mxu0 %v3765
    %4063 = vmatpush.bf16.msra.mxu0 %v3761
    %4064 = vmatpush.bf16.msra.mxu0 %v3757
    %4065 = vmatpush.bf16.msra.mxu0 %v3753
    %4066 = vmatpush.bf16.msra.mxu0 %v3749
    %4067 = vmatpush.bf16.msra.mxu0 %v3745
    %4068 = vmatpush.bf16.msra.mxu0 %v3741
    %4069 = vmatmul.bf16.gmra.mxu0 %v3151
    %v4070 = vpop.f32.mrf.mxu0
    %v4071 = vadd.f32 %v4058, %v4070
    %v4072 = vpop.f32.mrf.mxu0
    %4073 = vdwg.mxu0
    %4074 = vmatpush.bf16.msra.mxu0 %v3801
    %4075 = vmatpush.bf16.msra.mxu0 %v3797
    %4076 = vmatpush.bf16.msra.mxu0 %v3793
    %4077 = vmatpush.bf16.msra.mxu0 %v3789
    %4078 = vmatpush.bf16.msra.mxu0 %v3785
    %4079 = vmatpush.bf16.msra.mxu0 %v3781
    %4080 = vmatpush.bf16.msra.mxu0 %v3777
    %4081 = vmatpush.bf16.msra.mxu0 %v3773
    %4082 = vmatmul.bf16.gmra.mxu0 %v3152
    %v4083 = vpop.f32.mrf.mxu0
    %v4084 = vadd.f32 %v4071, %v4083
    %v4085 = vpop.f32.mrf.mxu0
    %4086 = vdwg.mxu0
    %4087 = vmatpush.bf16.msra.mxu0 %v3706
    %4088 = vmatpush.bf16.msra.mxu0 %v3702
    %4089 = vmatpush.bf16.msra.mxu0 %v3698
    %4090 = vmatpush.bf16.msra.mxu0 %v3694
    %4091 = vmatpush.bf16.msra.mxu0 %v3690
    %4092 = vmatpush.bf16.msra.mxu0 %v3686
    %4093 = vmatpush.bf16.msra.mxu0 %v3682
    %4094 = vmatpush.bf16.msra.mxu0 %v3678
    %4095 = vmatmul.bf16.gmra.mxu0 %v3149
    %v4096 = vpop.f32.mrf.mxu0
    %v4097 = vadd.f32 %v3286, %v4096
    %v4098 = vpop.f32.mrf.mxu0
    %4099 = vdwg.mxu0
    %4100 = vmatpush.bf16.msra.mxu0 %v3738
    %4101 = vmatpush.bf16.msra.mxu0 %v3734
    %4102 = vmatpush.bf16.msra.mxu0 %v3730
    %4103 = vmatpush.bf16.msra.mxu0 %v3726
    %4104 = vmatpush.bf16.msra.mxu0 %v3722
    %4105 = vmatpush.bf16.msra.mxu0 %v3718
    %4106 = vmatpush.bf16.msra.mxu0 %v3714
    %4107 = vmatpush.bf16.msra.mxu0 %v3710
    %4108 = vmatmul.bf16.gmra.mxu0 %v3150
    %v4109 = vpop.f32.mrf.mxu0
    %v4110 = vadd.f32 %v4097, %v4109
    %v4111 = vpop.f32.mrf.mxu0
    %4112 = vdwg.mxu0
    %4113 = vmatpush.bf16.msra.mxu0 %v3770
    %4114 = vmatpush.bf16.msra.mxu0 %v3766
    %4115 = vmatpush.bf16.msra.mxu0 %v3762
    %4116 = vmatpush.bf16.msra.mxu0 %v3758
    %4117 = vmatpush.bf16.msra.mxu0 %v3754
    %4118 = vmatpush.bf16.msra.mxu0 %v3750
    %4119 = vmatpush.bf16.msra.mxu0 %v3746
    %4120 = vmatpush.bf16.msra.mxu0 %v3742
    %4121 = vmatmul.bf16.gmra.mxu0 %v3151
    %v4122 = vpop.f32.mrf.mxu0
    %v4123 = vadd.f32 %v4110, %v4122
    %v4124 = vpop.f32.mrf.mxu0
    %4125 = vdwg.mxu0
    %4126 = vmatpush.bf16.msra.mxu0 %v3802
    %4127 = vmatpush.bf16.msra.mxu0 %v3798
    %4128 = vmatpush.bf16.msra.mxu0 %v3794
    %4129 = vmatpush.bf16.msra.mxu0 %v3790
    %4130 = vmatpush.bf16.msra.mxu0 %v3786
    %4131 = vmatpush.bf16.msra.mxu0 %v3782
    %4132 = vmatpush.bf16.msra.mxu0 %v3778
    %4133 = vmatpush.bf16.msra.mxu0 %v3774
    %4134 = vmatmul.bf16.gmra.mxu0 %v3152
    %v4135 = vpop.f32.mrf.mxu0
    %v4136 = vadd.f32 %v4123, %v4135
    %v4137 = vpop.f32.mrf.mxu0
    %4138 = vdwg.mxu0
    %4139 = vst [vmem:[#allocation17] sm:$0xff] %v3980
    %4140 = vst [vmem:[#allocation17 + $0x8] sm:$0xff] %v4032
    %4141 = vst [vmem:[#allocation17 + $0x10] sm:$0xff] %v4084
    %4142 = vst [vmem:[#allocation17 + $0x18] sm:$0xff] %v4136
    // Predicated region
    $region74: #{autoencoder_forward.1} parent=1 // pred_check
      _
    $region75: #{autoencoder_forward.1} parent=1 // pred_check_branch
      %4144 = sbr.rel (0) target = $region77
    $region76: #{autoencoder_forward.1} parent=1 // pred_region
      %4146 = vsyncadd [#allocation4], 0
      %s4148 = sshll.u32 [#allocation17], 4
      %s4149 = int_to_ptr.vmem [resolvable:$true] %s4148
      %s4150 = sshll.u32 %s9, 4
      %s4151 = int_to_ptr.hbm [resolvable:$true] %s4150
      %4153 = dma.vmem_to_hbm [thread:$0]  %s4149, 512, %s4151, [#allocation4]
    $region77: #{autoencoder_forward.1} parent=1 // pred_fallthru
      _
    // Predicated region
    $region78: #{autoencoder_forward.1} parent=1 // pred_check
      _
    $region79: #{autoencoder_forward.1} parent=1 // pred_check_branch
      %4155 = sbr.rel (0) target = $region81
    $region80: #{autoencoder_forward.1} parent=1 // pred_region
      %4157 = dma.done [#allocation4], 512
    $region81: #{autoencoder_forward.1} parent=1 // pred_fallthru
      _
    %4158 = vsyncpa [#allocation3], 1
    %4159 = vsyncpa [#allocation6], 1
    %4160 = vsyncpa [#allocation9], 1
    %4161 = vsyncpa [#allocation12], 1
    %4162 = vsyncpa [#allocation15], 1
    %4163 = vsyncpa [#allocation4], 1

</llo_original>
